<compile_context>
chip_gen: v7x
topology: tpu7x:2x2x1
jax: 0.10.0
libtpu: 0.0.40
codegen_flags: <defaults>
</compile_context>

<pallas_src>
import functools

import numpy as np
import jax
import jax.numpy as jnp
from jax.experimental import pallas as pl
from jax.experimental.pallas import tpu as pltpu


def _decoder_kernel(p_ref, grid_ref, proj_ref,
                    wp_ref, bp_ref,
                    w0a_ref, b0a_ref, w0b_ref, b0b_ref, w0s_ref,
                    wa_ref, ba_ref, wb_ref, bb_ref,
                    wout_ref, bout_ref,
                    out_ref,
                    *, grid_h, grid_w, inv_interval, tent_bf16):
    n_levels, hw, d_dim = grid_ref.shape          # (L, H*W, D) view for this batch
    t_tile = p_ref.shape[0]

    p_tile = p_ref[...]                                        # (Tt, 3) f32

    # Projection: all scalar constants (1/max_dim, 1/(den+0.05), 1/interval)
    # are pre-folded into A in the wrapper.
    A = proj_ref[...]                                          # (3, 2L)
    xy = (p_tile[:, 0:1] * A[0:1, :] + p_tile[:, 1:2] * A[1:2, :]
          + p_tile[:, 2:3] * A[2:3, :]) + inv_interval         # (Tt, 2L)

    # Per-axis cell coordinates (tiny, shared by all levels / points).
    row_f = jax.lax.broadcasted_iota(jnp.int32, (1, grid_h), 1).astype(jnp.float32)
    col_f = jax.lax.broadcasted_iota(jnp.int32, (1, grid_w), 1).astype(jnp.float32)

    # ---- BillinearInterpolation ---------------------------------------------
    # Separable bilinear "tent": weight of cell (r, c) for point (x, y) is
    # relu(1-|r-x|) * relu(1-|c-y|) == the reference's dx*dy / (1-dx)*dy / ...
    # Built as an outer product of per-axis tents, contracted per level against
    # the bf16 feature plane on the MXU with f32 accumulation.
    c_feat = jnp.zeros((t_tile, d_dim), jnp.float32)
    for l in range(n_levels):                                  # static unroll, L small
        x = xy[:, 2 * l:2 * l + 1]                             # (Tt, 1)
        y = xy[:, 2 * l + 1:2 * l + 2]                         # (Tt, 1)
        wxh = jnp.maximum(1.0 - jnp.abs(row_f - x), 0.0)       # (Tt, H) row tent
        wyw = jnp.maximum(1.0 - jnp.abs(col_f - y), 0.0)       # (Tt, W) col tent
        if tent_bf16:
            # v6e/v7x: bf16 VALU -> outer product directly emits the MXU operand.
            seg = (wxh.astype(jnp.bfloat16)[:, :, None]
                   * wyw.astype(jnp.bfloat16)[:, None, :]).reshape(t_tile, hw)
        else:
            # v5e: no bf16 VALU -> multiply in f32, one cast afterwards.
            seg = (wxh[:, :, None] * wyw[:, None, :]
                   ).reshape(t_tile, hw).astype(jnp.bfloat16)
        c_feat = c_feat + jnp.dot(seg, grid_ref[l],
                                  preferred_element_type=jnp.float32)

    # ---- fc_p : Conv1d(3, hidden, 1) == pointwise linear (K=3 -> VPU, f32) --
    wp = wp_ref[...]
    net = (p_tile[:, 0:1] * wp[0:1, :] + p_tile[:, 1:2] * wp[1:2, :]
           + p_tile[:, 2:3] * wp[2:3, :]) + bp_ref[...]        # (Tt, hidden)

    def bdot(a, w):        # bf16-input / f32-accumulate MXU matmul
        return jnp.dot(a.astype(jnp.bfloat16), w, preferred_element_type=jnp.float32)

    # ---- block0 : ResnetBlockFC(hidden, D), bias-free shortcut --------------
    h = jnp.maximum(net, 0.0)
    n0 = bdot(h, w0a_ref[...]) + b0a_ref[...]
    d0 = bdot(jnp.maximum(n0, 0.0), w0b_ref[...]) + b0b_ref[...]
    net = bdot(net, w0s_ref[...]) + d0
    net = net + c_feat

    # ---- block1..block4 : ResnetBlockFC(D, D), identity shortcut ------------
    for i in range(4):
        h = jnp.maximum(net, 0.0)
        ni = bdot(h, wa_ref[i]) + ba_ref[i]
        di = bdot(jnp.maximum(ni, 0.0), wb_ref[i]) + bb_ref[i]
        net = net + di + c_feat

    # ---- fc_out : Conv1d(D, 1, 1) on relu(net), lane-dense (1, Tt) store ----
    relu_net = jnp.maximum(net, 0.0)                           # (Tt, D) f32
    out_row = jax.lax.dot_general(                             # (1, Tt)
        wout_ref[...], relu_net,
        dimension_numbers=(((1,), (1,)), ((), ())),
        preferred_element_type=jnp.float32)
    out_ref[...] = out_row + bout_ref[...]


def decoder_interpolation(p, z, c_grid, C_mat, params):
    """Pallas forward of Decoder_interpolation. z (and fc_z) are unused by forward."""
    del z
    B, T, _ = p.shape
    _, L, H, Wg, D = c_grid.shape
    max_dim = 0.55
    interval = 2.0 / (H - 1)
    inv_interval = (H - 1) / 2.0
    hidden = params['wp'].shape[1]

    # --- T tiling: per-tile p/out blocks give software pipelining and bound
    # the working set; 256 rows keeps the output tile lane-dense (mult of 128)
    # and fills the MXU M dimension. Small T stays a single full tile.
    t_tile = 256 if T > 256 else T
    t_pad = ((T + t_tile - 1) // t_tile) * t_tile
    n_t = t_pad // t_tile

    p_f32 = p.astype(jnp.float32)
    if t_pad != T:
        p_f32 = jnp.pad(p_f32, ((0, 0), (0, t_pad - T), (0, 0)))

    # Feature planes: levels kept as a leading dim (per-level accumulation in
    # the kernel -> no (Tt, L*HW) slab), fed as bf16 (halves the HBM stream).
    grid_flat = c_grid.reshape(B, L, H * Wg, D).astype(jnp.bfloat16)

    # Fold 1/max_dim, 1/(den+0.05) and 1/interval into one (B, 3, 2L) matrix:
    #   xy[t, 2l+i] = sum_j p[t, j] * A[j, 2l+i] + 1/interval
    scale = 1.0 / (max_dim * (C_mat[:, :, 3, 0] + 0.05) * interval)           # (B, L)
    projA = C_mat[:, :, :2, :].astype(jnp.float32) * scale[:, :, None, None]  # (B,L,2,3)
    projA = jnp.transpose(projA, (0, 3, 1, 2)).reshape(B, 3, 2 * L)           # (B,3,2L)

    # bf16 MXU inputs for the resnet-block weights (accumulation stays f32).
    bf16 = jnp.bfloat16
    wp = params['wp'].astype(jnp.float32)            # K=3 VPU path, keep f32
    w0a, w0b, w0s = (params[k].astype(bf16) for k in ('w0a', 'w0b', 'w0s'))
    wa, wb = params['wa'].astype(bf16), params['wb'].astype(bf16)
    wout_t = params['wout'].T.astype(jnp.float32)    # (1, D), fc_out stays f32
    bp, b0a, b0b = params['bp'], params['b0a'], params['b0b']
    ba, bb, bout = params['ba'], params['bb'], params['bout']

    # bf16 VALU exists on v6e/v7x; keep f32 tent math on older generations.
    try:
        kind = jax.devices()[0].device_kind.lower()
        tent_bf16 = not any(v in kind for v in ("v2", "v3", "v4", "v5"))
    except Exception:
        tent_bf16 = False

    kernel = functools.partial(_decoder_kernel, grid_h=H, grid_w=Wg,
                               inv_interval=inv_interval, tent_bf16=tent_bf16)

    def resident(shape):   # weights: same block every grid step (stay resident)
        nd = len(shape)
        return pl.BlockSpec(shape, lambda b, t, _nd=nd: (0,) * _nd)

    in_specs = [
        # points: one (t_tile, 3) slab per (batch, T-tile) grid step
        pl.BlockSpec((None, t_tile, 3), lambda b, t: (b, t, 0)),
        # feature planes: only batch b's (L, HW, D) plane resident; its block
        # index is constant across T tiles so it is fetched once per batch.
        # TODO(synk): pipeline_mode=pl.Buffered(1) here to drop the second
        # plane buffer on v7x's 64 MiB VMEM.
        pl.BlockSpec((None, L, H * Wg, D), lambda b, t: (b, 0, 0, 0)),
        # per-batch folded projection matrix
        pl.BlockSpec((None, 3, 2 * L), lambda b, t: (b, 0, 0)),
        resident((3, hidden)), resident((1, hidden)),
        resident((hidden, D)), resident((1, D)), resident((D, D)), resident((1, D)),
        resident((hidden, D)),
        resident((4, D, D)), resident((4, 1, D)), resident((4, D, D)), resident((4, 1, D)),
        resident((1, D)), resident((1, 1)),
    ]
    out_spec = pl.BlockSpec((None, 1, t_tile), lambda b, t: (b, 0, t))

    # Explicit VMEM budget: double-buffered inputs + in-kernel working set,
    # clamped to [32 MiB, 48 MiB] (headroom under v7x's 64 MiB physical VMEM).
    weight_bytes = sum(int(a.size) * a.dtype.itemsize for a in
                       (wp, bp, w0a, b0a, w0b, b0b, w0s, wa, ba, wb, bb, wout_t, bout))
    plane_bytes = L * H * Wg * D * 2
    tile_bytes = t_tile * 4 * 4 + 3 * 2 * L * 4
    work_bytes = t_tile * (3 * H * Wg + hidden + 8 * D) * 4
    vmem_limit = 2 * (weight_bytes + plane_bytes + tile_bytes) + work_bytes + (8 << 20)
    vmem_limit = int(min(max(vmem_limit, 32 << 20), 48 << 20))

    out = pl.pallas_call(
        kernel,
        out_shape=jax.ShapeDtypeStruct((B, 1, t_pad), jnp.float32),
        grid_spec=pltpu.PrefetchScalarGridSpec(
            num_scalar_prefetch=0,
            grid=(B, n_t),
            in_specs=in_specs,
            out_specs=out_spec,
        ),
        compiler_params=pltpu.CompilerParams(
            dimension_semantics=("parallel", "parallel"),
            vmem_limit_bytes=vmem_limit),
    )(p_f32, grid_flat, projA,
      wp, bp, w0a, b0a, w0b, b0b, w0s, wa, ba, wb, bb, wout_t, bout)
    return out[:, 0, :T]


def reference_forward(p, z, c_grid, C_mat, params):
    """Pure-JAX reference with identical semantics (for verification)."""
    del z
    B, T, _ = p.shape
    _, L, H, Wg, D = c_grid.shape
    max_dim = 0.55
    interval = 2.0 / (H - 1)

    pp = p / max_dim
    rot = C_mat[:, :, :3, :]                                  # (B, L, 3, 3)
    proj = jnp.einsum('blij,btj->blti', rot, pp)
    den = (C_mat[:, :, 3, 0] + 0.05)[:, :, None, None]
    proj = proj / den
    xy = (proj[..., :2] + 1.0) / interval                     # (B, L, T, 2)
    x = xy[..., 0]; y = xy[..., 1]
    xl = jnp.floor(x).astype(jnp.int32); xr = jnp.ceil(x).astype(jnp.int32)
    yl = jnp.floor(y).astype(jnp.int32); yh = jnp.ceil(y).astype(jnp.int32)
    dx = (xr.astype(jnp.float32) - x)[..., None]
    dy = (yh.astype(jnp.float32) - y)[..., None]
    flat = c_grid.reshape(B, L, H * Wg, D)

    def gather(xi, yi):
        idx = xi * Wg + yi                                    # (B, L, T)
        return jnp.take_along_axis(flat, idx[..., None], axis=2)

    f11 = gather(xl, yl); f12 = gather(xr, yl)
    f21 = gather(xl, yh); f22 = gather(xr, yh)
    interp = (f11 * dx * dy + f12 * (1 - dx) * dy
              + f21 * dx * (1 - dy) + f22 * (1 - dx) * (1 - dy))
    c_feat = interp.sum(axis=1)                               # (B, T, D)

    net = p @ params['wp'] + params['bp']
    h = jax.nn.relu(net)
    n0 = h @ params['w0a'] + params['b0a']
    d0 = jax.nn.relu(n0) @ params['w0b'] + params['b0b']
    net = net @ params['w0s'] + d0
    net = net + c_feat
    for i in range(4):
        h = jax.nn.relu(net)
        ni = h @ params['wa'][i] + params['ba'][i]
        di = jax.nn.relu(ni) @ params['wb'][i] + params['bb'][i]
        net = net + di
        net = net + c_feat
    out = jax.nn.relu(net) @ params['wout'] + params['bout']
    return out[..., 0]


if __name__ == "__main__":
    key = jax.random.PRNGKey(0)
    B, T, d = 2, 8, 3
    L, H, Wg = 2, 16, 16
    D = 32                # c_dim (== d_dim of the feature grids)
    hidden = 64           # hidden_size
    z_dim = 16            # fc_z exists in __init__ but z is unused in forward

    ks = jax.random.split(key, 20)
    p = jax.random.uniform(ks[0], (B, T, d), jnp.float32, -0.4, 0.4)
    z = jax.random.normal(ks[1], (B, z_dim), jnp.float32)     # unused by forward
    c_grid = jax.random.normal(ks[2], (B, L, H, Wg, D), jnp.float32)

    # Camera matrices chosen so every projected point lands inside the HxW grid
    # (the PyTorch code would otherwise index out of range).
    scale = jax.random.uniform(ks[3], (B, L, 1, 1), jnp.float32, 0.9, 1.1)
    rot = scale * jnp.eye(3, dtype=jnp.float32)[None, None] + jax.random.uniform(
        ks[4], (B, L, 3, 3), jnp.float32, -0.05, 0.05)
    last_row = jax.random.uniform(ks[5], (B, L, 1, 3), jnp.float32, 0.9, 1.0)
    C_mat = jnp.concatenate([rot, last_row], axis=2)          # (B, L, 4, 3)

    def init(k, shape, fan_in):
        return (jax.random.normal(k, shape, jnp.float32) / np.sqrt(fan_in)).astype(jnp.float32)

    params = {
        'wp':   init(ks[6], (3, hidden), 3),       # fc_p (Conv1d dim->hidden, k=1)
        'bp':   init(ks[7], (1, hidden), hidden),
        'w0a':  init(ks[8], (hidden, D), hidden),  # block0.fc_0
        'b0a':  init(ks[9], (1, D), D),
        'w0b':  init(ks[10], (D, D), D),           # block0.fc_1
        'b0b':  init(ks[11], (1, D), D),
        'w0s':  init(ks[12], (hidden, D), hidden), # block0.shortcut (no bias)
        'wa':   init(ks[13], (4, D, D), D),        # block1..4 fc_0
        'ba':   init(ks[14], (4, 1, D), D),
        'wb':   init(ks[15], (4, D, D), D),        # block1..4 fc_1
        'bb':   init(ks[16], (4, 1, D), D),
        'wout': init(ks[17], (D, 1), D),           # fc_out (Conv1d c_dim->1, k=1)
        'bout': init(ks[18], (1, 1), D),
    }

    out = decoder_interpolation(p, z, c_grid, C_mat, params)
    out = jax.block_until_ready(out)

    ref = jax.block_until_ready(reference_forward(p, z, c_grid, C_mat, params))
    # Tolerance accounts for the deliberate bf16 MXU inputs (feature plane,
    # tent weights, resnet-block weights) with f32 accumulation.
    np.testing.assert_allclose(np.asarray(out), np.asarray(ref), rtol=5e-2, atol=1e-1)

    print("KERNEL_OK")
</pallas_src>

<mosaic_0001>
module attributes {stable_mosaic.version = 11 : i64} {
  func.func @_decoder_kernel(%arg0: i32, %arg1: i32, %arg2: memref<1x8x3xf32, #tpu.memory_space<vmem>>, %arg3: memref<1x2x256x32xbf16, #tpu.memory_space<vmem>>, %arg4: memref<1x3x4xf32, #tpu.memory_space<vmem>>, %arg5: memref<3x64xf32, #tpu.memory_space<vmem>>, %arg6: memref<1x64xf32, #tpu.memory_space<vmem>>, %arg7: memref<64x32xbf16, #tpu.memory_space<vmem>>, %arg8: memref<1x32xf32, #tpu.memory_space<vmem>>, %arg9: memref<32x32xbf16, #tpu.memory_space<vmem>>, %arg10: memref<1x32xf32, #tpu.memory_space<vmem>>, %arg11: memref<64x32xbf16, #tpu.memory_space<vmem>>, %arg12: memref<4x32x32xbf16, #tpu.memory_space<vmem>>, %arg13: memref<4x1x32xf32, #tpu.memory_space<vmem>>, %arg14: memref<4x32x32xbf16, #tpu.memory_space<vmem>>, %arg15: memref<4x1x32xf32, #tpu.memory_space<vmem>>, %arg16: memref<1x32xf32, #tpu.memory_space<vmem>>, %arg17: memref<1x1xf32, #tpu.memory_space<vmem>>, %arg18: memref<1x1x8xf32, #tpu.memory_space<vmem>>) attributes {dimension_semantics = [#tpu.dimension_semantics<parallel>, #tpu.dimension_semantics<parallel>], iteration_bounds = array<i64: 2, 1>, scalar_prefetch = 0 : i64, scratch_operands = 0 : i64, tpu.core_type = #tpu.core_type<tc>, window_params = [{transform_indices = @transform_0, window_bounds = array<i64: 1, 8, 3>}, {transform_indices = @transform_1, window_bounds = array<i64: 1, 2, 256, 32>}, {transform_indices = @transform_2, window_bounds = array<i64: 1, 3, 4>}, {pipeline_mode = #tpu.pipeline_mode<synchronous>, transform_indices = @transform_3, window_bounds = array<i64: 3, 64>}, {pipeline_mode = #tpu.pipeline_mode<synchronous>, transform_indices = @transform_4, window_bounds = array<i64: 1, 64>}, {pipeline_mode = #tpu.pipeline_mode<synchronous>, transform_indices = @transform_5, window_bounds = array<i64: 64, 32>}, {pipeline_mode = #tpu.pipeline_mode<synchronous>, transform_indices = @transform_6, window_bounds = array<i64: 1, 32>}, {pipeline_mode = #tpu.pipeline_mode<synchronous>, transform_indices = @transform_7, window_bounds = array<i64: 32, 32>}, {pipeline_mode = #tpu.pipeline_mode<synchronous>, transform_indices = @transform_8, window_bounds = array<i64: 1, 32>}, {pipeline_mode = #tpu.pipeline_mode<synchronous>, transform_indices = @transform_9, window_bounds = array<i64: 64, 32>}, {pipeline_mode = #tpu.pipeline_mode<synchronous>, transform_indices = @transform_10, window_bounds = array<i64: 4, 32, 32>}, {pipeline_mode = #tpu.pipeline_mode<synchronous>, transform_indices = @transform_11, window_bounds = array<i64: 4, 1, 32>}, {pipeline_mode = #tpu.pipeline_mode<synchronous>, transform_indices = @transform_12, window_bounds = array<i64: 4, 32, 32>}, {pipeline_mode = #tpu.pipeline_mode<synchronous>, transform_indices = @transform_13, window_bounds = array<i64: 4, 1, 32>}, {pipeline_mode = #tpu.pipeline_mode<synchronous>, transform_indices = @transform_14, window_bounds = array<i64: 1, 32>}, {pipeline_mode = #tpu.pipeline_mode<synchronous>, transform_indices = @transform_15, window_bounds = array<i64: 1, 1>}, {transform_indices = @transform_16, window_bounds = array<i64: 1, 1, 8>}]} {
    %c0 = arith.constant 0 : index
    %c0_0 = arith.constant 0 : index
    %c0_1 = arith.constant 0 : index
    %0 = vector.load %arg2[%c0, %c0_0, %c0_1] : memref<1x8x3xf32, #tpu.memory_space<vmem>>, vector<1x8x3xf32>
    %1 = vector.shape_cast %0 : vector<1x8x3xf32> to vector<8x3xf32>
    %c0_2 = arith.constant 0 : index
    %c0_3 = arith.constant 0 : index
    %c0_4 = arith.constant 0 : index
    %2 = vector.load %arg4[%c0_2, %c0_3, %c0_4] : memref<1x3x4xf32, #tpu.memory_space<vmem>>, vector<1x3x4xf32>
    %3 = vector.shape_cast %2 : vector<1x3x4xf32> to vector<3x4xf32>
    %4 = vector.extract_strided_slice %1 {offsets = [0, 0], sizes = [8, 1], strides = [1, 1]} : vector<8x3xf32> to vector<8x1xf32>
    %5 = vector.extract_strided_slice %3 {offsets = [0, 0], sizes = [1, 4], strides = [1, 1]} : vector<3x4xf32> to vector<1x4xf32>
    %6 = vector.broadcast %4 : vector<8x1xf32> to vector<8x4xf32>
    %7 = vector.broadcast %5 : vector<1x4xf32> to vector<8x4xf32>
    %8 = arith.mulf %6, %7 : vector<8x4xf32>
    %9 = vector.extract_strided_slice %1 {offsets = [0, 1], sizes = [8, 1], strides = [1, 1]} : vector<8x3xf32> to vector<8x1xf32>
    %10 = vector.extract_strided_slice %3 {offsets = [1, 0], sizes = [1, 4], strides = [1, 1]} : vector<3x4xf32> to vector<1x4xf32>
    %11 = vector.broadcast %9 : vector<8x1xf32> to vector<8x4xf32>
    %12 = vector.broadcast %10 : vector<1x4xf32> to vector<8x4xf32>
    %13 = arith.mulf %11, %12 : vector<8x4xf32>
    %14 = arith.addf %8, %13 : vector<8x4xf32>
    %15 = vector.extract_strided_slice %1 {offsets = [0, 2], sizes = [8, 1], strides = [1, 1]} : vector<8x3xf32> to vector<8x1xf32>
    %16 = vector.extract_strided_slice %3 {offsets = [2, 0], sizes = [1, 4], strides = [1, 1]} : vector<3x4xf32> to vector<1x4xf32>
    %17 = vector.broadcast %15 : vector<8x1xf32> to vector<8x4xf32>
    %18 = vector.broadcast %16 : vector<1x4xf32> to vector<8x4xf32>
    %19 = arith.mulf %17, %18 : vector<8x4xf32>
    %20 = arith.addf %14, %19 : vector<8x4xf32>
    %cst = arith.constant 7.500000e+00 : f32
    %21 = vector.broadcast %cst : f32 to vector<8x4xf32>
    %22 = arith.addf %20, %21 : vector<8x4xf32>
    %23 = tpu.iota {dimensions = array<i32: 1>} : vector<1x16xi32>
    %24 = arith.sitofp %23 : vector<1x16xi32> to vector<1x16xf32>
    %25 = tpu.iota {dimensions = array<i32: 1>} : vector<1x16xi32>
    %26 = arith.sitofp %25 : vector<1x16xi32> to vector<1x16xf32>
    %cst_5 = arith.constant 0.000000e+00 : f32
    %27 = vector.broadcast %cst_5 : f32 to vector<8x32xf32>
    %28 = vector.extract_strided_slice %22 {offsets = [0, 0], sizes = [8, 1], strides = [1, 1]} : vector<8x4xf32> to vector<8x1xf32>
    %29 = vector.extract_strided_slice %22 {offsets = [0, 1], sizes = [8, 1], strides = [1, 1]} : vector<8x4xf32> to vector<8x1xf32>
    %30 = vector.broadcast %24 : vector<1x16xf32> to vector<8x16xf32>
    %31 = vector.broadcast %28 : vector<8x1xf32> to vector<8x16xf32>
    %32 = arith.subf %30, %31 : vector<8x16xf32>
    %33 = math.absf %32 : vector<8x16xf32>
    %cst_6 = arith.constant 1.000000e+00 : f32
    %34 = vector.broadcast %cst_6 : f32 to vector<8x16xf32>
    %35 = arith.subf %34, %33 : vector<8x16xf32>
    %cst_7 = arith.constant 0.000000e+00 : f32
    %36 = vector.broadcast %cst_7 : f32 to vector<8x16xf32>
    %37 = arith.maximumf %35, %36 : vector<8x16xf32>
    %38 = vector.broadcast %26 : vector<1x16xf32> to vector<8x16xf32>
    %39 = vector.broadcast %29 : vector<8x1xf32> to vector<8x16xf32>
    %40 = arith.subf %38, %39 : vector<8x16xf32>
    %41 = math.absf %40 : vector<8x16xf32>
    %cst_8 = arith.constant 1.000000e+00 : f32
    %42 = vector.broadcast %cst_8 : f32 to vector<8x16xf32>
    %43 = arith.subf %42, %41 : vector<8x16xf32>
    %cst_9 = arith.constant 0.000000e+00 : f32
    %44 = vector.broadcast %cst_9 : f32 to vector<8x16xf32>
    %45 = arith.maximumf %43, %44 : vector<8x16xf32>
    %46 = arith.truncf %37 : vector<8x16xf32> to vector<8x16xbf16>
    %47 = vector.shape_cast %46 : vector<8x16xbf16> to vector<8x16x1xbf16>
    %48 = arith.truncf %45 : vector<8x16xf32> to vector<8x16xbf16>
    %49 = vector.shape_cast %48 : vector<8x16xbf16> to vector<8x1x16xbf16>
    %50 = vector.broadcast %47 : vector<8x16x1xbf16> to vector<8x16x16xbf16>
    %51 = vector.broadcast %49 : vector<8x1x16xbf16> to vector<8x16x16xbf16>
    %52 = arith.mulf %50, %51 : vector<8x16x16xbf16>
    %53 = vector.shape_cast %52 : vector<8x16x16xbf16> to vector<8x256xbf16>
    %c0_10 = arith.constant 0 : index
    %c0_11 = arith.constant 0 : index
    %c0_12 = arith.constant 0 : index
    %c0_13 = arith.constant 0 : index
    %54 = vector.load %arg3[%c0_10, %c0_11, %c0_12, %c0_13] : memref<1x2x256x32xbf16, #tpu.memory_space<vmem>>, vector<1x1x256x32xbf16>
    %55 = vector.shape_cast %54 : vector<1x1x256x32xbf16> to vector<256x32xbf16>
    %cst_14 = arith.constant dense<0.000000e+00> : vector<8x32xf32>
    %56 = tpu.matmul %53, %55, %cst_14 {dimension_numbers = #tpu.dot_dimension_numbers<[1], [0], [0], [1], [0, 0, 1, 1], [], []>} : vector<8x256xbf16>, vector<256x32xbf16>, vector<8x32xf32> -> vector<8x32xf32>
    %57 = arith.addf %27, %56 : vector<8x32xf32>
    %58 = vector.extract_strided_slice %22 {offsets = [0, 2], sizes = [8, 1], strides = [1, 1]} : vector<8x4xf32> to vector<8x1xf32>
    %59 = vector.extract_strided_slice %22 {offsets = [0, 3], sizes = [8, 1], strides = [1, 1]} : vector<8x4xf32> to vector<8x1xf32>
    %60 = vector.broadcast %24 : vector<1x16xf32> to vector<8x16xf32>
    %61 = vector.broadcast %58 : vector<8x1xf32> to vector<8x16xf32>
    %62 = arith.subf %60, %61 : vector<8x16xf32>
    %63 = math.absf %62 : vector<8x16xf32>
    %cst_15 = arith.constant 1.000000e+00 : f32
    %64 = vector.broadcast %cst_15 : f32 to vector<8x16xf32>
    %65 = arith.subf %64, %63 : vector<8x16xf32>
    %cst_16 = arith.constant 0.000000e+00 : f32
    %66 = vector.broadcast %cst_16 : f32 to vector<8x16xf32>
    %67 = arith.maximumf %65, %66 : vector<8x16xf32>
    %68 = vector.broadcast %26 : vector<1x16xf32> to vector<8x16xf32>
    %69 = vector.broadcast %59 : vector<8x1xf32> to vector<8x16xf32>
    %70 = arith.subf %68, %69 : vector<8x16xf32>
    %71 = math.absf %70 : vector<8x16xf32>
    %cst_17 = arith.constant 1.000000e+00 : f32
    %72 = vector.broadcast %cst_17 : f32 to vector<8x16xf32>
    %73 = arith.subf %72, %71 : vector<8x16xf32>
    %cst_18 = arith.constant 0.000000e+00 : f32
    %74 = vector.broadcast %cst_18 : f32 to vector<8x16xf32>
    %75 = arith.maximumf %73, %74 : vector<8x16xf32>
    %76 = arith.truncf %67 : vector<8x16xf32> to vector<8x16xbf16>
    %77 = vector.shape_cast %76 : vector<8x16xbf16> to vector<8x16x1xbf16>
    %78 = arith.truncf %75 : vector<8x16xf32> to vector<8x16xbf16>
    %79 = vector.shape_cast %78 : vector<8x16xbf16> to vector<8x1x16xbf16>
    %80 = vector.broadcast %77 : vector<8x16x1xbf16> to vector<8x16x16xbf16>
    %81 = vector.broadcast %79 : vector<8x1x16xbf16> to vector<8x16x16xbf16>
    %82 = arith.mulf %80, %81 : vector<8x16x16xbf16>
    %83 = vector.shape_cast %82 : vector<8x16x16xbf16> to vector<8x256xbf16>
    %c0_19 = arith.constant 0 : index
    %c1 = arith.constant 1 : index
    %c0_20 = arith.constant 0 : index
    %c0_21 = arith.constant 0 : index
    %84 = vector.load %arg3[%c0_19, %c1, %c0_20, %c0_21] : memref<1x2x256x32xbf16, #tpu.memory_space<vmem>>, vector<1x1x256x32xbf16>
    %85 = vector.shape_cast %84 : vector<1x1x256x32xbf16> to vector<256x32xbf16>
    %cst_22 = arith.constant dense<0.000000e+00> : vector<8x32xf32>
    %86 = tpu.matmul %83, %85, %cst_22 {dimension_numbers = #tpu.dot_dimension_numbers<[1], [0], [0], [1], [0, 0, 1, 1], [], []>} : vector<8x256xbf16>, vector<256x32xbf16>, vector<8x32xf32> -> vector<8x32xf32>
    %87 = arith.addf %57, %86 : vector<8x32xf32>
    %c0_23 = arith.constant 0 : index
    %c0_24 = arith.constant 0 : index
    %88 = vector.load %arg5[%c0_23, %c0_24] : memref<3x64xf32, #tpu.memory_space<vmem>>, vector<3x64xf32>
    %89 = vector.extract_strided_slice %1 {offsets = [0, 0], sizes = [8, 1], strides = [1, 1]} : vector<8x3xf32> to vector<8x1xf32>
    %90 = vector.extract_strided_slice %88 {offsets = [0, 0], sizes = [1, 64], strides = [1, 1]} : vector<3x64xf32> to vector<1x64xf32>
    %91 = vector.broadcast %89 : vector<8x1xf32> to vector<8x64xf32>
    %92 = vector.broadcast %90 : vector<1x64xf32> to vector<8x64xf32>
    %93 = arith.mulf %91, %92 : vector<8x64xf32>
    %94 = vector.extract_strided_slice %1 {offsets = [0, 1], sizes = [8, 1], strides = [1, 1]} : vector<8x3xf32> to vector<8x1xf32>
    %95 = vector.extract_strided_slice %88 {offsets = [1, 0], sizes = [1, 64], strides = [1, 1]} : vector<3x64xf32> to vector<1x64xf32>
    %96 = vector.broadcast %94 : vector<8x1xf32> to vector<8x64xf32>
    %97 = vector.broadcast %95 : vector<1x64xf32> to vector<8x64xf32>
    %98 = arith.mulf %96, %97 : vector<8x64xf32>
    %99 = arith.addf %93, %98 : vector<8x64xf32>
    %100 = vector.extract_strided_slice %1 {offsets = [0, 2], sizes = [8, 1], strides = [1, 1]} : vector<8x3xf32> to vector<8x1xf32>
    %101 = vector.extract_strided_slice %88 {offsets = [2, 0], sizes = [1, 64], strides = [1, 1]} : vector<3x64xf32> to vector<1x64xf32>
    %102 = vector.broadcast %100 : vector<8x1xf32> to vector<8x64xf32>
    %103 = vector.broadcast %101 : vector<1x64xf32> to vector<8x64xf32>
    %104 = arith.mulf %102, %103 : vector<8x64xf32>
    %105 = arith.addf %99, %104 : vector<8x64xf32>
    %c0_25 = arith.constant 0 : index
    %c0_26 = arith.constant 0 : index
    %106 = vector.load %arg6[%c0_25, %c0_26] : memref<1x64xf32, #tpu.memory_space<vmem>>, vector<1x64xf32>
    %107 = vector.broadcast %106 : vector<1x64xf32> to vector<8x64xf32>
    %108 = arith.addf %105, %107 : vector<8x64xf32>
    %cst_27 = arith.constant 0.000000e+00 : f32
    %109 = vector.broadcast %cst_27 : f32 to vector<8x64xf32>
    %110 = arith.maximumf %108, %109 : vector<8x64xf32>
    %c0_28 = arith.constant 0 : index
    %c0_29 = arith.constant 0 : index
    %111 = vector.load %arg7[%c0_28, %c0_29] : memref<64x32xbf16, #tpu.memory_space<vmem>>, vector<64x32xbf16>
    %112 = arith.truncf %110 : vector<8x64xf32> to vector<8x64xbf16>
    %cst_30 = arith.constant dense<0.000000e+00> : vector<8x32xf32>
    %113 = tpu.matmul %112, %111, %cst_30 {dimension_numbers = #tpu.dot_dimension_numbers<[1], [0], [0], [1], [0, 0, 1, 1], [], []>} : vector<8x64xbf16>, vector<64x32xbf16>, vector<8x32xf32> -> vector<8x32xf32>
    %c0_31 = arith.constant 0 : index
    %c0_32 = arith.constant 0 : index
    %114 = vector.load %arg8[%c0_31, %c0_32] : memref<1x32xf32, #tpu.memory_space<vmem>>, vector<1x32xf32>
    %115 = vector.broadcast %114 : vector<1x32xf32> to vector<8x32xf32>
    %116 = arith.addf %113, %115 : vector<8x32xf32>
    %cst_33 = arith.constant 0.000000e+00 : f32
    %117 = vector.broadcast %cst_33 : f32 to vector<8x32xf32>
    %118 = arith.maximumf %116, %117 : vector<8x32xf32>
    %c0_34 = arith.constant 0 : index
    %c0_35 = arith.constant 0 : index
    %119 = vector.load %arg9[%c0_34, %c0_35] : memref<32x32xbf16, #tpu.memory_space<vmem>>, vector<32x32xbf16>
    %120 = arith.truncf %118 : vector<8x32xf32> to vector<8x32xbf16>
    %cst_36 = arith.constant dense<0.000000e+00> : vector<8x32xf32>
    %121 = tpu.matmul %120, %119, %cst_36 {dimension_numbers = #tpu.dot_dimension_numbers<[1], [0], [0], [1], [0, 0, 1, 1], [], []>} : vector<8x32xbf16>, vector<32x32xbf16>, vector<8x32xf32> -> vector<8x32xf32>
    %c0_37 = arith.constant 0 : index
    %c0_38 = arith.constant 0 : index
    %122 = vector.load %arg10[%c0_37, %c0_38] : memref<1x32xf32, #tpu.memory_space<vmem>>, vector<1x32xf32>
    %123 = vector.broadcast %122 : vector<1x32xf32> to vector<8x32xf32>
    %124 = arith.addf %121, %123 : vector<8x32xf32>
    %c0_39 = arith.constant 0 : index
    %c0_40 = arith.constant 0 : index
    %125 = vector.load %arg11[%c0_39, %c0_40] : memref<64x32xbf16, #tpu.memory_space<vmem>>, vector<64x32xbf16>
    %126 = arith.truncf %108 : vector<8x64xf32> to vector<8x64xbf16>
    %cst_41 = arith.constant dense<0.000000e+00> : vector<8x32xf32>
    %127 = tpu.matmul %126, %125, %cst_41 {dimension_numbers = #tpu.dot_dimension_numbers<[1], [0], [0], [1], [0, 0, 1, 1], [], []>} : vector<8x64xbf16>, vector<64x32xbf16>, vector<8x32xf32> -> vector<8x32xf32>
    %128 = arith.addf %127, %124 : vector<8x32xf32>
    %129 = arith.addf %128, %87 : vector<8x32xf32>
    %cst_42 = arith.constant 0.000000e+00 : f32
    %130 = vector.broadcast %cst_42 : f32 to vector<8x32xf32>
    %131 = arith.maximumf %129, %130 : vector<8x32xf32>
    %c0_43 = arith.constant 0 : index
    %c0_44 = arith.constant 0 : index
    %c0_45 = arith.constant 0 : index
    %132 = vector.load %arg12[%c0_43, %c0_44, %c0_45] : memref<4x32x32xbf16, #tpu.memory_space<vmem>>, vector<1x32x32xbf16>
    %133 = vector.shape_cast %132 : vector<1x32x32xbf16> to vector<32x32xbf16>
    %134 = arith.truncf %131 : vector<8x32xf32> to vector<8x32xbf16>
    %cst_46 = arith.constant dense<0.000000e+00> : vector<8x32xf32>
    %135 = tpu.matmul %134, %133, %cst_46 {dimension_numbers = #tpu.dot_dimension_numbers<[1], [0], [0], [1], [0, 0, 1, 1], [], []>} : vector<8x32xbf16>, vector<32x32xbf16>, vector<8x32xf32> -> vector<8x32xf32>
    %c0_47 = arith.constant 0 : index
    %c0_48 = arith.constant 0 : index
    %c0_49 = arith.constant 0 : index
    %136 = vector.load %arg13[%c0_47, %c0_48, %c0_49] : memref<4x1x32xf32, #tpu.memory_space<vmem>>, vector<1x1x32xf32>
    %137 = vector.shape_cast %136 : vector<1x1x32xf32> to vector<1x32xf32>
    %138 = vector.broadcast %137 : vector<1x32xf32> to vector<8x32xf32>
    %139 = arith.addf %135, %138 : vector<8x32xf32>
    %cst_50 = arith.constant 0.000000e+00 : f32
    %140 = vector.broadcast %cst_50 : f32 to vector<8x32xf32>
    %141 = arith.maximumf %139, %140 : vector<8x32xf32>
    %c0_51 = arith.constant 0 : index
    %c0_52 = arith.constant 0 : index
    %c0_53 = arith.constant 0 : index
    %142 = vector.load %arg14[%c0_51, %c0_52, %c0_53] : memref<4x32x32xbf16, #tpu.memory_space<vmem>>, vector<1x32x32xbf16>
    %143 = vector.shape_cast %142 : vector<1x32x32xbf16> to vector<32x32xbf16>
    %144 = arith.truncf %141 : vector<8x32xf32> to vector<8x32xbf16>
    %cst_54 = arith.constant dense<0.000000e+00> : vector<8x32xf32>
    %145 = tpu.matmul %144, %143, %cst_54 {dimension_numbers = #tpu.dot_dimension_numbers<[1], [0], [0], [1], [0, 0, 1, 1], [], []>} : vector<8x32xbf16>, vector<32x32xbf16>, vector<8x32xf32> -> vector<8x32xf32>
    %c0_55 = arith.constant 0 : index
    %c0_56 = arith.constant 0 : index
    %c0_57 = arith.constant 0 : index
    %146 = vector.load %arg15[%c0_55, %c0_56, %c0_57] : memref<4x1x32xf32, #tpu.memory_space<vmem>>, vector<1x1x32xf32>
    %147 = vector.shape_cast %146 : vector<1x1x32xf32> to vector<1x32xf32>
    %148 = vector.broadcast %147 : vector<1x32xf32> to vector<8x32xf32>
    %149 = arith.addf %145, %148 : vector<8x32xf32>
    %150 = arith.addf %129, %149 : vector<8x32xf32>
    %151 = arith.addf %150, %87 : vector<8x32xf32>
    %cst_58 = arith.constant 0.000000e+00 : f32
    %152 = vector.broadcast %cst_58 : f32 to vector<8x32xf32>
    %153 = arith.maximumf %151, %152 : vector<8x32xf32>
    %c1_59 = arith.constant 1 : index
    %c0_60 = arith.constant 0 : index
    %c0_61 = arith.constant 0 : index
    %154 = vector.load %arg12[%c1_59, %c0_60, %c0_61] : memref<4x32x32xbf16, #tpu.memory_space<vmem>>, vector<1x32x32xbf16>
    %155 = vector.shape_cast %154 : vector<1x32x32xbf16> to vector<32x32xbf16>
    %156 = arith.truncf %153 : vector<8x32xf32> to vector<8x32xbf16>
    %cst_62 = arith.constant dense<0.000000e+00> : vector<8x32xf32>
    %157 = tpu.matmul %156, %155, %cst_62 {dimension_numbers = #tpu.dot_dimension_numbers<[1], [0], [0], [1], [0, 0, 1, 1], [], []>} : vector<8x32xbf16>, vector<32x32xbf16>, vector<8x32xf32> -> vector<8x32xf32>
    %c1_63 = arith.constant 1 : index
    %c0_64 = arith.constant 0 : index
    %c0_65 = arith.constant 0 : index
    %158 = vector.load %arg13[%c1_63, %c0_64, %c0_65] : memref<4x1x32xf32, #tpu.memory_space<vmem>>, vector<1x1x32xf32>
    %159 = vector.shape_cast %158 : vector<1x1x32xf32> to vector<1x32xf32>
    %160 = vector.broadcast %159 : vector<1x32xf32> to vector<8x32xf32>
    %161 = arith.addf %157, %160 : vector<8x32xf32>
    %cst_66 = arith.constant 0.000000e+00 : f32
    %162 = vector.broadcast %cst_66 : f32 to vector<8x32xf32>
    %163 = arith.maximumf %161, %162 : vector<8x32xf32>
    %c1_67 = arith.constant 1 : index
    %c0_68 = arith.constant 0 : index
    %c0_69 = arith.constant 0 : index
    %164 = vector.load %arg14[%c1_67, %c0_68, %c0_69] : memref<4x32x32xbf16, #tpu.memory_space<vmem>>, vector<1x32x32xbf16>
    %165 = vector.shape_cast %164 : vector<1x32x32xbf16> to vector<32x32xbf16>
    %166 = arith.truncf %163 : vector<8x32xf32> to vector<8x32xbf16>
    %cst_70 = arith.constant dense<0.000000e+00> : vector<8x32xf32>
    %167 = tpu.matmul %166, %165, %cst_70 {dimension_numbers = #tpu.dot_dimension_numbers<[1], [0], [0], [1], [0, 0, 1, 1], [], []>} : vector<8x32xbf16>, vector<32x32xbf16>, vector<8x32xf32> -> vector<8x32xf32>
    %c1_71 = arith.constant 1 : index
    %c0_72 = arith.constant 0 : index
    %c0_73 = arith.constant 0 : index
    %168 = vector.load %arg15[%c1_71, %c0_72, %c0_73] : memref<4x1x32xf32, #tpu.memory_space<vmem>>, vector<1x1x32xf32>
    %169 = vector.shape_cast %168 : vector<1x1x32xf32> to vector<1x32xf32>
    %170 = vector.broadcast %169 : vector<1x32xf32> to vector<8x32xf32>
    %171 = arith.addf %167, %170 : vector<8x32xf32>
    %172 = arith.addf %151, %171 : vector<8x32xf32>
    %173 = arith.addf %172, %87 : vector<8x32xf32>
    %cst_74 = arith.constant 0.000000e+00 : f32
    %174 = vector.broadcast %cst_74 : f32 to vector<8x32xf32>
    %175 = arith.maximumf %173, %174 : vector<8x32xf32>
    %c2 = arith.constant 2 : index
    %c0_75 = arith.constant 0 : index
    %c0_76 = arith.constant 0 : index
    %176 = vector.load %arg12[%c2, %c0_75, %c0_76] : memref<4x32x32xbf16, #tpu.memory_space<vmem>>, vector<1x32x32xbf16>
    %177 = vector.shape_cast %176 : vector<1x32x32xbf16> to vector<32x32xbf16>
    %178 = arith.truncf %175 : vector<8x32xf32> to vector<8x32xbf16>
    %cst_77 = arith.constant dense<0.000000e+00> : vector<8x32xf32>
    %179 = tpu.matmul %178, %177, %cst_77 {dimension_numbers = #tpu.dot_dimension_numbers<[1], [0], [0], [1], [0, 0, 1, 1], [], []>} : vector<8x32xbf16>, vector<32x32xbf16>, vector<8x32xf32> -> vector<8x32xf32>
    %c2_78 = arith.constant 2 : index
    %c0_79 = arith.constant 0 : index
    %c0_80 = arith.constant 0 : index
    %180 = vector.load %arg13[%c2_78, %c0_79, %c0_80] : memref<4x1x32xf32, #tpu.memory_space<vmem>>, vector<1x1x32xf32>
    %181 = vector.shape_cast %180 : vector<1x1x32xf32> to vector<1x32xf32>
    %182 = vector.broadcast %181 : vector<1x32xf32> to vector<8x32xf32>
    %183 = arith.addf %179, %182 : vector<8x32xf32>
    %cst_81 = arith.constant 0.000000e+00 : f32
    %184 = vector.broadcast %cst_81 : f32 to vector<8x32xf32>
    %185 = arith.maximumf %183, %184 : vector<8x32xf32>
    %c2_82 = arith.constant 2 : index
    %c0_83 = arith.constant 0 : index
    %c0_84 = arith.constant 0 : index
    %186 = vector.load %arg14[%c2_82, %c0_83, %c0_84] : memref<4x32x32xbf16, #tpu.memory_space<vmem>>, vector<1x32x32xbf16>
    %187 = vector.shape_cast %186 : vector<1x32x32xbf16> to vector<32x32xbf16>
    %188 = arith.truncf %185 : vector<8x32xf32> to vector<8x32xbf16>
    %cst_85 = arith.constant dense<0.000000e+00> : vector<8x32xf32>
    %189 = tpu.matmul %188, %187, %cst_85 {dimension_numbers = #tpu.dot_dimension_numbers<[1], [0], [0], [1], [0, 0, 1, 1], [], []>} : vector<8x32xbf16>, vector<32x32xbf16>, vector<8x32xf32> -> vector<8x32xf32>
    %c2_86 = arith.constant 2 : index
    %c0_87 = arith.constant 0 : index
    %c0_88 = arith.constant 0 : index
    %190 = vector.load %arg15[%c2_86, %c0_87, %c0_88] : memref<4x1x32xf32, #tpu.memory_space<vmem>>, vector<1x1x32xf32>
    %191 = vector.shape_cast %190 : vector<1x1x32xf32> to vector<1x32xf32>
    %192 = vector.broadcast %191 : vector<1x32xf32> to vector<8x32xf32>
    %193 = arith.addf %189, %192 : vector<8x32xf32>
    %194 = arith.addf %173, %193 : vector<8x32xf32>
    %195 = arith.addf %194, %87 : vector<8x32xf32>
    %cst_89 = arith.constant 0.000000e+00 : f32
    %196 = vector.broadcast %cst_89 : f32 to vector<8x32xf32>
    %197 = arith.maximumf %195, %196 : vector<8x32xf32>
    %c3 = arith.constant 3 : index
    %c0_90 = arith.constant 0 : index
    %c0_91 = arith.constant 0 : index
    %198 = vector.load %arg12[%c3, %c0_90, %c0_91] : memref<4x32x32xbf16, #tpu.memory_space<vmem>>, vector<1x32x32xbf16>
    %199 = vector.shape_cast %198 : vector<1x32x32xbf16> to vector<32x32xbf16>
    %200 = arith.truncf %197 : vector<8x32xf32> to vector<8x32xbf16>
    %cst_92 = arith.constant dense<0.000000e+00> : vector<8x32xf32>
    %201 = tpu.matmul %200, %199, %cst_92 {dimension_numbers = #tpu.dot_dimension_numbers<[1], [0], [0], [1], [0, 0, 1, 1], [], []>} : vector<8x32xbf16>, vector<32x32xbf16>, vector<8x32xf32> -> vector<8x32xf32>
    %c3_93 = arith.constant 3 : index
    %c0_94 = arith.constant 0 : index
    %c0_95 = arith.constant 0 : index
    %202 = vector.load %arg13[%c3_93, %c0_94, %c0_95] : memref<4x1x32xf32, #tpu.memory_space<vmem>>, vector<1x1x32xf32>
    %203 = vector.shape_cast %202 : vector<1x1x32xf32> to vector<1x32xf32>
    %204 = vector.broadcast %203 : vector<1x32xf32> to vector<8x32xf32>
    %205 = arith.addf %201, %204 : vector<8x32xf32>
    %cst_96 = arith.constant 0.000000e+00 : f32
    %206 = vector.broadcast %cst_96 : f32 to vector<8x32xf32>
    %207 = arith.maximumf %205, %206 : vector<8x32xf32>
    %c3_97 = arith.constant 3 : index
    %c0_98 = arith.constant 0 : index
    %c0_99 = arith.constant 0 : index
    %208 = vector.load %arg14[%c3_97, %c0_98, %c0_99] : memref<4x32x32xbf16, #tpu.memory_space<vmem>>, vector<1x32x32xbf16>
    %209 = vector.shape_cast %208 : vector<1x32x32xbf16> to vector<32x32xbf16>
    %210 = arith.truncf %207 : vector<8x32xf32> to vector<8x32xbf16>
    %cst_100 = arith.constant dense<0.000000e+00> : vector<8x32xf32>
    %211 = tpu.matmul %210, %209, %cst_100 {dimension_numbers = #tpu.dot_dimension_numbers<[1], [0], [0], [1], [0, 0, 1, 1], [], []>} : vector<8x32xbf16>, vector<32x32xbf16>, vector<8x32xf32> -> vector<8x32xf32>
    %c3_101 = arith.constant 3 : index
    %c0_102 = arith.constant 0 : index
    %c0_103 = arith.constant 0 : index
    %212 = vector.load %arg15[%c3_101, %c0_102, %c0_103] : memref<4x1x32xf32, #tpu.memory_space<vmem>>, vector<1x1x32xf32>
    %213 = vector.shape_cast %212 : vector<1x1x32xf32> to vector<1x32xf32>
    %214 = vector.broadcast %213 : vector<1x32xf32> to vector<8x32xf32>
    %215 = arith.addf %211, %214 : vector<8x32xf32>
    %216 = arith.addf %195, %215 : vector<8x32xf32>
    %217 = arith.addf %216, %87 : vector<8x32xf32>
    %cst_104 = arith.constant 0.000000e+00 : f32
    %218 = vector.broadcast %cst_104 : f32 to vector<8x32xf32>
    %219 = arith.maximumf %217, %218 : vector<8x32xf32>
    %c0_105 = arith.constant 0 : index
    %c0_106 = arith.constant 0 : index
    %220 = vector.load %arg16[%c0_105, %c0_106] : memref<1x32xf32, #tpu.memory_space<vmem>>, vector<1x32xf32>
    %cst_107 = arith.constant dense<0.000000e+00> : vector<1x8xf32>
    %221 = tpu.matmul %220, %219, %cst_107 {dimension_numbers = #tpu.dot_dimension_numbers<[1], [1], [0], [0], [0, 0, 1, 0], [], []>} : vector<1x32xf32>, vector<8x32xf32>, vector<1x8xf32> -> vector<1x8xf32>
    %c0_108 = arith.constant 0 : index
    %c0_109 = arith.constant 0 : index
    %222 = vector.load %arg17[%c0_108, %c0_109] : memref<1x1xf32, #tpu.memory_space<vmem>>, vector<1x1xf32>
    %223 = vector.broadcast %222 : vector<1x1xf32> to vector<1x8xf32>
    %224 = arith.addf %221, %223 : vector<1x8xf32>
    %c0_110 = arith.constant 0 : index
    %c0_111 = arith.constant 0 : index
    %c0_112 = arith.constant 0 : index
    %225 = vector.load %arg18[%c0_110, %c0_111, %c0_112] : memref<1x1x8xf32, #tpu.memory_space<vmem>>, vector<1x1x8xf32>
    %226 = vector.shape_cast %225 : vector<1x1x8xf32> to vector<1x8xf32>
    %227 = vector.shape_cast %224 : vector<1x8xf32> to vector<1x1x8xf32>
    tpu.vector_store %arg18[%c0_110, %c0_111, %c0_112], %227 {strides = array<i32>} : memref<1x1x8xf32, #tpu.memory_space<vmem>>, vector<1x1x8xf32>,
    return
  }
  func.func @transform_0(%arg0: i32, %arg1: i32) -> (i32, i32, i32) {
    %c0_i32 = arith.constant 0 : i32
    %c0_i32_0 = arith.constant 0 : i32
    return %arg0, %arg1, %c0_i32 : i32, i32, i32
  }
  func.func @transform_1(%arg0: i32, %arg1: i32) -> (i32, i32, i32, i32) {
    %c0_i32 = arith.constant 0 : i32
    %c0_i32_0 = arith.constant 0 : i32
    %c0_i32_1 = arith.constant 0 : i32
    %c0_i32_2 = arith.constant 0 : i32
    return %arg0, %c0_i32, %c0_i32_0, %c0_i32_1 : i32, i32, i32, i32
  }
  func.func @transform_2(%arg0: i32, %arg1: i32) -> (i32, i32, i32) {
    %c0_i32 = arith.constant 0 : i32
    %c0_i32_0 = arith.constant 0 : i32
    %c0_i32_1 = arith.constant 0 : i32
    return %arg0, %c0_i32, %c0_i32_0 : i32, i32, i32
  }
  func.func @transform_3(%arg0: i32, %arg1: i32) -> (i32, i32) {
    %c0_i32 = arith.constant 0 : i32
    %c0_i32_0 = arith.constant 0 : i32
    %c0_i32_1 = arith.constant 0 : i32
    return %c0_i32, %c0_i32_0 : i32, i32
  }
  func.func @transform_4(%arg0: i32, %arg1: i32) -> (i32, i32) {
    %c0_i32 = arith.constant 0 : i32
    %c0_i32_0 = arith.constant 0 : i32
    %c0_i32_1 = arith.constant 0 : i32
    return %c0_i32, %c0_i32_0 : i32, i32
  }
  func.func @transform_5(%arg0: i32, %arg1: i32) -> (i32, i32) {
    %c0_i32 = arith.constant 0 : i32
    %c0_i32_0 = arith.constant 0 : i32
    %c0_i32_1 = arith.constant 0 : i32
    return %c0_i32, %c0_i32_0 : i32, i32
  }
  func.func @transform_6(%arg0: i32, %arg1: i32) -> (i32, i32) {
    %c0_i32 = arith.constant 0 : i32
    %c0_i32_0 = arith.constant 0 : i32
    %c0_i32_1 = arith.constant 0 : i32
    return %c0_i32, %c0_i32_0 : i32, i32
  }
  func.func @transform_7(%arg0: i32, %arg1: i32) -> (i32, i32) {
    %c0_i32 = arith.constant 0 : i32
    %c0_i32_0 = arith.constant 0 : i32
    %c0_i32_1 = arith.constant 0 : i32
    return %c0_i32, %c0_i32_0 : i32, i32
  }
  func.func @transform_8(%arg0: i32, %arg1: i32) -> (i32, i32) {
    %c0_i32 = arith.constant 0 : i32
    %c0_i32_0 = arith.constant 0 : i32
    %c0_i32_1 = arith.constant 0 : i32
    return %c0_i32, %c0_i32_0 : i32, i32
  }
  func.func @transform_9(%arg0: i32, %arg1: i32) -> (i32, i32) {
    %c0_i32 = arith.constant 0 : i32
    %c0_i32_0 = arith.constant 0 : i32
    %c0_i32_1 = arith.constant 0 : i32
    return %c0_i32, %c0_i32_0 : i32, i32
  }
  func.func @transform_10(%arg0: i32, %arg1: i32) -> (i32, i32, i32) {
    %c0_i32 = arith.constant 0 : i32
    %c0_i32_0 = arith.constant 0 : i32
    %c0_i32_1 = arith.constant 0 : i32
    %c0_i32_2 = arith.constant 0 : i32
    return %c0_i32, %c0_i32_0, %c0_i32_1 : i32, i32, i32
  }
  func.func @transform_11(%arg0: i32, %arg1: i32) -> (i32, i32, i32) {
    %c0_i32 = arith.constant 0 : i32
    %c0_i32_0 = arith.constant 0 : i32
    %c0_i32_1 = arith.constant 0 : i32
    %c0_i32_2 = arith.constant 0 : i32
    return %c0_i32, %c0_i32_0, %c0_i32_1 : i32, i32, i32
  }
  func.func @transform_12(%arg0: i32, %arg1: i32) -> (i32, i32, i32) {
    %c0_i32 = arith.constant 0 : i32
    %c0_i32_0 = arith.constant 0 : i32
    %c0_i32_1 = arith.constant 0 : i32
    %c0_i32_2 = arith.constant 0 : i32
    return %c0_i32, %c0_i32_0, %c0_i32_1 : i32, i32, i32
  }
  func.func @transform_13(%arg0: i32, %arg1: i32) -> (i32, i32, i32) {
    %c0_i32 = arith.constant 0 : i32
    %c0_i32_0 = arith.constant 0 : i32
    %c0_i32_1 = arith.constant 0 : i32
    %c0_i32_2 = arith.constant 0 : i32
    return %c0_i32, %c0_i32_0, %c0_i32_1 : i32, i32, i32
  }
  func.func @transform_14(%arg0: i32, %arg1: i32) -> (i32, i32) {
    %c0_i32 = arith.constant 0 : i32
    %c0_i32_0 = arith.constant 0 : i32
    %c0_i32_1 = arith.constant 0 : i32
    return %c0_i32, %c0_i32_0 : i32, i32
  }
  func.func @transform_15(%arg0: i32, %arg1: i32) -> (i32, i32) {
    %c0_i32 = arith.constant 0 : i32
    %c0_i32_0 = arith.constant 0 : i32
    %c0_i32_1 = arith.constant 0 : i32
    return %c0_i32, %c0_i32_0 : i32, i32
  }
  func.func @transform_16(%arg0: i32, %arg1: i32) -> (i32, i32, i32) {
    %c0_i32 = arith.constant 0 : i32
    %c0_i32_0 = arith.constant 0 : i32
    return %arg0, %c0_i32, %arg1 : i32, i32, i32
  }
}

</mosaic_0001>

<llo_original>
// kernel: tpu_custom_call.1
$region0: #{tpu_custom_call.1}
  #allocation0 [shape = 'u32[]', space=smem, size = 0x4, offset = 0x4, fixed_abs, tag = 'smem constant byte address 0x4 - core index']
  #allocation1 [shape = 'u32[144,128]{1,0:T(1,128)}', space=vmem, size = 0x12000, scoped, tag = 'internal scratch']
  #allocation2 [shape = 'f32[1,1]{1,0:T(1,128)S(1)}', space=vmem, size = 0x200, scoped, tag = 'scoped memory for tpu_custom_call.1']
  %s0 = inlined_call_operand.vmem [shape: f32[2,8,3], index: 0, kind: input, shape index: {}]
  %s1 = inlined_call_operand.vmem [shape: bf16[2,2,256,32], index: 1, kind: input, shape index: {}]
  %s2 = inlined_call_operand.vmem [shape: f32[2,3,4], index: 2, kind: input, shape index: {}]
  %s3 = inlined_call_operand.vmem [shape: f32[3,64], index: 3, kind: input, shape index: {}]
  %s4 = inlined_call_operand.vmem [shape: f32[1,64], index: 4, kind: input, shape index: {}]
  %s5 = inlined_call_operand.vmem [shape: bf16[64,32], index: 5, kind: input, shape index: {}]
  %s6 = inlined_call_operand.vmem [shape: f32[1,32], index: 6, kind: input, shape index: {}]
  %s7 = inlined_call_operand.vmem [shape: bf16[32,32], index: 7, kind: input, shape index: {}]
  %s8 = inlined_call_operand.vmem [shape: f32[1,32], index: 8, kind: input, shape index: {}]
  %s9 = inlined_call_operand.vmem [shape: bf16[64,32], index: 9, kind: input, shape index: {}]
  %s10 = inlined_call_operand.vmem [shape: bf16[4,32,32], index: 10, kind: input, shape index: {}]
  %s11 = inlined_call_operand.vmem [shape: f32[4,1,32], index: 11, kind: input, shape index: {}]
  %s12 = inlined_call_operand.vmem [shape: bf16[4,32,32], index: 12, kind: input, shape index: {}]
  %s13 = inlined_call_operand.vmem [shape: f32[4,1,32], index: 13, kind: input, shape index: {}]
  %s14 = inlined_call_operand.vmem [shape: f32[1,32], index: 14, kind: input, shape index: {}]
  %s15 = inlined_call_operand.<no memory space> [shape: f32[1,1], index: 15, kind: input, shape index: {}]
  %s16 = inlined_call_operand.hbm [shape: f32[2,1,8], index: 16, kind: output, shape index: {}]
  %s17 = sld [smem:[#allocation0]]
  $region97: #{tpu_custom_call.1} parent=0
    _
  %s19 = ssub.s32 1, %s17
  %s20 = scalar_select 0, %s19, %s17
  %v21 = vstv %s15
  %22 = vst [vmem:[#allocation2] sm:$0x1] %v21
  $region1: #{tpu_custom_call.1} parent=0
    #allocation3 [shape = 'u8[1024]{0}', space=vmem, size = 0x400, scoped, tag = 'output window, operand 0']
    #allocation4 [shape = 's32[2]{0}', space=sflag, size = 0x8, scoped, tag = 'scoped memory for tpu_custom_call.1']
    %23 = vsyncpa [#allocation4], 0
    %s24 = scalar_lea.sflag [#allocation4], 1
    %25 = vsyncpa %s24, 0
    loop: start=0, step=1, limit=4
    $region2: #{tpu_custom_call.1} parent=1 // loop_pre_header
      _
    $region3: #{tpu_custom_call.1} parent=1 // loop_header
      %s27 = sphi 0, %s31
      %p28 = scmp.ge.s32.totalorder %s27, 4
      %s34 = sphi 0, %s46
      %s35 = sphi 0, %s42
      %s36 = sphi 0, %s34
      %s37 = sphi 0, %s35
      %s38 = sphi 0, %s36
      %s39 = sphi 0, %s37
      %s51 = sphi 0, %s53
      %s54 = sphi 0, %s51
      %s55 = sphi 0, %s54
      %s71 = sphi 0, %s55
      %s77 = sphi 0, %s79
      %s80 = sphi 0, %s77
      %s81 = sphi 0, %s80
      %s97 = sphi 0, %s81
      %s103 = sphi 0, %s105
      %s106 = sphi 0, %s103
      %s107 = sphi 0, %s106
      %s123 = sphi 0, %s107
      %s127 = sphi 0, %s127
      %s129 = sphi 0, %s127
      %s130 = sphi 0, %s129
      %s144 = sphi 0, %s130
      %s148 = sphi 0, %s148
      %s150 = sphi 0, %s148
      %s151 = sphi 0, %s150
      %s165 = sphi 0, %s151
      %s169 = sphi 0, %s169
      %s171 = sphi 0, %s169
      %s172 = sphi 0, %s171
      %s186 = sphi 0, %s172
      %s190 = sphi 0, %s190
      %s192 = sphi 0, %s190
      %s193 = sphi 0, %s192
      %s207 = sphi 0, %s193
      %s211 = sphi 0, %s211
      %s213 = sphi 0, %s211
      %s214 = sphi 0, %s213
      %s228 = sphi 0, %s214
      %s232 = sphi 0, %s232
      %s234 = sphi 0, %s232
      %s235 = sphi 0, %s234
      %s249 = sphi 0, %s235
      %s253 = sphi 0, %s253
      %s255 = sphi 0, %s253
      %s256 = sphi 0, %s255
      %s270 = sphi 0, %s256
      %s274 = sphi 0, %s274
      %s276 = sphi 0, %s274
      %s277 = sphi 0, %s276
      %s291 = sphi 0, %s277
      %s295 = sphi 0, %s295
      %s297 = sphi 0, %s295
      %s298 = sphi 0, %s297
      %s312 = sphi 0, %s298
      %s316 = sphi 0, %s316
      %s318 = sphi 0, %s316
      %s319 = sphi 0, %s318
      %s333 = sphi 0, %s319
      %s337 = sphi 0, %s337
      %s339 = sphi 0, %s337
      %s340 = sphi 0, %s339
      %s354 = sphi 0, %s340
      %s358 = sphi 0, %s358
      %s360 = sphi 0, %s358
      %s361 = sphi 0, %s360
      %s375 = sphi 0, %s361
      %s379 = sphi 0, %s379
      %s381 = sphi 0, %s379
      %s382 = sphi 0, %s381
      %s396 = sphi 0, %s382
      %s404 = sphi 0, %s406
      %s407 = sphi 0, %s404
      %s408 = sphi 0, %s407
      %s424 = sphi 0, %s408
    $region4: #{tpu_custom_call.1} parent=1 // loop_header_branch
      %30 = sbr.rel (%p28) target = $region8
    $region5: #{tpu_custom_call.1} parent=1 // loop_body
      %s32 = ssub.s32 %s27, 1
      %s33 = ssub.s32 %s27, 2
      %s40 = sadd.s32 1, %s35
      %p41 = scmp.ge.s32.totalorder %s40, 1
      %s42 = scalar_select %p41, 0, %s40
      %s43 = sadd.s32 1, %s34
      %s44 = scalar_select %p41, %s43, %s34
      %p45 = scmp.ge.s32.totalorder %s44, 2
      %s46 = scalar_select %p45, 0, %s44
      %s47 = ssub.s32 %s34, %s46
      %s48 = ssub.s32 %s35, %s42
      %s49 = sor.u32 %s47, %s48
      %p50 = scmp.eq.s32.totalorder %s49, 0
      %s52 = sadd.s32 %s51, 1
      %s53 = scalar_select %p50, %s51, %s52
      %p56 = pneg %p50
      %p57 = scmp.eq.s32.totalorder %s27, 1
      %p58 = por %p56, %p57
      %p59 = scmp.ne.s32.totalorder %s51, %s54
      %p60 = scmp.eq.s32.totalorder %s27, 0
      %p61 = por %p59, %p60
      %p62 = scmp.ne.s32.totalorder %s51, %s54
      %p63 = scmp.eq.s32.totalorder %s32, 1
      %p64 = por %p62, %p63
      %p65 = scmp.ne.s32.totalorder %s54, %s55
      %p66 = scmp.eq.s32.totalorder %s32, 0
      %p67 = por %p65, %p66
      %p68 = scmp.ne.s32.totalorder %s54, %s55
      %p69 = scmp.eq.s32.totalorder %s33, 1
      %p70 = por %p68, %p69
      %p72 = scmp.ne.s32.totalorder %s55, %s71
      %p73 = scmp.eq.s32.totalorder %s33, 0
      %p74 = por %p72, %p73
      %s75 = ssub.s32 %s34, %s46
      %p76 = scmp.eq.s32.totalorder %s75, 0
      %s78 = sadd.s32 %s77, 1
      %s79 = scalar_select %p76, %s77, %s78
      %p82 = pneg %p76
      %p83 = scmp.eq.s32.totalorder %s27, 1
      %p84 = por %p82, %p83
      %p85 = scmp.ne.s32.totalorder %s77, %s80
      %p86 = scmp.eq.s32.totalorder %s27, 0
      %p87 = por %p85, %p86
      %p88 = scmp.ne.s32.totalorder %s77, %s80
      %p89 = scmp.eq.s32.totalorder %s32, 1
      %p90 = por %p88, %p89
      %p91 = scmp.ne.s32.totalorder %s80, %s81
      %p92 = scmp.eq.s32.totalorder %s32, 0
      %p93 = por %p91, %p92
      %p94 = scmp.ne.s32.totalorder %s80, %s81
      %p95 = scmp.eq.s32.totalorder %s33, 1
      %p96 = por %p94, %p95
      %p98 = scmp.ne.s32.totalorder %s81, %s97
      %p99 = scmp.eq.s32.totalorder %s33, 0
      %p100 = por %p98, %p99
      %s101 = ssub.s32 %s34, %s46
      %p102 = scmp.eq.s32.totalorder %s101, 0
      %s104 = sadd.s32 %s103, 1
      %s105 = scalar_select %p102, %s103, %s104
      %p108 = pneg %p102
      %p109 = scmp.eq.s32.totalorder %s27, 1
      %p110 = por %p108, %p109
      %p111 = scmp.ne.s32.totalorder %s103, %s106
      %p112 = scmp.eq.s32.totalorder %s27, 0
      %p113 = por %p111, %p112
      %p114 = scmp.ne.s32.totalorder %s103, %s106
      %p115 = scmp.eq.s32.totalorder %s32, 1
      %p116 = por %p114, %p115
      %p117 = scmp.ne.s32.totalorder %s106, %s107
      %p118 = scmp.eq.s32.totalorder %s32, 0
      %p119 = por %p117, %p118
      %p120 = scmp.ne.s32.totalorder %s106, %s107
      %p121 = scmp.eq.s32.totalorder %s33, 1
      %p122 = por %p120, %p121
      %p124 = scmp.ne.s32.totalorder %s107, %s123
      %p125 = scmp.eq.s32.totalorder %s33, 0
      %p126 = por %p124, %p125
      %s128 = sadd.s32 %s127, 1
      %p131 = scmp.eq.s32.totalorder %s27, 1
      %p132 = scmp.ne.s32.totalorder %s127, %s129
      %p133 = scmp.eq.s32.totalorder %s27, 0
      %p134 = por %p132, %p133
      %p135 = scmp.ne.s32.totalorder %s127, %s129
      %p136 = scmp.eq.s32.totalorder %s32, 1
      %p137 = por %p135, %p136
      %p138 = scmp.ne.s32.totalorder %s129, %s130
      %p139 = scmp.eq.s32.totalorder %s32, 0
      %p140 = por %p138, %p139
      %p141 = scmp.ne.s32.totalorder %s129, %s130
      %p142 = scmp.eq.s32.totalorder %s33, 1
      %p143 = por %p141, %p142
      %p145 = scmp.ne.s32.totalorder %s130, %s144
      %p146 = scmp.eq.s32.totalorder %s33, 0
      %p147 = por %p145, %p146
      %s149 = sadd.s32 %s148, 1
      %p152 = scmp.eq.s32.totalorder %s27, 1
      %p153 = scmp.ne.s32.totalorder %s148, %s150
      %p154 = scmp.eq.s32.totalorder %s27, 0
      %p155 = por %p153, %p154
      %p156 = scmp.ne.s32.totalorder %s148, %s150
      %p157 = scmp.eq.s32.totalorder %s32, 1
      %p158 = por %p156, %p157
      %p159 = scmp.ne.s32.totalorder %s150, %s151
      %p160 = scmp.eq.s32.totalorder %s32, 0
      %p161 = por %p159, %p160
      %p162 = scmp.ne.s32.totalorder %s150, %s151
      %p163 = scmp.eq.s32.totalorder %s33, 1
      %p164 = por %p162, %p163
      %p166 = scmp.ne.s32.totalorder %s151, %s165
      %p167 = scmp.eq.s32.totalorder %s33, 0
      %p168 = por %p166, %p167
      %s170 = sadd.s32 %s169, 1
      %p173 = scmp.eq.s32.totalorder %s27, 1
      %p174 = scmp.ne.s32.totalorder %s169, %s171
      %p175 = scmp.eq.s32.totalorder %s27, 0
      %p176 = por %p174, %p175
      %p177 = scmp.ne.s32.totalorder %s169, %s171
      %p178 = scmp.eq.s32.totalorder %s32, 1
      %p179 = por %p177, %p178
      %p180 = scmp.ne.s32.totalorder %s171, %s172
      %p181 = scmp.eq.s32.totalorder %s32, 0
      %p182 = por %p180, %p181
      %p183 = scmp.ne.s32.totalorder %s171, %s172
      %p184 = scmp.eq.s32.totalorder %s33, 1
      %p185 = por %p183, %p184
      %p187 = scmp.ne.s32.totalorder %s172, %s186
      %p188 = scmp.eq.s32.totalorder %s33, 0
      %p189 = por %p187, %p188
      %s191 = sadd.s32 %s190, 1
      %p194 = scmp.eq.s32.totalorder %s27, 1
      %p195 = scmp.ne.s32.totalorder %s190, %s192
      %p196 = scmp.eq.s32.totalorder %s27, 0
      %p197 = por %p195, %p196
      %p198 = scmp.ne.s32.totalorder %s190, %s192
      %p199 = scmp.eq.s32.totalorder %s32, 1
      %p200 = por %p198, %p199
      %p201 = scmp.ne.s32.totalorder %s192, %s193
      %p202 = scmp.eq.s32.totalorder %s32, 0
      %p203 = por %p201, %p202
      %p204 = scmp.ne.s32.totalorder %s192, %s193
      %p205 = scmp.eq.s32.totalorder %s33, 1
      %p206 = por %p204, %p205
      %p208 = scmp.ne.s32.totalorder %s193, %s207
      %p209 = scmp.eq.s32.totalorder %s33, 0
      %p210 = por %p208, %p209
      %s212 = sadd.s32 %s211, 1
      %p215 = scmp.eq.s32.totalorder %s27, 1
      %p216 = scmp.ne.s32.totalorder %s211, %s213
      %p217 = scmp.eq.s32.totalorder %s27, 0
      %p218 = por %p216, %p217
      %p219 = scmp.ne.s32.totalorder %s211, %s213
      %p220 = scmp.eq.s32.totalorder %s32, 1
      %p221 = por %p219, %p220
      %p222 = scmp.ne.s32.totalorder %s213, %s214
      %p223 = scmp.eq.s32.totalorder %s32, 0
      %p224 = por %p222, %p223
      %p225 = scmp.ne.s32.totalorder %s213, %s214
      %p226 = scmp.eq.s32.totalorder %s33, 1
      %p227 = por %p225, %p226
      %p229 = scmp.ne.s32.totalorder %s214, %s228
      %p230 = scmp.eq.s32.totalorder %s33, 0
      %p231 = por %p229, %p230
      %s233 = sadd.s32 %s232, 1
      %p236 = scmp.eq.s32.totalorder %s27, 1
      %p237 = scmp.ne.s32.totalorder %s232, %s234
      %p238 = scmp.eq.s32.totalorder %s27, 0
      %p239 = por %p237, %p238
      %p240 = scmp.ne.s32.totalorder %s232, %s234
      %p241 = scmp.eq.s32.totalorder %s32, 1
      %p242 = por %p240, %p241
      %p243 = scmp.ne.s32.totalorder %s234, %s235
      %p244 = scmp.eq.s32.totalorder %s32, 0
      %p245 = por %p243, %p244
      %p246 = scmp.ne.s32.totalorder %s234, %s235
      %p247 = scmp.eq.s32.totalorder %s33, 1
      %p248 = por %p246, %p247
      %p250 = scmp.ne.s32.totalorder %s235, %s249
      %p251 = scmp.eq.s32.totalorder %s33, 0
      %p252 = por %p250, %p251
      %s254 = sadd.s32 %s253, 1
      %p257 = scmp.eq.s32.totalorder %s27, 1
      %p258 = scmp.ne.s32.totalorder %s253, %s255
      %p259 = scmp.eq.s32.totalorder %s27, 0
      %p260 = por %p258, %p259
      %p261 = scmp.ne.s32.totalorder %s253, %s255
      %p262 = scmp.eq.s32.totalorder %s32, 1
      %p263 = por %p261, %p262
      %p264 = scmp.ne.s32.totalorder %s255, %s256
      %p265 = scmp.eq.s32.totalorder %s32, 0
      %p266 = por %p264, %p265
      %p267 = scmp.ne.s32.totalorder %s255, %s256
      %p268 = scmp.eq.s32.totalorder %s33, 1
      %p269 = por %p267, %p268
      %p271 = scmp.ne.s32.totalorder %s256, %s270
      %p272 = scmp.eq.s32.totalorder %s33, 0
      %p273 = por %p271, %p272
      %s275 = sadd.s32 %s274, 1
      %p278 = scmp.eq.s32.totalorder %s27, 1
      %p279 = scmp.ne.s32.totalorder %s274, %s276
      %p280 = scmp.eq.s32.totalorder %s27, 0
      %p281 = por %p279, %p280
      %p282 = scmp.ne.s32.totalorder %s274, %s276
      %p283 = scmp.eq.s32.totalorder %s32, 1
      %p284 = por %p282, %p283
      %p285 = scmp.ne.s32.totalorder %s276, %s277
      %p286 = scmp.eq.s32.totalorder %s32, 0
      %p287 = por %p285, %p286
      %p288 = scmp.ne.s32.totalorder %s276, %s277
      %p289 = scmp.eq.s32.totalorder %s33, 1
      %p290 = por %p288, %p289
      %p292 = scmp.ne.s32.totalorder %s277, %s291
      %p293 = scmp.eq.s32.totalorder %s33, 0
      %p294 = por %p292, %p293
      %s296 = sadd.s32 %s295, 1
      %p299 = scmp.eq.s32.totalorder %s27, 1
      %p300 = scmp.ne.s32.totalorder %s295, %s297
      %p301 = scmp.eq.s32.totalorder %s27, 0
      %p302 = por %p300, %p301
      %p303 = scmp.ne.s32.totalorder %s295, %s297
      %p304 = scmp.eq.s32.totalorder %s32, 1
      %p305 = por %p303, %p304
      %p306 = scmp.ne.s32.totalorder %s297, %s298
      %p307 = scmp.eq.s32.totalorder %s32, 0
      %p308 = por %p306, %p307
      %p309 = scmp.ne.s32.totalorder %s297, %s298
      %p310 = scmp.eq.s32.totalorder %s33, 1
      %p311 = por %p309, %p310
      %p313 = scmp.ne.s32.totalorder %s298, %s312
      %p314 = scmp.eq.s32.totalorder %s33, 0
      %p315 = por %p313, %p314
      %s317 = sadd.s32 %s316, 1
      %p320 = scmp.eq.s32.totalorder %s27, 1
      %p321 = scmp.ne.s32.totalorder %s316, %s318
      %p322 = scmp.eq.s32.totalorder %s27, 0
      %p323 = por %p321, %p322
      %p324 = scmp.ne.s32.totalorder %s316, %s318
      %p325 = scmp.eq.s32.totalorder %s32, 1
      %p326 = por %p324, %p325
      %p327 = scmp.ne.s32.totalorder %s318, %s319
      %p328 = scmp.eq.s32.totalorder %s32, 0
      %p329 = por %p327, %p328
      %p330 = scmp.ne.s32.totalorder %s318, %s319
      %p331 = scmp.eq.s32.totalorder %s33, 1
      %p332 = por %p330, %p331
      %p334 = scmp.ne.s32.totalorder %s319, %s333
      %p335 = scmp.eq.s32.totalorder %s33, 0
      %p336 = por %p334, %p335
      %s338 = sadd.s32 %s337, 1
      %p341 = scmp.eq.s32.totalorder %s27, 1
      %p342 = scmp.ne.s32.totalorder %s337, %s339
      %p343 = scmp.eq.s32.totalorder %s27, 0
      %p344 = por %p342, %p343
      %p345 = scmp.ne.s32.totalorder %s337, %s339
      %p346 = scmp.eq.s32.totalorder %s32, 1
      %p347 = por %p345, %p346
      %p348 = scmp.ne.s32.totalorder %s339, %s340
      %p349 = scmp.eq.s32.totalorder %s32, 0
      %p350 = por %p348, %p349
      %p351 = scmp.ne.s32.totalorder %s339, %s340
      %p352 = scmp.eq.s32.totalorder %s33, 1
      %p353 = por %p351, %p352
      %p355 = scmp.ne.s32.totalorder %s340, %s354
      %p356 = scmp.eq.s32.totalorder %s33, 0
      %p357 = por %p355, %p356
      %s359 = sadd.s32 %s358, 1
      %p362 = scmp.eq.s32.totalorder %s27, 1
      %p363 = scmp.ne.s32.totalorder %s358, %s360
      %p364 = scmp.eq.s32.totalorder %s27, 0
      %p365 = por %p363, %p364
      %p366 = scmp.ne.s32.totalorder %s358, %s360
      %p367 = scmp.eq.s32.totalorder %s32, 1
      %p368 = por %p366, %p367
      %p369 = scmp.ne.s32.totalorder %s360, %s361
      %p370 = scmp.eq.s32.totalorder %s32, 0
      %p371 = por %p369, %p370
      %p372 = scmp.ne.s32.totalorder %s360, %s361
      %p373 = scmp.eq.s32.totalorder %s33, 1
      %p374 = por %p372, %p373
      %p376 = scmp.ne.s32.totalorder %s361, %s375
      %p377 = scmp.eq.s32.totalorder %s33, 0
      %p378 = por %p376, %p377
      %s380 = sadd.s32 %s379, 1
      %p383 = scmp.eq.s32.totalorder %s27, 1
      %p384 = scmp.ne.s32.totalorder %s379, %s381
      %p385 = scmp.eq.s32.totalorder %s27, 0
      %p386 = por %p384, %p385
      %p387 = scmp.ne.s32.totalorder %s379, %s381
      %p388 = scmp.eq.s32.totalorder %s32, 1
      %p389 = por %p387, %p388
      %p390 = scmp.ne.s32.totalorder %s381, %s382
      %p391 = scmp.eq.s32.totalorder %s32, 0
      %p392 = por %p390, %p391
      %p393 = scmp.ne.s32.totalorder %s381, %s382
      %p394 = scmp.eq.s32.totalorder %s33, 1
      %p395 = por %p393, %p394
      %p397 = scmp.ne.s32.totalorder %s382, %s396
      %p398 = scmp.eq.s32.totalorder %s33, 0
      %p399 = por %p397, %p398
      %s400 = ssub.s32 %s34, %s46
      %s401 = ssub.s32 %s35, %s42
      %s402 = sor.u32 %s400, %s401
      %p403 = scmp.eq.s32.totalorder %s402, 0
      %s405 = sadd.s32 %s404, 1
      %s406 = scalar_select %p403, %s404, %s405
      %p409 = pneg %p403
      %p410 = scmp.eq.s32.totalorder %s27, 1
      %p411 = por %p409, %p410
      %p412 = scmp.ne.s32.totalorder %s404, %s407
      %p413 = scmp.eq.s32.totalorder %s27, 0
      %p414 = por %p412, %p413
      %p415 = scmp.ne.s32.totalorder %s404, %s407
      %p416 = scmp.eq.s32.totalorder %s32, 1
      %p417 = por %p415, %p416
      %p418 = scmp.ne.s32.totalorder %s407, %s408
      %p419 = scmp.eq.s32.totalorder %s32, 0
      %p420 = por %p418, %p419
      %p421 = scmp.ne.s32.totalorder %s407, %s408
      %p422 = scmp.eq.s32.totalorder %s33, 1
      %p423 = por %p421, %p422
      %p425 = scmp.ne.s32.totalorder %s408, %s424
      %p426 = scmp.eq.s32.totalorder %s33, 0
      %p427 = por %p425, %p426
      %p428 = scmp.le.s32.totalorder 1, %s27
      %p429 = scmp.lt.s32.totalorder %s27, 3
      %p430 = pnand %p428, %p429
      %p431 = pneg %p430
      // Predicated region
      $region9: #{tpu_custom_call.1} parent=5 // pred_check
        _
      $region10: #{tpu_custom_call.1} parent=5 // pred_check_branch
        %433 = sbr.rel (%p430) target = $region12
      $region11: #{tpu_custom_call.1} parent=5 // pred_region
        %s434 = ssub.s32 %s27, 1
        // Predicated region
        $region13: #{tpu_custom_call.1} parent=11 // pred_check
          %p435 = pneg %p140
        $region14: #{tpu_custom_call.1} parent=11 // pred_check_branch
          %437 = sbr.rel (%p435) target = $region16
        $region15: #{tpu_custom_call.1} parent=11 // pred_region
          _
        $region16: #{tpu_custom_call.1} parent=11 // pred_fallthru
          _
        // Predicated region
        $region17: #{tpu_custom_call.1} parent=11 // pred_check
          %p438 = pneg %p161
        $region18: #{tpu_custom_call.1} parent=11 // pred_check_branch
          %440 = sbr.rel (%p438) target = $region20
        $region19: #{tpu_custom_call.1} parent=11 // pred_region
          _
        $region20: #{tpu_custom_call.1} parent=11 // pred_fallthru
          _
        // Predicated region
        $region21: #{tpu_custom_call.1} parent=11 // pred_check
          %p441 = pneg %p182
        $region22: #{tpu_custom_call.1} parent=11 // pred_check_branch
          %443 = sbr.rel (%p441) target = $region24
        $region23: #{tpu_custom_call.1} parent=11 // pred_region
          _
        $region24: #{tpu_custom_call.1} parent=11 // pred_fallthru
          _
        // Predicated region
        $region25: #{tpu_custom_call.1} parent=11 // pred_check
          %p444 = pneg %p203
        $region26: #{tpu_custom_call.1} parent=11 // pred_check_branch
          %446 = sbr.rel (%p444) target = $region28
        $region27: #{tpu_custom_call.1} parent=11 // pred_region
          _
        $region28: #{tpu_custom_call.1} parent=11 // pred_fallthru
          _
        // Predicated region
        $region29: #{tpu_custom_call.1} parent=11 // pred_check
          %p447 = pneg %p224
        $region30: #{tpu_custom_call.1} parent=11 // pred_check_branch
          %449 = sbr.rel (%p447) target = $region32
        $region31: #{tpu_custom_call.1} parent=11 // pred_region
          _
        $region32: #{tpu_custom_call.1} parent=11 // pred_fallthru
          _
        // Predicated region
        $region33: #{tpu_custom_call.1} parent=11 // pred_check
          %p450 = pneg %p245
        $region34: #{tpu_custom_call.1} parent=11 // pred_check_branch
          %452 = sbr.rel (%p450) target = $region36
        $region35: #{tpu_custom_call.1} parent=11 // pred_region
          _
        $region36: #{tpu_custom_call.1} parent=11 // pred_fallthru
          _
        // Predicated region
        $region37: #{tpu_custom_call.1} parent=11 // pred_check
          %p453 = pneg %p266
        $region38: #{tpu_custom_call.1} parent=11 // pred_check_branch
          %455 = sbr.rel (%p453) target = $region40
        $region39: #{tpu_custom_call.1} parent=11 // pred_region
          _
        $region40: #{tpu_custom_call.1} parent=11 // pred_fallthru
          _
        // Predicated region
        $region41: #{tpu_custom_call.1} parent=11 // pred_check
          %p456 = pneg %p287
        $region42: #{tpu_custom_call.1} parent=11 // pred_check_branch
          %458 = sbr.rel (%p456) target = $region44
        $region43: #{tpu_custom_call.1} parent=11 // pred_region
          _
        $region44: #{tpu_custom_call.1} parent=11 // pred_fallthru
          _
        // Predicated region
        $region45: #{tpu_custom_call.1} parent=11 // pred_check
          %p459 = pneg %p308
        $region46: #{tpu_custom_call.1} parent=11 // pred_check_branch
          %461 = sbr.rel (%p459) target = $region48
        $region47: #{tpu_custom_call.1} parent=11 // pred_region
          _
        $region48: #{tpu_custom_call.1} parent=11 // pred_fallthru
          _
        // Predicated region
        $region49: #{tpu_custom_call.1} parent=11 // pred_check
          %p462 = pneg %p329
        $region50: #{tpu_custom_call.1} parent=11 // pred_check_branch
          %464 = sbr.rel (%p462) target = $region52
        $region51: #{tpu_custom_call.1} parent=11 // pred_region
          _
        $region52: #{tpu_custom_call.1} parent=11 // pred_fallthru
          _
        // Predicated region
        $region53: #{tpu_custom_call.1} parent=11 // pred_check
          %p465 = pneg %p350
        $region54: #{tpu_custom_call.1} parent=11 // pred_check_branch
          %467 = sbr.rel (%p465) target = $region56
        $region55: #{tpu_custom_call.1} parent=11 // pred_region
          _
        $region56: #{tpu_custom_call.1} parent=11 // pred_fallthru
          _
        // Predicated region
        $region57: #{tpu_custom_call.1} parent=11 // pred_check
          %p468 = pneg %p371
        $region58: #{tpu_custom_call.1} parent=11 // pred_check_branch
          %470 = sbr.rel (%p468) target = $region60
        $region59: #{tpu_custom_call.1} parent=11 // pred_region
          _
        $region60: #{tpu_custom_call.1} parent=11 // pred_fallthru
          _
        // Predicated region
        $region61: #{tpu_custom_call.1} parent=11 // pred_check
          %p471 = pneg %p392
        $region62: #{tpu_custom_call.1} parent=11 // pred_check_branch
          %473 = sbr.rel (%p471) target = $region64
        $region63: #{tpu_custom_call.1} parent=11 // pred_region
          _
        $region64: #{tpu_custom_call.1} parent=11 // pred_fallthru
          _
      $region12: #{tpu_custom_call.1} parent=5 // pred_fallthru
        _
      %p474 = scmp.lt.s32.totalorder %s27, 2
      // Predicated region
      $region65: #{tpu_custom_call.1} parent=5 // pred_check
        %p475 = pneg %p474
      $region66: #{tpu_custom_call.1} parent=5 // pred_check_branch
        %477 = sbr.rel (%p475) target = $region68
      $region67: #{tpu_custom_call.1} parent=5 // pred_region
        // Predicated region
        $region69: #{tpu_custom_call.1} parent=67 // pred_check
          %p478 = pneg %p61
        $region70: #{tpu_custom_call.1} parent=67 // pred_check_branch
          %480 = sbr.rel (%p478) target = $region72
        $region71: #{tpu_custom_call.1} parent=67 // pred_region
          %p481 = scmp.lt.s32.totalorder %s34, 1
          %s482 = scalar_select %p481, %s34, 1
          %p483 = scmp.lt.s32.totalorder %s35, 0
          %s484 = scalar_select %p483, %s35, 0
          %s485 = sadd.s32 %s484, %s482
          %s486 = smul.addr %s485, 8
          %s487 = scalar_lea.vmem %s0, %s486
        $region72: #{tpu_custom_call.1} parent=67 // pred_fallthru
          _
        // Predicated region
        $region73: #{tpu_custom_call.1} parent=67 // pred_check
          %p488 = pneg %p87
        $region74: #{tpu_custom_call.1} parent=67 // pred_check_branch
          %490 = sbr.rel (%p488) target = $region76
        $region75: #{tpu_custom_call.1} parent=67 // pred_region
          %p491 = scmp.lt.s32.totalorder %s34, 1
          %s492 = scalar_select %p491, %s34, 1
          %s493 = smul.addr %s492, 64
          %s494 = smul.addr %s493, 4
          %s495 = scalar_lea.vmem %s1, %s494
        $region76: #{tpu_custom_call.1} parent=67 // pred_fallthru
          _
        // Predicated region
        $region77: #{tpu_custom_call.1} parent=67 // pred_check
          %p496 = pneg %p113
        $region78: #{tpu_custom_call.1} parent=67 // pred_check_branch
          %498 = sbr.rel (%p496) target = $region80
        $region79: #{tpu_custom_call.1} parent=67 // pred_region
          %p499 = scmp.lt.s32.totalorder %s34, 1
          %s500 = scalar_select %p499, %s34, 1
          %s501 = smul.addr %s500, 4
          %s502 = scalar_lea.vmem %s2, %s501
        $region80: #{tpu_custom_call.1} parent=67 // pred_fallthru
          _
      $region68: #{tpu_custom_call.1} parent=5 // pred_fallthru
        _
      %p503 = scmp.le.s32.totalorder 1, %s27
      %p504 = scmp.lt.s32.totalorder %s27, 3
      %p505 = pnand %p503, %p504
      %p506 = pneg %p505
      // Predicated region
      $region81: #{tpu_custom_call.1} parent=5 // pred_check
        _
      $region82: #{tpu_custom_call.1} parent=5 // pred_check_branch
        %508 = sbr.rel (%p505) target = $region84
      $region83: #{tpu_custom_call.1} parent=5 // pred_region
        %s509 = ssub.s32 %s27, 1
        %p510 = scmp.lt.s32.totalorder %s36, 1
        %s511 = scalar_select %p510, %s36, 1
        %p512 = scmp.lt.s32.totalorder %s37, 0
        %s513 = scalar_select %p512, %s37, 0
        %s514 = sadd.s32 %s513, %s511
        %s515 = smul.addr %s514, 8
        %s516 = scalar_lea.vmem %s0, %s515
        %p517 = pneg %p67
        %p518 = pneg %p64
        %p519 = scmp.lt.s32.totalorder %s36, 1
        %s520 = scalar_select %p519, %s36, 1
        %s521 = smul.addr %s520, 64
        %s522 = smul.addr %s521, 4
        %s523 = scalar_lea.vmem %s1, %s522
        %p524 = pneg %p93
        %p525 = pneg %p90
        %p526 = scmp.lt.s32.totalorder %s36, 1
        %s527 = scalar_select %p526, %s36, 1
        %s528 = smul.addr %s527, 4
        %s529 = scalar_lea.vmem %s2, %s528
        %p530 = pneg %p119
        %p531 = pneg %p116
        %p532 = pneg %p140
        %p533 = pneg %p137
        %p534 = pneg %p161
        %p535 = pneg %p158
        %p536 = pneg %p182
        %p537 = pneg %p179
        %p538 = pneg %p203
        %p539 = pneg %p200
        %p540 = pneg %p224
        %p541 = pneg %p221
        %p542 = pneg %p245
        %p543 = pneg %p242
        %p544 = pneg %p266
        %p545 = pneg %p263
        %p546 = pneg %p287
        %p547 = pneg %p284
        %p548 = pneg %p308
        %p549 = pneg %p305
        %p550 = pneg %p329
        %p551 = pneg %p326
        %p552 = pneg %p350
        %p553 = pneg %p347
        %p554 = pneg %p371
        %p555 = pneg %p368
        %p556 = pneg %p392
        %p557 = pneg %p389
        %p558 = pneg %p420
        %p559 = pneg %p417
        %s560 = sand.u32 %s407, 1
        %s561 = scalar_lea.sflag [#allocation4], %s560
        %s562 = sand.u32 %s407, 1
        %s563 = scalar_lea.vmem [#allocation3], %s562
        %p564 = scmp.lt.s32.totalorder %s36, 1
        %s565 = scalar_select %p564, %s36, 1
        %p566 = scmp.lt.s32.totalorder %s37, 0
        %s567 = scalar_select %p566, %s37, 0
        %s568 = sadd.s32 %s567, %s565
        %s569 = smul.addr %s568, 8
        %s570 = scalar_lea.vmem %s0, %s569
        %p571 = scmp.lt.s32.totalorder %s36, 1
        %s572 = scalar_select %p571, %s36, 1
        %s573 = smul.addr %s572, 64
        %s574 = smul.addr %s573, 4
        %s575 = scalar_lea.vmem %s1, %s574
        %p576 = scmp.lt.s32.totalorder %s36, 1
        %s577 = scalar_select %p576, %s36, 1
        %s578 = smul.addr %s577, 4
        %s579 = scalar_lea.vmem %s2, %s578
        %v581 = vld [vmem:[%s570] sm:$0xff]
        %v582 = vld [vmem:[%s579] sm:$0x7]
        %584 = vset.pattern.permute.xlu0 0
        %585 = vperm.xlu0 %584, %v581
        %v586 = vpop.permute.xlu0 %585
        %v588 = vlaneseq
        %v589 = vshrl.u32 %v588, 7
        %v590 = vsub.s32 0, %v589
        %v591 = vrot.slane %v582, %v590
        %v592 = vmul.f32 %v586, %v591
        %593 = vset.pattern.permute.xlu0 1
        %594 = vperm.xlu0 %593, %v581
        %v595 = vpop.permute.xlu0 %594
        %v597 = vlaneseq
        %v598 = vshrl.u32 %v597, 7
        %v599 = vsub.s32 1, %v598
        %v600 = vrot.slane %v582, %v599
        %v601 = vmul.f32 %v595, %v600
        %v602 = vadd.f32 %v592, %v601
        %603 = vset.pattern.permute.xlu0 2
        %604 = vperm.xlu0 %603, %v581
        %v605 = vpop.permute.xlu0 %604
        %v607 = vlaneseq
        %v608 = vshrl.u32 %v607, 7
        %v609 = vsub.s32 2, %v608
        %v610 = vrot.slane %v582, %v609
        %v611 = vmul.f32 %v605, %v610
        %v612 = vadd.f32 %v602, %v611
        %v613 = vadd.f32 %v612, 7.5
        %v614 = vlaneseq
        %v615 = vand.u32 %v614, 127
        %v616 = vcvt.s32.f32 %v615
        %618 = vset.pattern.permute.xlu0 0
        %619 = vperm.xlu0 %618, %v613
        %v620 = vpop.permute.xlu0 %619
        %v622 = vsub.f32 %v616, %v620
        %v623 = vand.u32 2147483647, %v622
        %v624 = vsub.f32 1.0, %v623
        %v625 = vmax.f32 %v624, 0.0
        %626 = vset.pattern.permute.xlu0 1
        %627 = vperm.xlu0 %626, %v613
        %v628 = vpop.permute.xlu0 %627
        %v630 = vsub.f32 %v616, %v628
        %v631 = vand.u32 2147483647, %v630
        %v632 = vsub.f32 1.0, %v631
        %v633 = vmax.f32 %v632, 0.0
        %v634 = vpack.c.bf16 %v625, %v625
        %v636 = vpack.i.b16 %v634, %v634
        %v638 = vlaneseq
        %v639 = vshrl.u32 %v638, 7
        %v640 = vsub.s32 0, %v639
        %v641 = vrot.slane %v636, %v640
        %643 = vbcast.lane.c.b16.xlu0 %v641, 256
        %v644 = vpop.permute.xlu0 %643
        %v645 = vshrl.u32 %v634, 16
        %v646 = vpack.i.b16 %v645, %v645
        %v648 = vlaneseq
        %v649 = vshrl.u32 %v648, 7
        %v650 = vsub.s32 0, %v649
        %v651 = vrot.slane %v646, %v650
        %653 = vbcast.lane.c.b16.xlu0 %v651, 256
        %v654 = vpop.permute.xlu0 %653
        %v655 = vlaneseq
        %v656 = vshrl.u32 %v655, 7
        %v657 = vsub.s32 1, %v656
        %v658 = vrot.slane %v636, %v657
        %660 = vbcast.lane.c.b16.xlu0 %v658, 256
        %v661 = vpop.permute.xlu0 %660
        %v662 = vlaneseq
        %v663 = vshrl.u32 %v662, 7
        %v664 = vsub.s32 1, %v663
        %v665 = vrot.slane %v646, %v664
        %667 = vbcast.lane.c.b16.xlu0 %v665, 256
        %v668 = vpop.permute.xlu0 %667
        %v669 = vlaneseq
        %v670 = vshrl.u32 %v669, 7
        %v671 = vsub.s32 2, %v670
        %v672 = vrot.slane %v636, %v671
        %674 = vbcast.lane.c.b16.xlu0 %v672, 256
        %v675 = vpop.permute.xlu0 %674
        %v676 = vlaneseq
        %v677 = vshrl.u32 %v676, 7
        %v678 = vsub.s32 2, %v677
        %v679 = vrot.slane %v646, %v678
        %681 = vbcast.lane.c.b16.xlu0 %v679, 256
        %v682 = vpop.permute.xlu0 %681
        %v683 = vlaneseq
        %v684 = vshrl.u32 %v683, 7
        %v685 = vsub.s32 3, %v684
        %v686 = vrot.slane %v636, %v685
        %688 = vbcast.lane.c.b16.xlu0 %v686, 256
        %v689 = vpop.permute.xlu0 %688
        %v690 = vlaneseq
        %v691 = vshrl.u32 %v690, 7
        %v692 = vsub.s32 3, %v691
        %v693 = vrot.slane %v646, %v692
        %695 = vbcast.lane.c.b16.xlu0 %v693, 256
        %v696 = vpop.permute.xlu0 %695
        %v697 = vpack.c.bf16 %v633, %v633
        %v700 = vunpack.c.l.s4 1966171168
        %v701 = vunpack.c.0.s8 %v700
        %v702 = vlaneseq
        %v703 = vshrl.u32 %v702, 7
        %v704 = vsub.s32 %v701, %v703
        %v705 = vrot.slane %v697, %v704
        %v706 = vcombine.high %v705, %v705
        %v708 = vunpack.c.l.s4 1966171168
        %v709 = vunpack.c.0.s8 %v708
        %v710 = vlaneseq
        %v711 = vshrl.u32 %v710, 7
        %v712 = vsub.s32 %v709, %v711
        %v713 = vrot.slane %v705, %v712
        %v715 = vunpack.c.l.s4 1966171168
        %v716 = vunpack.c.0.s8 %v715
        %v717 = vlaneseq
        %v718 = vshrl.u32 %v717, 7
        %v719 = vsub.s32 %v716, %v718
        %v720 = vrot.slane %v706, %v719
        %v721 = vcombine.high %v713, %v713
        %v722 = vcombine.high %v720, %v720
        %v723 = vunpack.i.l.s16 %v713
        %v724 = vunpack.i.h.s16 %v713
        %v725 = vunpack.i.l.s16 %v720
        %v726 = vunpack.i.h.s16 %v720
        %v727 = vunpack.i.l.s16 %v721
        %v728 = vunpack.i.h.s16 %v721
        %v729 = vunpack.i.l.s16 %v722
        %v730 = vunpack.i.h.s16 %v722
        %v731 = vpack.i.b16 %v723, %v723
        %v732 = vpack.i.b16 %v724, %v724
        %v733 = vpack.i.b16 %v725, %v725
        %v734 = vpack.i.b16 %v726, %v726
        %v735 = vpack.i.b16 %v727, %v727
        %v736 = vpack.i.b16 %v728, %v728
        %v737 = vpack.i.b16 %v729, %v729
        %v738 = vpack.i.b16 %v730, %v730
        %v739 = vlaneseq
        %v740 = vshrl.u32 %v739, 7
        %v741 = vsub.s32 0, %v740
        %v742 = vrot.slane %v731, %v741
        %v743 = vlaneseq
        %v744 = vshrl.u32 %v743, 7
        %v745 = vsub.s32 0, %v744
        %v746 = vrot.slane %v732, %v745
        %v747 = vlaneseq
        %v748 = vshrl.u32 %v747, 7
        %v749 = vsub.s32 0, %v748
        %v750 = vrot.slane %v733, %v749
        %v751 = vlaneseq
        %v752 = vshrl.u32 %v751, 7
        %v753 = vsub.s32 0, %v752
        %v754 = vrot.slane %v734, %v753
        %v755 = vlaneseq
        %v756 = vshrl.u32 %v755, 7
        %v757 = vsub.s32 0, %v756
        %v758 = vrot.slane %v735, %v757
        %v759 = vlaneseq
        %v760 = vshrl.u32 %v759, 7
        %v761 = vsub.s32 0, %v760
        %v762 = vrot.slane %v736, %v761
        %v763 = vlaneseq
        %v764 = vshrl.u32 %v763, 7
        %v765 = vsub.s32 0, %v764
        %v766 = vrot.slane %v737, %v765
        %v767 = vlaneseq
        %v768 = vshrl.u32 %v767, 7
        %v769 = vsub.s32 0, %v768
        %v770 = vrot.slane %v738, %v769
        %v772 = vpack.i.b16 %v742, %v742
        %v774 = vlaneseq
        %v775 = vshrl.u32 %v774, 7
        %v776 = vsub.s32 0, %v775
        %v777 = vrot.slane %v772, %v776
        %v779 = vpack.i.b16 %v746, %v746
        %v781 = vlaneseq
        %v782 = vshrl.u32 %v781, 7
        %v783 = vsub.s32 0, %v782
        %v784 = vrot.slane %v779, %v783
        %v786 = vpack.i.b16 %v750, %v750
        %v788 = vlaneseq
        %v789 = vshrl.u32 %v788, 7
        %v790 = vsub.s32 0, %v789
        %v791 = vrot.slane %v786, %v790
        %v793 = vpack.i.b16 %v754, %v754
        %v795 = vlaneseq
        %v796 = vshrl.u32 %v795, 7
        %v797 = vsub.s32 0, %v796
        %v798 = vrot.slane %v793, %v797
        %v800 = vpack.i.b16 %v758, %v758
        %v802 = vlaneseq
        %v803 = vshrl.u32 %v802, 7
        %v804 = vsub.s32 0, %v803
        %v805 = vrot.slane %v800, %v804
        %v807 = vpack.i.b16 %v762, %v762
        %v809 = vlaneseq
        %v810 = vshrl.u32 %v809, 7
        %v811 = vsub.s32 0, %v810
        %v812 = vrot.slane %v807, %v811
        %v814 = vpack.i.b16 %v766, %v766
        %v816 = vlaneseq
        %v817 = vshrl.u32 %v816, 7
        %v818 = vsub.s32 0, %v817
        %v819 = vrot.slane %v814, %v818
        %v821 = vpack.i.b16 %v770, %v770
        %v823 = vlaneseq
        %v824 = vshrl.u32 %v823, 7
        %v825 = vsub.s32 0, %v824
        %v826 = vrot.slane %v821, %v825
        %v827 = vmul.bf16 %v644, %v777
        %v828 = vmul.bf16 %v654, %v784
        %v829 = vmul.bf16 %v661, %v791
        %v830 = vmul.bf16 %v668, %v798
        %v831 = vmul.bf16 %v675, %v805
        %v832 = vmul.bf16 %v682, %v812
        %v833 = vmul.bf16 %v689, %v819
        %v834 = vmul.bf16 %v696, %v826
        %v837 = vpack.i.b16 %v828, %v827
        %v839 = vshrl.u32 %v827, 16
        %v840 = vshrl.u32 %v828, 16
        %v841 = vpack.i.b16 %v840, %v839
        %v845 = vpack.i.b16 %v830, %v829
        %v847 = vshrl.u32 %v829, 16
        %v848 = vshrl.u32 %v830, 16
        %v849 = vpack.i.b16 %v848, %v847
        %v853 = vpack.i.b16 %v832, %v831
        %v855 = vshrl.u32 %v831, 16
        %v856 = vshrl.u32 %v832, 16
        %v857 = vpack.i.b16 %v856, %v855
        %v861 = vpack.i.b16 %v834, %v833
        %v863 = vshrl.u32 %v833, 16
        %v864 = vshrl.u32 %v834, 16
        %v865 = vpack.i.b16 %v864, %v863
        %v867 = vcombine.low %v837, %v853
        %v868 = vcombine.high %v837, %v853
        %v870 = vunpack.c.l.s4 1983009808
        %v871 = vunpack.c.0.s8 %v870
        %v872 = vlaneseq
        %v873 = vshrl.u32 %v872, 7
        %v874 = vsub.s32 %v871, %v873
        %v875 = vrot.slane %v867, %v874
        %v877 = vunpack.c.l.s4 1983009808
        %v878 = vunpack.c.0.s8 %v877
        %v879 = vlaneseq
        %v880 = vshrl.u32 %v879, 7
        %v881 = vsub.s32 %v878, %v880
        %v882 = vrot.slane %v868, %v881
        %v883 = vcombine.low %v845, %v861
        %v884 = vcombine.high %v845, %v861
        %v886 = vunpack.c.l.s4 1983009808
        %v887 = vunpack.c.0.s8 %v886
        %v888 = vlaneseq
        %v889 = vshrl.u32 %v888, 7
        %v890 = vsub.s32 %v887, %v889
        %v891 = vrot.slane %v883, %v890
        %v893 = vunpack.c.l.s4 1983009808
        %v894 = vunpack.c.0.s8 %v893
        %v895 = vlaneseq
        %v896 = vshrl.u32 %v895, 7
        %v897 = vsub.s32 %v894, %v896
        %v898 = vrot.slane %v884, %v897
        %v899 = vcombine.low %v875, %v891
        %v900 = vcombine.high %v875, %v891
        %v902 = vunpack.c.l.s4 1934713408
        %v903 = vunpack.c.0.s8 %v902
        %v904 = vlaneseq
        %v905 = vshrl.u32 %v904, 7
        %v906 = vsub.s32 %v903, %v905
        %v907 = vrot.slane %v899, %v906
        %v909 = vunpack.c.l.s4 1934713408
        %v910 = vunpack.c.0.s8 %v909
        %v911 = vlaneseq
        %v912 = vshrl.u32 %v911, 7
        %v913 = vsub.s32 %v910, %v912
        %v914 = vrot.slane %v900, %v913
        %v915 = vcombine.low %v882, %v898
        %v916 = vcombine.high %v882, %v898
        %v918 = vunpack.c.l.s4 1934713408
        %v919 = vunpack.c.0.s8 %v918
        %v920 = vlaneseq
        %v921 = vshrl.u32 %v920, 7
        %v922 = vsub.s32 %v919, %v921
        %v923 = vrot.slane %v915, %v922
        %v925 = vunpack.c.l.s4 1934713408
        %v926 = vunpack.c.0.s8 %v925
        %v927 = vlaneseq
        %v928 = vshrl.u32 %v927, 7
        %v929 = vsub.s32 %v926, %v928
        %v930 = vrot.slane %v916, %v929
        %v931 = vcombine.high %v907, 0
        %v932 = vcombine.high %v914, 0
        %v933 = vcombine.high %v923, 0
        %v934 = vcombine.high %v930, 0
        %v935 = vcombine.low %v841, %v857
        %v936 = vcombine.high %v841, %v857
        %v938 = vunpack.c.l.s4 1983009808
        %v939 = vunpack.c.0.s8 %v938
        %v940 = vlaneseq
        %v941 = vshrl.u32 %v940, 7
        %v942 = vsub.s32 %v939, %v941
        %v943 = vrot.slane %v935, %v942
        %v945 = vunpack.c.l.s4 1983009808
        %v946 = vunpack.c.0.s8 %v945
        %v947 = vlaneseq
        %v948 = vshrl.u32 %v947, 7
        %v949 = vsub.s32 %v946, %v948
        %v950 = vrot.slane %v936, %v949
        %v951 = vcombine.low %v849, %v865
        %v952 = vcombine.high %v849, %v865
        %v954 = vunpack.c.l.s4 1983009808
        %v955 = vunpack.c.0.s8 %v954
        %v956 = vlaneseq
        %v957 = vshrl.u32 %v956, 7
        %v958 = vsub.s32 %v955, %v957
        %v959 = vrot.slane %v951, %v958
        %v961 = vunpack.c.l.s4 1983009808
        %v962 = vunpack.c.0.s8 %v961
        %v963 = vlaneseq
        %v964 = vshrl.u32 %v963, 7
        %v965 = vsub.s32 %v962, %v964
        %v966 = vrot.slane %v952, %v965
        %v967 = vcombine.low %v943, %v959
        %v968 = vcombine.high %v943, %v959
        %v970 = vunpack.c.l.s4 1934713408
        %v971 = vunpack.c.0.s8 %v970
        %v972 = vlaneseq
        %v973 = vshrl.u32 %v972, 7
        %v974 = vsub.s32 %v971, %v973
        %v975 = vrot.slane %v967, %v974
        %v977 = vunpack.c.l.s4 1934713408
        %v978 = vunpack.c.0.s8 %v977
        %v979 = vlaneseq
        %v980 = vshrl.u32 %v979, 7
        %v981 = vsub.s32 %v978, %v980
        %v982 = vrot.slane %v968, %v981
        %v983 = vcombine.low %v950, %v966
        %v984 = vcombine.high %v950, %v966
        %v986 = vunpack.c.l.s4 1934713408
        %v987 = vunpack.c.0.s8 %v986
        %v988 = vlaneseq
        %v989 = vshrl.u32 %v988, 7
        %v990 = vsub.s32 %v987, %v989
        %v991 = vrot.slane %v983, %v990
        %v993 = vunpack.c.l.s4 1934713408
        %v994 = vunpack.c.0.s8 %v993
        %v995 = vlaneseq
        %v996 = vshrl.u32 %v995, 7
        %v997 = vsub.s32 %v994, %v996
        %v998 = vrot.slane %v984, %v997
        %v999 = vcombine.high %v975, 0
        %v1000 = vcombine.high %v982, 0
        %v1001 = vcombine.high %v991, 0
        %v1002 = vcombine.high %v998, 0
        %1004 = vrot.lane.b32.xlu0 %v975, 16
        %v1005 = vpop.permute.xlu0 %1004
        %1007 = vrot.lane.b32.xlu0 %v931, 32
        %v1008 = vpop.permute.xlu0 %1007
        %1010 = vrot.lane.b32.xlu0 %v999, 48
        %v1011 = vpop.permute.xlu0 %1010
        %1013 = vrot.lane.b32.xlu0 %v914, 64
        %v1014 = vpop.permute.xlu0 %1013
        %1016 = vrot.lane.b32.xlu0 %v982, 80
        %v1017 = vpop.permute.xlu0 %1016
        %1019 = vrot.lane.b32.xlu0 %v932, 96
        %v1020 = vpop.permute.xlu0 %1019
        %1022 = vrot.lane.b32.xlu0 %v1000, 112
        %v1023 = vpop.permute.xlu0 %1022
        %1025 = vrot.lane.b32.xlu0 %v991, 16
        %v1026 = vpop.permute.xlu0 %1025
        %1028 = vrot.lane.b32.xlu0 %v933, 32
        %v1029 = vpop.permute.xlu0 %1028
        %1031 = vrot.lane.b32.xlu0 %v1001, 48
        %v1032 = vpop.permute.xlu0 %1031
        %1034 = vrot.lane.b32.xlu0 %v930, 64
        %v1035 = vpop.permute.xlu0 %1034
        %1037 = vrot.lane.b32.xlu0 %v998, 80
        %v1038 = vpop.permute.xlu0 %1037
        %1040 = vrot.lane.b32.xlu0 %v934, 96
        %v1041 = vpop.permute.xlu0 %1040
        %1043 = vrot.lane.b32.xlu0 %v1002, 112
        %v1044 = vpop.permute.xlu0 %1043
        %vm1045 = vcmask 130048
        %v1048 = vsel %vm1045, %v907, %v1005
        %vm1049 = vcmask 261120
        %v1051 = vsel %vm1049, %v1048, %v1008
        %vm1052 = vcmask 392192
        %v1054 = vsel %vm1052, %v1051, %v1011
        %vm1055 = vcmask 523264
        %v1057 = vsel %vm1055, %v1054, %v1014
        %vm1058 = vcmask 654336
        %v1060 = vsel %vm1058, %v1057, %v1017
        %vm1061 = vcmask 785408
        %v1063 = vsel %vm1061, %v1060, %v1020
        %vm1064 = vcmask 916480
        %v1066 = vsel %vm1064, %v1063, %v1023
        %v1070 = vsel %vm1045, %v923, %v1026
        %v1072 = vsel %vm1049, %v1070, %v1029
        %v1074 = vsel %vm1052, %v1072, %v1032
        %v1076 = vsel %vm1055, %v1074, %v1035
        %v1078 = vsel %vm1058, %v1076, %v1038
        %v1080 = vsel %vm1061, %v1078, %v1041
        %v1082 = vsel %vm1064, %v1080, %v1044
        %v1084 = vld [vmem:[%s575] sm:$0xf]
        %v1085 = vld [vmem:[%s575 + $0x4] sm:$0xf]
        %v1086 = vld [vmem:[%s575 + $0x8] sm:$0xf]
        %v1087 = vld [vmem:[%s575 + $0xc] sm:$0xf]
        %v1088 = vld [vmem:[%s575 + $0x10] sm:$0xf]
        %v1089 = vld [vmem:[%s575 + $0x14] sm:$0xf]
        %v1090 = vld [vmem:[%s575 + $0x18] sm:$0xf]
        %v1091 = vld [vmem:[%s575 + $0x1c] sm:$0xf]
        %v1092 = vld [vmem:[%s575 + $0x20] sm:$0xf]
        %v1093 = vld [vmem:[%s575 + $0x24] sm:$0xf]
        %v1094 = vld [vmem:[%s575 + $0x28] sm:$0xf]
        %v1095 = vld [vmem:[%s575 + $0x2c] sm:$0xf]
        %v1096 = vld [vmem:[%s575 + $0x30] sm:$0xf]
        %v1097 = vld [vmem:[%s575 + $0x34] sm:$0xf]
        %v1098 = vld [vmem:[%s575 + $0x38] sm:$0xf]
        %v1099 = vld [vmem:[%s575 + $0x3c] sm:$0xf]
        %v1100 = vld [vmem:[%s575 + $0x40] sm:$0xf]
        %v1101 = vld [vmem:[%s575 + $0x44] sm:$0xf]
        %v1102 = vld [vmem:[%s575 + $0x48] sm:$0xf]
        %v1103 = vld [vmem:[%s575 + $0x4c] sm:$0xf]
        %v1104 = vld [vmem:[%s575 + $0x50] sm:$0xf]
        %v1105 = vld [vmem:[%s575 + $0x54] sm:$0xf]
        %v1106 = vld [vmem:[%s575 + $0x58] sm:$0xf]
        %v1107 = vld [vmem:[%s575 + $0x5c] sm:$0xf]
        %v1108 = vld [vmem:[%s575 + $0x60] sm:$0xf]
        %v1109 = vld [vmem:[%s575 + $0x64] sm:$0xf]
        %v1110 = vld [vmem:[%s575 + $0x68] sm:$0xf]
        %v1111 = vld [vmem:[%s575 + $0x6c] sm:$0xf]
        %v1112 = vld [vmem:[%s575 + $0x70] sm:$0xf]
        %v1113 = vld [vmem:[%s575 + $0x74] sm:$0xf]
        %v1114 = vld [vmem:[%s575 + $0x78] sm:$0xf]
        %v1115 = vld [vmem:[%s575 + $0x7c] sm:$0xf]
        %1116 = vset.pattern.permute.xlu0 2
        %1117 = vperm.xlu0 %1116, %v613
        %v1118 = vpop.permute.xlu0 %1117
        %v1120 = vsub.f32 %v616, %v1118
        %v1121 = vand.u32 2147483647, %v1120
        %v1122 = vsub.f32 1.0, %v1121
        %v1123 = vmax.f32 %v1122, 0.0
        %1124 = vset.pattern.permute.xlu0 3
        %1125 = vperm.xlu0 %1124, %v613
        %v1126 = vpop.permute.xlu0 %1125
        %v1128 = vsub.f32 %v616, %v1126
        %v1129 = vand.u32 2147483647, %v1128
        %v1130 = vsub.f32 1.0, %v1129
        %v1131 = vmax.f32 %v1130, 0.0
        %v1132 = vpack.c.bf16 %v1123, %v1123
        %v1134 = vpack.i.b16 %v1132, %v1132
        %v1136 = vlaneseq
        %v1137 = vshrl.u32 %v1136, 7
        %v1138 = vsub.s32 0, %v1137
        %v1139 = vrot.slane %v1134, %v1138
        %1141 = vbcast.lane.c.b16.xlu0 %v1139, 256
        %v1142 = vpop.permute.xlu0 %1141
        %v1143 = vshrl.u32 %v1132, 16
        %v1144 = vpack.i.b16 %v1143, %v1143
        %v1146 = vlaneseq
        %v1147 = vshrl.u32 %v1146, 7
        %v1148 = vsub.s32 0, %v1147
        %v1149 = vrot.slane %v1144, %v1148
        %1151 = vbcast.lane.c.b16.xlu0 %v1149, 256
        %v1152 = vpop.permute.xlu0 %1151
        %v1153 = vlaneseq
        %v1154 = vshrl.u32 %v1153, 7
        %v1155 = vsub.s32 1, %v1154
        %v1156 = vrot.slane %v1134, %v1155
        %1158 = vbcast.lane.c.b16.xlu0 %v1156, 256
        %v1159 = vpop.permute.xlu0 %1158
        %v1160 = vlaneseq
        %v1161 = vshrl.u32 %v1160, 7
        %v1162 = vsub.s32 1, %v1161
        %v1163 = vrot.slane %v1144, %v1162
        %1165 = vbcast.lane.c.b16.xlu0 %v1163, 256
        %v1166 = vpop.permute.xlu0 %1165
        %v1167 = vlaneseq
        %v1168 = vshrl.u32 %v1167, 7
        %v1169 = vsub.s32 2, %v1168
        %v1170 = vrot.slane %v1134, %v1169
        %1172 = vbcast.lane.c.b16.xlu0 %v1170, 256
        %v1173 = vpop.permute.xlu0 %1172
        %v1174 = vlaneseq
        %v1175 = vshrl.u32 %v1174, 7
        %v1176 = vsub.s32 2, %v1175
        %v1177 = vrot.slane %v1144, %v1176
        %1179 = vbcast.lane.c.b16.xlu0 %v1177, 256
        %v1180 = vpop.permute.xlu0 %1179
        %v1181 = vlaneseq
        %v1182 = vshrl.u32 %v1181, 7
        %v1183 = vsub.s32 3, %v1182
        %v1184 = vrot.slane %v1134, %v1183
        %1186 = vbcast.lane.c.b16.xlu0 %v1184, 256
        %v1187 = vpop.permute.xlu0 %1186
        %v1188 = vlaneseq
        %v1189 = vshrl.u32 %v1188, 7
        %v1190 = vsub.s32 3, %v1189
        %v1191 = vrot.slane %v1144, %v1190
        %1193 = vbcast.lane.c.b16.xlu0 %v1191, 256
        %v1194 = vpop.permute.xlu0 %1193
        %v1195 = vpack.c.bf16 %v1131, %v1131
        %v1198 = vunpack.c.l.s4 1966171168
        %v1199 = vunpack.c.0.s8 %v1198
        %v1200 = vlaneseq
        %v1201 = vshrl.u32 %v1200, 7
        %v1202 = vsub.s32 %v1199, %v1201
        %v1203 = vrot.slane %v1195, %v1202
        %v1204 = vcombine.high %v1203, %v1203
        %v1206 = vunpack.c.l.s4 1966171168
        %v1207 = vunpack.c.0.s8 %v1206
        %v1208 = vlaneseq
        %v1209 = vshrl.u32 %v1208, 7
        %v1210 = vsub.s32 %v1207, %v1209
        %v1211 = vrot.slane %v1203, %v1210
        %v1213 = vunpack.c.l.s4 1966171168
        %v1214 = vunpack.c.0.s8 %v1213
        %v1215 = vlaneseq
        %v1216 = vshrl.u32 %v1215, 7
        %v1217 = vsub.s32 %v1214, %v1216
        %v1218 = vrot.slane %v1204, %v1217
        %v1219 = vcombine.high %v1211, %v1211
        %v1220 = vcombine.high %v1218, %v1218
        %v1221 = vunpack.i.l.s16 %v1211
        %v1222 = vunpack.i.h.s16 %v1211
        %v1223 = vunpack.i.l.s16 %v1218
        %v1224 = vunpack.i.h.s16 %v1218
        %v1225 = vunpack.i.l.s16 %v1219
        %v1226 = vunpack.i.h.s16 %v1219
        %v1227 = vunpack.i.l.s16 %v1220
        %v1228 = vunpack.i.h.s16 %v1220
        %v1229 = vpack.i.b16 %v1221, %v1221
        %v1230 = vpack.i.b16 %v1222, %v1222
        %v1231 = vpack.i.b16 %v1223, %v1223
        %v1232 = vpack.i.b16 %v1224, %v1224
        %v1233 = vpack.i.b16 %v1225, %v1225
        %v1234 = vpack.i.b16 %v1226, %v1226
        %v1235 = vpack.i.b16 %v1227, %v1227
        %v1236 = vpack.i.b16 %v1228, %v1228
        %v1237 = vlaneseq
        %v1238 = vshrl.u32 %v1237, 7
        %v1239 = vsub.s32 0, %v1238
        %v1240 = vrot.slane %v1229, %v1239
        %v1241 = vlaneseq
        %v1242 = vshrl.u32 %v1241, 7
        %v1243 = vsub.s32 0, %v1242
        %v1244 = vrot.slane %v1230, %v1243
        %v1245 = vlaneseq
        %v1246 = vshrl.u32 %v1245, 7
        %v1247 = vsub.s32 0, %v1246
        %v1248 = vrot.slane %v1231, %v1247
        %v1249 = vlaneseq
        %v1250 = vshrl.u32 %v1249, 7
        %v1251 = vsub.s32 0, %v1250
        %v1252 = vrot.slane %v1232, %v1251
        %v1253 = vlaneseq
        %v1254 = vshrl.u32 %v1253, 7
        %v1255 = vsub.s32 0, %v1254
        %v1256 = vrot.slane %v1233, %v1255
        %v1257 = vlaneseq
        %v1258 = vshrl.u32 %v1257, 7
        %v1259 = vsub.s32 0, %v1258
        %v1260 = vrot.slane %v1234, %v1259
        %v1261 = vlaneseq
        %v1262 = vshrl.u32 %v1261, 7
        %v1263 = vsub.s32 0, %v1262
        %v1264 = vrot.slane %v1235, %v1263
        %v1265 = vlaneseq
        %v1266 = vshrl.u32 %v1265, 7
        %v1267 = vsub.s32 0, %v1266
        %v1268 = vrot.slane %v1236, %v1267
        %v1270 = vpack.i.b16 %v1240, %v1240
        %v1272 = vlaneseq
        %v1273 = vshrl.u32 %v1272, 7
        %v1274 = vsub.s32 0, %v1273
        %v1275 = vrot.slane %v1270, %v1274
        %v1277 = vpack.i.b16 %v1244, %v1244
        %v1279 = vlaneseq
        %v1280 = vshrl.u32 %v1279, 7
        %v1281 = vsub.s32 0, %v1280
        %v1282 = vrot.slane %v1277, %v1281
        %v1284 = vpack.i.b16 %v1248, %v1248
        %v1286 = vlaneseq
        %v1287 = vshrl.u32 %v1286, 7
        %v1288 = vsub.s32 0, %v1287
        %v1289 = vrot.slane %v1284, %v1288
        %v1291 = vpack.i.b16 %v1252, %v1252
        %v1293 = vlaneseq
        %v1294 = vshrl.u32 %v1293, 7
        %v1295 = vsub.s32 0, %v1294
        %v1296 = vrot.slane %v1291, %v1295
        %v1298 = vpack.i.b16 %v1256, %v1256
        %v1300 = vlaneseq
        %v1301 = vshrl.u32 %v1300, 7
        %v1302 = vsub.s32 0, %v1301
        %v1303 = vrot.slane %v1298, %v1302
        %v1305 = vpack.i.b16 %v1260, %v1260
        %v1307 = vlaneseq
        %v1308 = vshrl.u32 %v1307, 7
        %v1309 = vsub.s32 0, %v1308
        %v1310 = vrot.slane %v1305, %v1309
        %v1312 = vpack.i.b16 %v1264, %v1264
        %v1314 = vlaneseq
        %v1315 = vshrl.u32 %v1314, 7
        %v1316 = vsub.s32 0, %v1315
        %v1317 = vrot.slane %v1312, %v1316
        %v1319 = vpack.i.b16 %v1268, %v1268
        %v1321 = vlaneseq
        %v1322 = vshrl.u32 %v1321, 7
        %v1323 = vsub.s32 0, %v1322
        %v1324 = vrot.slane %v1319, %v1323
        %v1325 = vmul.bf16 %v1142, %v1275
        %v1326 = vmul.bf16 %v1152, %v1282
        %v1327 = vmul.bf16 %v1159, %v1289
        %v1328 = vmul.bf16 %v1166, %v1296
        %v1329 = vmul.bf16 %v1173, %v1303
        %v1330 = vmul.bf16 %v1180, %v1310
        %v1331 = vmul.bf16 %v1187, %v1317
        %v1332 = vmul.bf16 %v1194, %v1324
        %v1335 = vpack.i.b16 %v1326, %v1325
        %v1337 = vshrl.u32 %v1325, 16
        %v1338 = vshrl.u32 %v1326, 16
        %v1339 = vpack.i.b16 %v1338, %v1337
        %v1343 = vpack.i.b16 %v1328, %v1327
        %v1345 = vshrl.u32 %v1327, 16
        %v1346 = vshrl.u32 %v1328, 16
        %v1347 = vpack.i.b16 %v1346, %v1345
        %v1351 = vpack.i.b16 %v1330, %v1329
        %v1353 = vshrl.u32 %v1329, 16
        %v1354 = vshrl.u32 %v1330, 16
        %v1355 = vpack.i.b16 %v1354, %v1353
        %v1359 = vpack.i.b16 %v1332, %v1331
        %v1361 = vshrl.u32 %v1331, 16
        %v1362 = vshrl.u32 %v1332, 16
        %v1363 = vpack.i.b16 %v1362, %v1361
        %v1365 = vcombine.low %v1335, %v1351
        %v1366 = vcombine.high %v1335, %v1351
        %v1368 = vunpack.c.l.s4 1983009808
        %v1369 = vunpack.c.0.s8 %v1368
        %v1370 = vlaneseq
        %v1371 = vshrl.u32 %v1370, 7
        %v1372 = vsub.s32 %v1369, %v1371
        %v1373 = vrot.slane %v1365, %v1372
        %v1375 = vunpack.c.l.s4 1983009808
        %v1376 = vunpack.c.0.s8 %v1375
        %v1377 = vlaneseq
        %v1378 = vshrl.u32 %v1377, 7
        %v1379 = vsub.s32 %v1376, %v1378
        %v1380 = vrot.slane %v1366, %v1379
        %v1381 = vcombine.low %v1343, %v1359
        %v1382 = vcombine.high %v1343, %v1359
        %v1384 = vunpack.c.l.s4 1983009808
        %v1385 = vunpack.c.0.s8 %v1384
        %v1386 = vlaneseq
        %v1387 = vshrl.u32 %v1386, 7
        %v1388 = vsub.s32 %v1385, %v1387
        %v1389 = vrot.slane %v1381, %v1388
        %v1391 = vunpack.c.l.s4 1983009808
        %v1392 = vunpack.c.0.s8 %v1391
        %v1393 = vlaneseq
        %v1394 = vshrl.u32 %v1393, 7
        %v1395 = vsub.s32 %v1392, %v1394
        %v1396 = vrot.slane %v1382, %v1395
        %v1397 = vcombine.low %v1373, %v1389
        %v1398 = vcombine.high %v1373, %v1389
        %v1400 = vunpack.c.l.s4 1934713408
        %v1401 = vunpack.c.0.s8 %v1400
        %v1402 = vlaneseq
        %v1403 = vshrl.u32 %v1402, 7
        %v1404 = vsub.s32 %v1401, %v1403
        %v1405 = vrot.slane %v1397, %v1404
        %v1407 = vunpack.c.l.s4 1934713408
        %v1408 = vunpack.c.0.s8 %v1407
        %v1409 = vlaneseq
        %v1410 = vshrl.u32 %v1409, 7
        %v1411 = vsub.s32 %v1408, %v1410
        %v1412 = vrot.slane %v1398, %v1411
        %v1413 = vcombine.low %v1380, %v1396
        %v1414 = vcombine.high %v1380, %v1396
        %v1416 = vunpack.c.l.s4 1934713408
        %v1417 = vunpack.c.0.s8 %v1416
        %v1418 = vlaneseq
        %v1419 = vshrl.u32 %v1418, 7
        %v1420 = vsub.s32 %v1417, %v1419
        %v1421 = vrot.slane %v1413, %v1420
        %v1423 = vunpack.c.l.s4 1934713408
        %v1424 = vunpack.c.0.s8 %v1423
        %v1425 = vlaneseq
        %v1426 = vshrl.u32 %v1425, 7
        %v1427 = vsub.s32 %v1424, %v1426
        %v1428 = vrot.slane %v1414, %v1427
        %v1429 = vcombine.high %v1405, 0
        %v1430 = vcombine.high %v1412, 0
        %v1431 = vcombine.high %v1421, 0
        %v1432 = vcombine.high %v1428, 0
        %v1433 = vcombine.low %v1339, %v1355
        %v1434 = vcombine.high %v1339, %v1355
        %v1436 = vunpack.c.l.s4 1983009808
        %v1437 = vunpack.c.0.s8 %v1436
        %v1438 = vlaneseq
        %v1439 = vshrl.u32 %v1438, 7
        %v1440 = vsub.s32 %v1437, %v1439
        %v1441 = vrot.slane %v1433, %v1440
        %v1443 = vunpack.c.l.s4 1983009808
        %v1444 = vunpack.c.0.s8 %v1443
        %v1445 = vlaneseq
        %v1446 = vshrl.u32 %v1445, 7
        %v1447 = vsub.s32 %v1444, %v1446
        %v1448 = vrot.slane %v1434, %v1447
        %v1449 = vcombine.low %v1347, %v1363
        %v1450 = vcombine.high %v1347, %v1363
        %v1452 = vunpack.c.l.s4 1983009808
        %v1453 = vunpack.c.0.s8 %v1452
        %v1454 = vlaneseq
        %v1455 = vshrl.u32 %v1454, 7
        %v1456 = vsub.s32 %v1453, %v1455
        %v1457 = vrot.slane %v1449, %v1456
        %v1459 = vunpack.c.l.s4 1983009808
        %v1460 = vunpack.c.0.s8 %v1459
        %v1461 = vlaneseq
        %v1462 = vshrl.u32 %v1461, 7
        %v1463 = vsub.s32 %v1460, %v1462
        %v1464 = vrot.slane %v1450, %v1463
        %v1465 = vcombine.low %v1441, %v1457
        %v1466 = vcombine.high %v1441, %v1457
        %v1468 = vunpack.c.l.s4 1934713408
        %v1469 = vunpack.c.0.s8 %v1468
        %v1470 = vlaneseq
        %v1471 = vshrl.u32 %v1470, 7
        %v1472 = vsub.s32 %v1469, %v1471
        %v1473 = vrot.slane %v1465, %v1472
        %v1475 = vunpack.c.l.s4 1934713408
        %v1476 = vunpack.c.0.s8 %v1475
        %v1477 = vlaneseq
        %v1478 = vshrl.u32 %v1477, 7
        %v1479 = vsub.s32 %v1476, %v1478
        %v1480 = vrot.slane %v1466, %v1479
        %v1481 = vcombine.low %v1448, %v1464
        %v1482 = vcombine.high %v1448, %v1464
        %v1484 = vunpack.c.l.s4 1934713408
        %v1485 = vunpack.c.0.s8 %v1484
        %v1486 = vlaneseq
        %v1487 = vshrl.u32 %v1486, 7
        %v1488 = vsub.s32 %v1485, %v1487
        %v1489 = vrot.slane %v1481, %v1488
        %v1491 = vunpack.c.l.s4 1934713408
        %v1492 = vunpack.c.0.s8 %v1491
        %v1493 = vlaneseq
        %v1494 = vshrl.u32 %v1493, 7
        %v1495 = vsub.s32 %v1492, %v1494
        %v1496 = vrot.slane %v1482, %v1495
        %v1497 = vcombine.high %v1473, 0
        %v1498 = vcombine.high %v1480, 0
        %v1499 = vcombine.high %v1489, 0
        %v1500 = vcombine.high %v1496, 0
        %1502 = vrot.lane.b32.xlu0 %v1473, 16
        %v1503 = vpop.permute.xlu0 %1502
        %1505 = vrot.lane.b32.xlu0 %v1429, 32
        %v1506 = vpop.permute.xlu0 %1505
        %1508 = vrot.lane.b32.xlu0 %v1497, 48
        %v1509 = vpop.permute.xlu0 %1508
        %1511 = vrot.lane.b32.xlu0 %v1412, 64
        %v1512 = vpop.permute.xlu0 %1511
        %1514 = vrot.lane.b32.xlu0 %v1480, 80
        %v1515 = vpop.permute.xlu0 %1514
        %1517 = vrot.lane.b32.xlu0 %v1430, 96
        %v1518 = vpop.permute.xlu0 %1517
        %1520 = vrot.lane.b32.xlu0 %v1498, 112
        %v1521 = vpop.permute.xlu0 %1520
        %1523 = vrot.lane.b32.xlu0 %v1489, 16
        %v1524 = vpop.permute.xlu0 %1523
        %1526 = vrot.lane.b32.xlu0 %v1431, 32
        %v1527 = vpop.permute.xlu0 %1526
        %1529 = vrot.lane.b32.xlu0 %v1499, 48
        %v1530 = vpop.permute.xlu0 %1529
        %1532 = vrot.lane.b32.xlu0 %v1428, 64
        %v1533 = vpop.permute.xlu0 %1532
        %1535 = vrot.lane.b32.xlu0 %v1496, 80
        %v1536 = vpop.permute.xlu0 %1535
        %1538 = vrot.lane.b32.xlu0 %v1432, 96
        %v1539 = vpop.permute.xlu0 %1538
        %1541 = vrot.lane.b32.xlu0 %v1500, 112
        %v1542 = vpop.permute.xlu0 %1541
        %v1545 = vsel %vm1045, %v1405, %v1503
        %v1547 = vsel %vm1049, %v1545, %v1506
        %v1549 = vsel %vm1052, %v1547, %v1509
        %v1551 = vsel %vm1055, %v1549, %v1512
        %v1553 = vsel %vm1058, %v1551, %v1515
        %v1555 = vsel %vm1061, %v1553, %v1518
        %v1557 = vsel %vm1064, %v1555, %v1521
        %v1561 = vsel %vm1045, %v1421, %v1524
        %v1563 = vsel %vm1049, %v1561, %v1527
        %v1565 = vsel %vm1052, %v1563, %v1530
        %v1567 = vsel %vm1055, %v1565, %v1533
        %v1569 = vsel %vm1058, %v1567, %v1536
        %v1571 = vsel %vm1061, %v1569, %v1539
        %v1573 = vsel %vm1064, %v1571, %v1542
        %s1575 = scalar_lea.vmem %s575, 128
        %v1576 = vld [vmem:[%s1575] sm:$0xf]
        %v1577 = vld [vmem:[%s1575 + $0x4] sm:$0xf]
        %v1578 = vld [vmem:[%s1575 + $0x8] sm:$0xf]
        %v1579 = vld [vmem:[%s1575 + $0xc] sm:$0xf]
        %v1580 = vld [vmem:[%s1575 + $0x10] sm:$0xf]
        %v1581 = vld [vmem:[%s1575 + $0x14] sm:$0xf]
        %v1582 = vld [vmem:[%s1575 + $0x18] sm:$0xf]
        %v1583 = vld [vmem:[%s1575 + $0x1c] sm:$0xf]
        %v1584 = vld [vmem:[%s1575 + $0x20] sm:$0xf]
        %v1585 = vld [vmem:[%s1575 + $0x24] sm:$0xf]
        %v1586 = vld [vmem:[%s1575 + $0x28] sm:$0xf]
        %v1587 = vld [vmem:[%s1575 + $0x2c] sm:$0xf]
        %v1588 = vld [vmem:[%s1575 + $0x30] sm:$0xf]
        %v1589 = vld [vmem:[%s1575 + $0x34] sm:$0xf]
        %v1590 = vld [vmem:[%s1575 + $0x38] sm:$0xf]
        %v1591 = vld [vmem:[%s1575 + $0x3c] sm:$0xf]
        %v1592 = vld [vmem:[%s1575 + $0x40] sm:$0xf]
        %v1593 = vld [vmem:[%s1575 + $0x44] sm:$0xf]
        %v1594 = vld [vmem:[%s1575 + $0x48] sm:$0xf]
        %v1595 = vld [vmem:[%s1575 + $0x4c] sm:$0xf]
        %v1596 = vld [vmem:[%s1575 + $0x50] sm:$0xf]
        %v1597 = vld [vmem:[%s1575 + $0x54] sm:$0xf]
        %v1598 = vld [vmem:[%s1575 + $0x58] sm:$0xf]
        %v1599 = vld [vmem:[%s1575 + $0x5c] sm:$0xf]
        %v1600 = vld [vmem:[%s1575 + $0x60] sm:$0xf]
        %v1601 = vld [vmem:[%s1575 + $0x64] sm:$0xf]
        %v1602 = vld [vmem:[%s1575 + $0x68] sm:$0xf]
        %v1603 = vld [vmem:[%s1575 + $0x6c] sm:$0xf]
        %v1604 = vld [vmem:[%s1575 + $0x70] sm:$0xf]
        %v1605 = vld [vmem:[%s1575 + $0x74] sm:$0xf]
        %v1606 = vld [vmem:[%s1575 + $0x78] sm:$0xf]
        %v1607 = vld [vmem:[%s1575 + $0x7c] sm:$0xf]
        %v1640 = vunpack.c.l.b16 %v1576
        %v1641 = vunpack.c.l.b16 %v1577
        %v1642 = vunpack.c.l.b16 %v1578
        %v1643 = vunpack.c.l.b16 %v1579
        %v1644 = vunpack.c.l.b16 %v1580
        %v1645 = vunpack.c.l.b16 %v1581
        %v1646 = vunpack.c.l.b16 %v1582
        %v1647 = vunpack.c.l.b16 %v1583
        %v1648 = vunpack.c.l.b16 %v1584
        %v1649 = vunpack.c.l.b16 %v1585
        %v1650 = vunpack.c.l.b16 %v1586
        %v1651 = vunpack.c.l.b16 %v1587
        %v1652 = vunpack.c.l.b16 %v1588
        %v1653 = vunpack.c.l.b16 %v1589
        %v1654 = vunpack.c.l.b16 %v1590
        %v1655 = vunpack.c.l.b16 %v1591
        %v1656 = vunpack.c.l.b16 %v1592
        %v1657 = vunpack.c.l.b16 %v1593
        %v1658 = vunpack.c.l.b16 %v1594
        %v1659 = vunpack.c.l.b16 %v1595
        %v1660 = vunpack.c.l.b16 %v1596
        %v1661 = vunpack.c.l.b16 %v1597
        %v1662 = vunpack.c.l.b16 %v1598
        %v1663 = vunpack.c.l.b16 %v1599
        %v1664 = vunpack.c.l.b16 %v1600
        %v1665 = vunpack.c.l.b16 %v1601
        %v1666 = vunpack.c.l.b16 %v1602
        %v1667 = vunpack.c.l.b16 %v1603
        %v1668 = vunpack.c.l.b16 %v1604
        %v1669 = vunpack.c.l.b16 %v1605
        %v1670 = vunpack.c.l.b16 %v1606
        %v1671 = vunpack.c.l.b16 %v1607
        %v1672 = vpack.c.b16 %v1641, %v1640
        %v1673 = vpack.c.b16 %v1643, %v1642
        %v1674 = vpack.c.b16 %v1645, %v1644
        %v1675 = vpack.c.b16 %v1647, %v1646
        %v1676 = vpack.c.b16 %v1649, %v1648
        %v1677 = vpack.c.b16 %v1651, %v1650
        %v1678 = vpack.c.b16 %v1653, %v1652
        %v1679 = vpack.c.b16 %v1655, %v1654
        %v1680 = vpack.c.b16 %v1657, %v1656
        %v1681 = vpack.c.b16 %v1659, %v1658
        %v1682 = vpack.c.b16 %v1661, %v1660
        %v1683 = vpack.c.b16 %v1663, %v1662
        %v1684 = vpack.c.b16 %v1665, %v1664
        %v1685 = vpack.c.b16 %v1667, %v1666
        %v1686 = vpack.c.b16 %v1669, %v1668
        %v1687 = vpack.c.b16 %v1671, %v1670
        %1704 = vmatprep.subr.bf16.mxu0 0
        %1705 = vmatpush1.bf16.msra.mxu0 %v1672
        %1706 = vmatprep.subr.bf16.mxu0 0
        %1707 = vmatpush1.bf16.msra.mxu0 %v1673
        %1708 = vmatprep.subr.bf16.mxu0 0
        %1709 = vmatpush1.bf16.msra.mxu0 %v1674
        %1710 = vmatprep.subr.bf16.mxu0 0
        %1711 = vmatpush1.bf16.msra.mxu0 %v1675
        %1712 = vmatprep.subr.bf16.mxu0 0
        %1713 = vmatpush1.bf16.msra.mxu0 %v1676
        %1714 = vmatprep.subr.bf16.mxu0 0
        %1715 = vmatpush1.bf16.msra.mxu0 %v1677
        %1716 = vmatprep.subr.bf16.mxu0 0
        %1717 = vmatpush1.bf16.msra.mxu0 %v1678
        %1718 = vmatprep.subr.bf16.mxu0 0
        %1719 = vmatpush1.bf16.msra.mxu0 %v1679
        %1720 = vmatprep.subr.bf16.mxu0 0
        %1721 = vmatpush1.bf16.msra.mxu0 %v1680
        %1722 = vmatprep.subr.bf16.mxu0 0
        %1723 = vmatpush1.bf16.msra.mxu0 %v1681
        %1724 = vmatprep.subr.bf16.mxu0 0
        %1725 = vmatpush1.bf16.msra.mxu0 %v1682
        %1726 = vmatprep.subr.bf16.mxu0 0
        %1727 = vmatpush1.bf16.msra.mxu0 %v1683
        %1728 = vmatprep.subr.bf16.mxu0 0
        %1729 = vmatpush1.bf16.msra.mxu0 %v1684
        %1730 = vmatprep.subr.bf16.mxu0 0
        %1731 = vmatpush1.bf16.msra.mxu0 %v1685
        %1732 = vmatprep.subr.bf16.mxu0 0
        %1733 = vmatpush1.bf16.msra.mxu0 %v1686
        %1734 = vmatprep.subr.bf16.mxu0 0
        %1735 = vmatpush1.bf16.msra.mxu0 %v1687
        %1736 = vmatprep.mubr.bf16.mxu0 %v1573
        %1737 = vmatmul.mubr.bf16.gmra.mrb[0].mxu0 %v1557
        %v1738 = vpop.f32.mrb[0].mxu0
        %v1739 = vadd.f32 0.0, %v1738
        %v1740 = vpop.f32.mrb[0].mxu0
        %v1741 = vpop.f32.mrb[0].mxu0
        %v1742 = vpop.f32.mrb[0].mxu0
        %1743 = vdwg.mxu0
        %v1776 = vunpack.c.l.b16 %v1084
        %v1777 = vunpack.c.l.b16 %v1085
        %v1778 = vunpack.c.l.b16 %v1086
        %v1779 = vunpack.c.l.b16 %v1087
        %v1780 = vunpack.c.l.b16 %v1088
        %v1781 = vunpack.c.l.b16 %v1089
        %v1782 = vunpack.c.l.b16 %v1090
        %v1783 = vunpack.c.l.b16 %v1091
        %v1784 = vunpack.c.l.b16 %v1092
        %v1785 = vunpack.c.l.b16 %v1093
        %v1786 = vunpack.c.l.b16 %v1094
        %v1787 = vunpack.c.l.b16 %v1095
        %v1788 = vunpack.c.l.b16 %v1096
        %v1789 = vunpack.c.l.b16 %v1097
        %v1790 = vunpack.c.l.b16 %v1098
        %v1791 = vunpack.c.l.b16 %v1099
        %v1792 = vunpack.c.l.b16 %v1100
        %v1793 = vunpack.c.l.b16 %v1101
        %v1794 = vunpack.c.l.b16 %v1102
        %v1795 = vunpack.c.l.b16 %v1103
        %v1796 = vunpack.c.l.b16 %v1104
        %v1797 = vunpack.c.l.b16 %v1105
        %v1798 = vunpack.c.l.b16 %v1106
        %v1799 = vunpack.c.l.b16 %v1107
        %v1800 = vunpack.c.l.b16 %v1108
        %v1801 = vunpack.c.l.b16 %v1109
        %v1802 = vunpack.c.l.b16 %v1110
        %v1803 = vunpack.c.l.b16 %v1111
        %v1804 = vunpack.c.l.b16 %v1112
        %v1805 = vunpack.c.l.b16 %v1113
        %v1806 = vunpack.c.l.b16 %v1114
        %v1807 = vunpack.c.l.b16 %v1115
        %v1808 = vpack.c.b16 %v1777, %v1776
        %v1809 = vpack.c.b16 %v1779, %v1778
        %v1810 = vpack.c.b16 %v1781, %v1780
        %v1811 = vpack.c.b16 %v1783, %v1782
        %v1812 = vpack.c.b16 %v1785, %v1784
        %v1813 = vpack.c.b16 %v1787, %v1786
        %v1814 = vpack.c.b16 %v1789, %v1788
        %v1815 = vpack.c.b16 %v1791, %v1790
        %v1816 = vpack.c.b16 %v1793, %v1792
        %v1817 = vpack.c.b16 %v1795, %v1794
        %v1818 = vpack.c.b16 %v1797, %v1796
        %v1819 = vpack.c.b16 %v1799, %v1798
        %v1820 = vpack.c.b16 %v1801, %v1800
        %v1821 = vpack.c.b16 %v1803, %v1802
        %v1822 = vpack.c.b16 %v1805, %v1804
        %v1823 = vpack.c.b16 %v1807, %v1806
        %1840 = vmatprep.subr.bf16.mxu0 0
        %1841 = vmatpush1.bf16.msra.mxu0 %v1808
        %1842 = vmatprep.subr.bf16.mxu0 0
        %1843 = vmatpush1.bf16.msra.mxu0 %v1809
        %1844 = vmatprep.subr.bf16.mxu0 0
        %1845 = vmatpush1.bf16.msra.mxu0 %v1810
        %1846 = vmatprep.subr.bf16.mxu0 0
        %1847 = vmatpush1.bf16.msra.mxu0 %v1811
        %1848 = vmatprep.subr.bf16.mxu0 0
        %1849 = vmatpush1.bf16.msra.mxu0 %v1812
        %1850 = vmatprep.subr.bf16.mxu0 0
        %1851 = vmatpush1.bf16.msra.mxu0 %v1813
        %1852 = vmatprep.subr.bf16.mxu0 0
        %1853 = vmatpush1.bf16.msra.mxu0 %v1814
        %1854 = vmatprep.subr.bf16.mxu0 0
        %1855 = vmatpush1.bf16.msra.mxu0 %v1815
        %1856 = vmatprep.subr.bf16.mxu0 0
        %1857 = vmatpush1.bf16.msra.mxu0 %v1816
        %1858 = vmatprep.subr.bf16.mxu0 0
        %1859 = vmatpush1.bf16.msra.mxu0 %v1817
        %1860 = vmatprep.subr.bf16.mxu0 0
        %1861 = vmatpush1.bf16.msra.mxu0 %v1818
        %1862 = vmatprep.subr.bf16.mxu0 0
        %1863 = vmatpush1.bf16.msra.mxu0 %v1819
        %1864 = vmatprep.subr.bf16.mxu0 0
        %1865 = vmatpush1.bf16.msra.mxu0 %v1820
        %1866 = vmatprep.subr.bf16.mxu0 0
        %1867 = vmatpush1.bf16.msra.mxu0 %v1821
        %1868 = vmatprep.subr.bf16.mxu0 0
        %1869 = vmatpush1.bf16.msra.mxu0 %v1822
        %1870 = vmatprep.subr.bf16.mxu0 0
        %1871 = vmatpush1.bf16.msra.mxu0 %v1823
        %1872 = vmatprep.mubr.bf16.mxu0 %v1082
        %1873 = vmatmul.mubr.bf16.gmra.mrb[0].mxu0 %v1066
        %v1874 = vpop.f32.mrb[0].mxu0
        %v1875 = vadd.f32 %v1739, %v1874
        %v1876 = vpop.f32.mrb[0].mxu0
        %v1877 = vpop.f32.mrb[0].mxu0
        %v1878 = vpop.f32.mrb[0].mxu0
        %1879 = vdwg.mxu0
        %v1880 = vld [vmem:[%s3] sm:$0x7]
        %v1881 = vlaneseq
        %v1882 = vshrl.u32 %v1881, 7
        %v1883 = vsub.s32 0, %v1882
        %v1884 = vrot.slane %v1880, %v1883
        %v1885 = vmul.f32 %v586, %v1884
        %v1886 = vlaneseq
        %v1887 = vshrl.u32 %v1886, 7
        %v1888 = vsub.s32 1, %v1887
        %v1889 = vrot.slane %v1880, %v1888
        %v1890 = vmul.f32 %v595, %v1889
        %v1891 = vadd.f32 %v1885, %v1890
        %v1892 = vlaneseq
        %v1893 = vshrl.u32 %v1892, 7
        %v1894 = vsub.s32 2, %v1893
        %v1895 = vrot.slane %v1880, %v1894
        %v1896 = vmul.f32 %v605, %v1895
        %v1897 = vadd.f32 %v1891, %v1896
        %v1898 = vld [vmem:[%s4] sm:$0x1]
        %v1900 = vlaneseq
        %v1901 = vshrl.u32 %v1900, 7
        %v1902 = vsub.s32 0, %v1901
        %v1903 = vrot.slane %v1898, %v1902
        %v1905 = vadd.f32 %v1897, %v1903
        %v1906 = vmax.f32 %v1905, 0.0
        %v1907 = vld [vmem:[%s5] sm:$0xf]
        %v1908 = vld [vmem:[%s5 + $0x4] sm:$0xf]
        %v1909 = vld [vmem:[%s5 + $0x8] sm:$0xf]
        %v1910 = vld [vmem:[%s5 + $0xc] sm:$0xf]
        %v1911 = vld [vmem:[%s5 + $0x10] sm:$0xf]
        %v1912 = vld [vmem:[%s5 + $0x14] sm:$0xf]
        %v1913 = vld [vmem:[%s5 + $0x18] sm:$0xf]
        %v1914 = vld [vmem:[%s5 + $0x1c] sm:$0xf]
        %v1915 = vpack.c.bf16 %v1906, %v1906
        %v1916 = vld [vmem:[%s6] sm:$0x1]
        %v1918 = vlaneseq
        %v1919 = vshrl.u32 %v1918, 7
        %v1920 = vsub.s32 0, %v1919
        %v1921 = vrot.slane %v1916, %v1920
        %v1931 = vunpack.c.l.b16 %v1907
        %v1932 = vunpack.c.l.b16 %v1908
        %v1933 = vunpack.c.l.b16 %v1909
        %v1934 = vunpack.c.l.b16 %v1910
        %v1935 = vunpack.c.l.b16 %v1911
        %v1936 = vunpack.c.l.b16 %v1912
        %v1937 = vunpack.c.l.b16 %v1913
        %v1938 = vunpack.c.l.b16 %v1914
        %v1939 = vpack.c.b16 %v1932, %v1931
        %v1940 = vpack.c.b16 %v1934, %v1933
        %v1941 = vpack.c.b16 %v1936, %v1935
        %v1942 = vpack.c.b16 %v1938, %v1937
        %v1948 = vsel %vm1055, %v1915, 0
        %1950 = vmatprep.subr.bf16.mxu0 0
        %1951 = vmatpush1.bf16.msra.mxu0 %v1939
        %1952 = vmatprep.subr.bf16.mxu0 0
        %1953 = vmatpush1.bf16.msra.mxu0 %v1940
        %1954 = vmatprep.subr.bf16.mxu0 0
        %1955 = vmatpush1.bf16.msra.mxu0 %v1941
        %1956 = vmatprep.subr.bf16.mxu0 0
        %1957 = vmatpush1.bf16.msra.mxu0 %v1942
        %1958 = vmatprep.subr.bf16.mxu0 0
        %1959 = vmatpush1.bf16.msra.mxu0 0
        %1960 = vmatprep.subr.bf16.mxu0 0
        %1961 = vmatpush1.bf16.msra.mxu0 0
        %1962 = vmatprep.subr.bf16.mxu0 0
        %1963 = vmatpush1.bf16.msra.mxu0 0
        %1964 = vmatprep.subr.bf16.mxu0 0
        %1965 = vmatpush1.bf16.msra.mxu0 0
        %1966 = vmatprep.subr.bf16.mxu0 0
        %1967 = vmatpush1.bf16.msra.mxu0 0
        %1968 = vmatprep.subr.bf16.mxu0 0
        %1969 = vmatpush1.bf16.msra.mxu0 0
        %1970 = vmatprep.subr.bf16.mxu0 0
        %1971 = vmatpush1.bf16.msra.mxu0 0
        %1972 = vmatprep.subr.bf16.mxu0 0
        %1973 = vmatpush1.bf16.msra.mxu0 0
        %1974 = vmatprep.subr.bf16.mxu0 0
        %1975 = vmatpush1.bf16.msra.mxu0 0
        %1976 = vmatprep.subr.bf16.mxu0 0
        %1977 = vmatpush1.bf16.msra.mxu0 0
        %1978 = vmatprep.subr.bf16.mxu0 0
        %1979 = vmatpush1.bf16.msra.mxu0 0
        %1980 = vmatprep.subr.bf16.mxu0 0
        %1981 = vmatpush1.bf16.msra.mxu0 0
        %1982 = vmatprep.mubr.bf16.mxu0 0
        %1983 = vmatmul.mubr.bf16.gmra.mrb[0].mxu0 %v1948
        %v1984 = vpop.f32.mrb[0].mxu0
        %v1985 = vadd.f32 %v1921, %v1984
        %v1986 = vpop.f32.mrb[0].mxu0
        %v1987 = vpop.f32.mrb[0].mxu0
        %v1988 = vpop.f32.mrb[0].mxu0
        %1989 = vdwg.mxu0
        %v1990 = vmax.f32 %v1985, 0.0
        %v1991 = vld [vmem:[%s7] sm:$0xf]
        %v1992 = vld [vmem:[%s7 + $0x4] sm:$0xf]
        %v1993 = vld [vmem:[%s7 + $0x8] sm:$0xf]
        %v1994 = vld [vmem:[%s7 + $0xc] sm:$0xf]
        %v1995 = vpack.c.bf16 %v1990, %v1990
        %v1996 = vld [vmem:[%s8] sm:$0x1]
        %v1998 = vlaneseq
        %v1999 = vshrl.u32 %v1998, 7
        %v2000 = vsub.s32 0, %v1999
        %v2001 = vrot.slane %v1996, %v2000
        %v2007 = vunpack.c.l.b16 %v1991
        %v2008 = vunpack.c.l.b16 %v1992
        %v2009 = vunpack.c.l.b16 %v1993
        %v2010 = vunpack.c.l.b16 %v1994
        %v2011 = vpack.c.b16 %v2008, %v2007
        %v2012 = vpack.c.b16 %v2010, %v2009
        %v2016 = vsel %vm1049, %v1995, 0
        %2018 = vmatprep.subr.bf16.mxu0 0
        %2019 = vmatpush1.bf16.msra.mxu0 %v2011
        %2020 = vmatprep.subr.bf16.mxu0 0
        %2021 = vmatpush1.bf16.msra.mxu0 %v2012
        %2022 = vmatprep.subr.bf16.mxu0 0
        %2023 = vmatpush1.bf16.msra.mxu0 0
        %2024 = vmatprep.subr.bf16.mxu0 0
        %2025 = vmatpush1.bf16.msra.mxu0 0
        %2026 = vmatprep.subr.bf16.mxu0 0
        %2027 = vmatpush1.bf16.msra.mxu0 0
        %2028 = vmatprep.subr.bf16.mxu0 0
        %2029 = vmatpush1.bf16.msra.mxu0 0
        %2030 = vmatprep.subr.bf16.mxu0 0
        %2031 = vmatpush1.bf16.msra.mxu0 0
        %2032 = vmatprep.subr.bf16.mxu0 0
        %2033 = vmatpush1.bf16.msra.mxu0 0
        %2034 = vmatprep.subr.bf16.mxu0 0
        %2035 = vmatpush1.bf16.msra.mxu0 0
        %2036 = vmatprep.subr.bf16.mxu0 0
        %2037 = vmatpush1.bf16.msra.mxu0 0
        %2038 = vmatprep.subr.bf16.mxu0 0
        %2039 = vmatpush1.bf16.msra.mxu0 0
        %2040 = vmatprep.subr.bf16.mxu0 0
        %2041 = vmatpush1.bf16.msra.mxu0 0
        %2042 = vmatprep.subr.bf16.mxu0 0
        %2043 = vmatpush1.bf16.msra.mxu0 0
        %2044 = vmatprep.subr.bf16.mxu0 0
        %2045 = vmatpush1.bf16.msra.mxu0 0
        %2046 = vmatprep.subr.bf16.mxu0 0
        %2047 = vmatpush1.bf16.msra.mxu0 0
        %2048 = vmatprep.subr.bf16.mxu0 0
        %2049 = vmatpush1.bf16.msra.mxu0 0
        %2050 = vmatprep.mubr.bf16.mxu0 0
        %2051 = vmatmul.mubr.bf16.gmra.mrb[0].mxu0 %v2016
        %v2052 = vpop.f32.mrb[0].mxu0
        %v2053 = vadd.f32 %v2001, %v2052
        %v2054 = vpop.f32.mrb[0].mxu0
        %v2055 = vpop.f32.mrb[0].mxu0
        %v2056 = vpop.f32.mrb[0].mxu0
        %2057 = vdwg.mxu0
        %v2058 = vld [vmem:[%s9] sm:$0xf]
        %v2059 = vld [vmem:[%s9 + $0x4] sm:$0xf]
        %v2060 = vld [vmem:[%s9 + $0x8] sm:$0xf]
        %v2061 = vld [vmem:[%s9 + $0xc] sm:$0xf]
        %v2062 = vld [vmem:[%s9 + $0x10] sm:$0xf]
        %v2063 = vld [vmem:[%s9 + $0x14] sm:$0xf]
        %v2064 = vld [vmem:[%s9 + $0x18] sm:$0xf]
        %v2065 = vld [vmem:[%s9 + $0x1c] sm:$0xf]
        %v2066 = vpack.c.bf16 %v1905, %v1905
        %v2075 = vunpack.c.l.b16 %v2058
        %v2076 = vunpack.c.l.b16 %v2059
        %v2077 = vunpack.c.l.b16 %v2060
        %v2078 = vunpack.c.l.b16 %v2061
        %v2079 = vunpack.c.l.b16 %v2062
        %v2080 = vunpack.c.l.b16 %v2063
        %v2081 = vunpack.c.l.b16 %v2064
        %v2082 = vunpack.c.l.b16 %v2065
        %v2083 = vpack.c.b16 %v2076, %v2075
        %v2084 = vpack.c.b16 %v2078, %v2077
        %v2085 = vpack.c.b16 %v2080, %v2079
        %v2086 = vpack.c.b16 %v2082, %v2081
        %v2092 = vsel %vm1055, %v2066, 0
        %2094 = vmatprep.subr.bf16.mxu0 0
        %2095 = vmatpush1.bf16.msra.mxu0 %v2083
        %2096 = vmatprep.subr.bf16.mxu0 0
        %2097 = vmatpush1.bf16.msra.mxu0 %v2084
        %2098 = vmatprep.subr.bf16.mxu0 0
        %2099 = vmatpush1.bf16.msra.mxu0 %v2085
        %2100 = vmatprep.subr.bf16.mxu0 0
        %2101 = vmatpush1.bf16.msra.mxu0 %v2086
        %2102 = vmatprep.subr.bf16.mxu0 0
        %2103 = vmatpush1.bf16.msra.mxu0 0
        %2104 = vmatprep.subr.bf16.mxu0 0
        %2105 = vmatpush1.bf16.msra.mxu0 0
        %2106 = vmatprep.subr.bf16.mxu0 0
        %2107 = vmatpush1.bf16.msra.mxu0 0
        %2108 = vmatprep.subr.bf16.mxu0 0
        %2109 = vmatpush1.bf16.msra.mxu0 0
        %2110 = vmatprep.subr.bf16.mxu0 0
        %2111 = vmatpush1.bf16.msra.mxu0 0
        %2112 = vmatprep.subr.bf16.mxu0 0
        %2113 = vmatpush1.bf16.msra.mxu0 0
        %2114 = vmatprep.subr.bf16.mxu0 0
        %2115 = vmatpush1.bf16.msra.mxu0 0
        %2116 = vmatprep.subr.bf16.mxu0 0
        %2117 = vmatpush1.bf16.msra.mxu0 0
        %2118 = vmatprep.subr.bf16.mxu0 0
        %2119 = vmatpush1.bf16.msra.mxu0 0
        %2120 = vmatprep.subr.bf16.mxu0 0
        %2121 = vmatpush1.bf16.msra.mxu0 0
        %2122 = vmatprep.subr.bf16.mxu0 0
        %2123 = vmatpush1.bf16.msra.mxu0 0
        %2124 = vmatprep.subr.bf16.mxu0 0
        %2125 = vmatpush1.bf16.msra.mxu0 0
        %2126 = vmatprep.mubr.bf16.mxu0 0
        %2127 = vmatmul.mubr.bf16.gmra.mrb[0].mxu0 %v2092
        %v2128 = vpop.f32.mrb[0].mxu0
        %v2129 = vadd.f32 %v2053, %v2128
        %v2130 = vpop.f32.mrb[0].mxu0
        %v2131 = vpop.f32.mrb[0].mxu0
        %v2132 = vpop.f32.mrb[0].mxu0
        %2133 = vdwg.mxu0
        %v2134 = vadd.f32 %v2129, %v1875
        %v2135 = vmax.f32 %v2134, 0.0
        %v2136 = vld [vmem:[%s10] sm:$0xf]
        %v2137 = vld [vmem:[%s10 + $0x4] sm:$0xf]
        %v2138 = vld [vmem:[%s10 + $0x8] sm:$0xf]
        %v2139 = vld [vmem:[%s10 + $0xc] sm:$0xf]
        %v2140 = vpack.c.bf16 %v2135, %v2135
        %v2141 = vld [vmem:[%s11] sm:$0x1]
        %v2143 = vlaneseq
        %v2144 = vshrl.u32 %v2143, 7
        %v2145 = vsub.s32 0, %v2144
        %v2146 = vrot.slane %v2141, %v2145
        %v2152 = vunpack.c.l.b16 %v2136
        %v2153 = vunpack.c.l.b16 %v2137
        %v2154 = vunpack.c.l.b16 %v2138
        %v2155 = vunpack.c.l.b16 %v2139
        %v2156 = vpack.c.b16 %v2153, %v2152
        %v2157 = vpack.c.b16 %v2155, %v2154
        %v2161 = vsel %vm1049, %v2140, 0
        %2163 = vmatprep.subr.bf16.mxu0 0
        %2164 = vmatpush1.bf16.msra.mxu0 %v2156
        %2165 = vmatprep.subr.bf16.mxu0 0
        %2166 = vmatpush1.bf16.msra.mxu0 %v2157
        %2167 = vmatprep.subr.bf16.mxu0 0
        %2168 = vmatpush1.bf16.msra.mxu0 0
        %2169 = vmatprep.subr.bf16.mxu0 0
        %2170 = vmatpush1.bf16.msra.mxu0 0
        %2171 = vmatprep.subr.bf16.mxu0 0
        %2172 = vmatpush1.bf16.msra.mxu0 0
        %2173 = vmatprep.subr.bf16.mxu0 0
        %2174 = vmatpush1.bf16.msra.mxu0 0
        %2175 = vmatprep.subr.bf16.mxu0 0
        %2176 = vmatpush1.bf16.msra.mxu0 0
        %2177 = vmatprep.subr.bf16.mxu0 0
        %2178 = vmatpush1.bf16.msra.mxu0 0
        %2179 = vmatprep.subr.bf16.mxu0 0
        %2180 = vmatpush1.bf16.msra.mxu0 0
        %2181 = vmatprep.subr.bf16.mxu0 0
        %2182 = vmatpush1.bf16.msra.mxu0 0
        %2183 = vmatprep.subr.bf16.mxu0 0
        %2184 = vmatpush1.bf16.msra.mxu0 0
        %2185 = vmatprep.subr.bf16.mxu0 0
        %2186 = vmatpush1.bf16.msra.mxu0 0
        %2187 = vmatprep.subr.bf16.mxu0 0
        %2188 = vmatpush1.bf16.msra.mxu0 0
        %2189 = vmatprep.subr.bf16.mxu0 0
        %2190 = vmatpush1.bf16.msra.mxu0 0
        %2191 = vmatprep.subr.bf16.mxu0 0
        %2192 = vmatpush1.bf16.msra.mxu0 0
        %2193 = vmatprep.subr.bf16.mxu0 0
        %2194 = vmatpush1.bf16.msra.mxu0 0
        %2195 = vmatprep.mubr.bf16.mxu0 0
        %2196 = vmatmul.mubr.bf16.gmra.mrb[0].mxu0 %v2161
        %v2197 = vpop.f32.mrb[0].mxu0
        %v2198 = vadd.f32 %v2146, %v2197
        %v2199 = vpop.f32.mrb[0].mxu0
        %v2200 = vpop.f32.mrb[0].mxu0
        %v2201 = vpop.f32.mrb[0].mxu0
        %2202 = vdwg.mxu0
        %v2203 = vmax.f32 %v2198, 0.0
        %v2204 = vld [vmem:[%s12] sm:$0xf]
        %v2205 = vld [vmem:[%s12 + $0x4] sm:$0xf]
        %v2206 = vld [vmem:[%s12 + $0x8] sm:$0xf]
        %v2207 = vld [vmem:[%s12 + $0xc] sm:$0xf]
        %v2208 = vpack.c.bf16 %v2203, %v2203
        %v2209 = vld [vmem:[%s13] sm:$0x1]
        %v2211 = vlaneseq
        %v2212 = vshrl.u32 %v2211, 7
        %v2213 = vsub.s32 0, %v2212
        %v2214 = vrot.slane %v2209, %v2213
        %v2220 = vunpack.c.l.b16 %v2204
        %v2221 = vunpack.c.l.b16 %v2205
        %v2222 = vunpack.c.l.b16 %v2206
        %v2223 = vunpack.c.l.b16 %v2207
        %v2224 = vpack.c.b16 %v2221, %v2220
        %v2225 = vpack.c.b16 %v2223, %v2222
        %v2229 = vsel %vm1049, %v2208, 0
        %2231 = vmatprep.subr.bf16.mxu0 0
        %2232 = vmatpush1.bf16.msra.mxu0 %v2224
        %2233 = vmatprep.subr.bf16.mxu0 0
        %2234 = vmatpush1.bf16.msra.mxu0 %v2225
        %2235 = vmatprep.subr.bf16.mxu0 0
        %2236 = vmatpush1.bf16.msra.mxu0 0
        %2237 = vmatprep.subr.bf16.mxu0 0
        %2238 = vmatpush1.bf16.msra.mxu0 0
        %2239 = vmatprep.subr.bf16.mxu0 0
        %2240 = vmatpush1.bf16.msra.mxu0 0
        %2241 = vmatprep.subr.bf16.mxu0 0
        %2242 = vmatpush1.bf16.msra.mxu0 0
        %2243 = vmatprep.subr.bf16.mxu0 0
        %2244 = vmatpush1.bf16.msra.mxu0 0
        %2245 = vmatprep.subr.bf16.mxu0 0
        %2246 = vmatpush1.bf16.msra.mxu0 0
        %2247 = vmatprep.subr.bf16.mxu0 0
        %2248 = vmatpush1.bf16.msra.mxu0 0
        %2249 = vmatprep.subr.bf16.mxu0 0
        %2250 = vmatpush1.bf16.msra.mxu0 0
        %2251 = vmatprep.subr.bf16.mxu0 0
        %2252 = vmatpush1.bf16.msra.mxu0 0
        %2253 = vmatprep.subr.bf16.mxu0 0
        %2254 = vmatpush1.bf16.msra.mxu0 0
        %2255 = vmatprep.subr.bf16.mxu0 0
        %2256 = vmatpush1.bf16.msra.mxu0 0
        %2257 = vmatprep.subr.bf16.mxu0 0
        %2258 = vmatpush1.bf16.msra.mxu0 0
        %2259 = vmatprep.subr.bf16.mxu0 0
        %2260 = vmatpush1.bf16.msra.mxu0 0
        %2261 = vmatprep.subr.bf16.mxu0 0
        %2262 = vmatpush1.bf16.msra.mxu0 0
        %2263 = vmatprep.mubr.bf16.mxu0 0
        %2264 = vmatmul.mubr.bf16.gmra.mrb[0].mxu0 %v2229
        %v2265 = vpop.f32.mrb[0].mxu0
        %v2266 = vadd.f32 %v2214, %v2265
        %v2267 = vpop.f32.mrb[0].mxu0
        %v2268 = vpop.f32.mrb[0].mxu0
        %v2269 = vpop.f32.mrb[0].mxu0
        %2270 = vdwg.mxu0
        %v2271 = vadd.f32 %v2134, %v2266
        %v2272 = vadd.f32 %v2271, %v1875
        %v2273 = vmax.f32 %v2272, 0.0
        %s2274 = scalar_lea.vmem %s10, 16
        %v2275 = vld [vmem:[%s2274] sm:$0xf]
        %v2276 = vld [vmem:[%s2274 + $0x4] sm:$0xf]
        %v2277 = vld [vmem:[%s2274 + $0x8] sm:$0xf]
        %v2278 = vld [vmem:[%s2274 + $0xc] sm:$0xf]
        %v2279 = vpack.c.bf16 %v2273, %v2273
        %s2280 = scalar_lea.vmem %s11, 1
        %v2281 = vld [vmem:[%s2280] sm:$0x1]
        %v2283 = vlaneseq
        %v2284 = vshrl.u32 %v2283, 7
        %v2285 = vsub.s32 0, %v2284
        %v2286 = vrot.slane %v2281, %v2285
        %v2292 = vunpack.c.l.b16 %v2275
        %v2293 = vunpack.c.l.b16 %v2276
        %v2294 = vunpack.c.l.b16 %v2277
        %v2295 = vunpack.c.l.b16 %v2278
        %v2296 = vpack.c.b16 %v2293, %v2292
        %v2297 = vpack.c.b16 %v2295, %v2294
        %v2301 = vsel %vm1049, %v2279, 0
        %2303 = vmatprep.subr.bf16.mxu0 0
        %2304 = vmatpush1.bf16.msra.mxu0 %v2296
        %2305 = vmatprep.subr.bf16.mxu0 0
        %2306 = vmatpush1.bf16.msra.mxu0 %v2297
        %2307 = vmatprep.subr.bf16.mxu0 0
        %2308 = vmatpush1.bf16.msra.mxu0 0
        %2309 = vmatprep.subr.bf16.mxu0 0
        %2310 = vmatpush1.bf16.msra.mxu0 0
        %2311 = vmatprep.subr.bf16.mxu0 0
        %2312 = vmatpush1.bf16.msra.mxu0 0
        %2313 = vmatprep.subr.bf16.mxu0 0
        %2314 = vmatpush1.bf16.msra.mxu0 0
        %2315 = vmatprep.subr.bf16.mxu0 0
        %2316 = vmatpush1.bf16.msra.mxu0 0
        %2317 = vmatprep.subr.bf16.mxu0 0
        %2318 = vmatpush1.bf16.msra.mxu0 0
        %2319 = vmatprep.subr.bf16.mxu0 0
        %2320 = vmatpush1.bf16.msra.mxu0 0
        %2321 = vmatprep.subr.bf16.mxu0 0
        %2322 = vmatpush1.bf16.msra.mxu0 0
        %2323 = vmatprep.subr.bf16.mxu0 0
        %2324 = vmatpush1.bf16.msra.mxu0 0
        %2325 = vmatprep.subr.bf16.mxu0 0
        %2326 = vmatpush1.bf16.msra.mxu0 0
        %2327 = vmatprep.subr.bf16.mxu0 0
        %2328 = vmatpush1.bf16.msra.mxu0 0
        %2329 = vmatprep.subr.bf16.mxu0 0
        %2330 = vmatpush1.bf16.msra.mxu0 0
        %2331 = vmatprep.subr.bf16.mxu0 0
        %2332 = vmatpush1.bf16.msra.mxu0 0
        %2333 = vmatprep.subr.bf16.mxu0 0
        %2334 = vmatpush1.bf16.msra.mxu0 0
        %2335 = vmatprep.mubr.bf16.mxu0 0
        %2336 = vmatmul.mubr.bf16.gmra.mrb[0].mxu0 %v2301
        %v2337 = vpop.f32.mrb[0].mxu0
        %v2338 = vadd.f32 %v2286, %v2337
        %v2339 = vpop.f32.mrb[0].mxu0
        %v2340 = vpop.f32.mrb[0].mxu0
        %v2341 = vpop.f32.mrb[0].mxu0
        %2342 = vdwg.mxu0
        %v2343 = vmax.f32 %v2338, 0.0
        %s2344 = scalar_lea.vmem %s12, 16
        %v2345 = vld [vmem:[%s2344] sm:$0xf]
        %v2346 = vld [vmem:[%s2344 + $0x4] sm:$0xf]
        %v2347 = vld [vmem:[%s2344 + $0x8] sm:$0xf]
        %v2348 = vld [vmem:[%s2344 + $0xc] sm:$0xf]
        %v2349 = vpack.c.bf16 %v2343, %v2343
        %s2350 = scalar_lea.vmem %s13, 1
        %v2351 = vld [vmem:[%s2350] sm:$0x1]
        %v2353 = vlaneseq
        %v2354 = vshrl.u32 %v2353, 7
        %v2355 = vsub.s32 0, %v2354
        %v2356 = vrot.slane %v2351, %v2355
        %v2362 = vunpack.c.l.b16 %v2345
        %v2363 = vunpack.c.l.b16 %v2346
        %v2364 = vunpack.c.l.b16 %v2347
        %v2365 = vunpack.c.l.b16 %v2348
        %v2366 = vpack.c.b16 %v2363, %v2362
        %v2367 = vpack.c.b16 %v2365, %v2364
        %v2371 = vsel %vm1049, %v2349, 0
        %2373 = vmatprep.subr.bf16.mxu0 0
        %2374 = vmatpush1.bf16.msra.mxu0 %v2366
        %2375 = vmatprep.subr.bf16.mxu0 0
        %2376 = vmatpush1.bf16.msra.mxu0 %v2367
        %2377 = vmatprep.subr.bf16.mxu0 0
        %2378 = vmatpush1.bf16.msra.mxu0 0
        %2379 = vmatprep.subr.bf16.mxu0 0
        %2380 = vmatpush1.bf16.msra.mxu0 0
        %2381 = vmatprep.subr.bf16.mxu0 0
        %2382 = vmatpush1.bf16.msra.mxu0 0
        %2383 = vmatprep.subr.bf16.mxu0 0
        %2384 = vmatpush1.bf16.msra.mxu0 0
        %2385 = vmatprep.subr.bf16.mxu0 0
        %2386 = vmatpush1.bf16.msra.mxu0 0
        %2387 = vmatprep.subr.bf16.mxu0 0
        %2388 = vmatpush1.bf16.msra.mxu0 0
        %2389 = vmatprep.subr.bf16.mxu0 0
        %2390 = vmatpush1.bf16.msra.mxu0 0
        %2391 = vmatprep.subr.bf16.mxu0 0
        %2392 = vmatpush1.bf16.msra.mxu0 0
        %2393 = vmatprep.subr.bf16.mxu0 0
        %2394 = vmatpush1.bf16.msra.mxu0 0
        %2395 = vmatprep.subr.bf16.mxu0 0
        %2396 = vmatpush1.bf16.msra.mxu0 0
        %2397 = vmatprep.subr.bf16.mxu0 0
        %2398 = vmatpush1.bf16.msra.mxu0 0
        %2399 = vmatprep.subr.bf16.mxu0 0
        %2400 = vmatpush1.bf16.msra.mxu0 0
        %2401 = vmatprep.subr.bf16.mxu0 0
        %2402 = vmatpush1.bf16.msra.mxu0 0
        %2403 = vmatprep.subr.bf16.mxu0 0
        %2404 = vmatpush1.bf16.msra.mxu0 0
        %2405 = vmatprep.mubr.bf16.mxu0 0
        %2406 = vmatmul.mubr.bf16.gmra.mrb[0].mxu0 %v2371
        %v2407 = vpop.f32.mrb[0].mxu0
        %v2408 = vadd.f32 %v2356, %v2407
        %v2409 = vpop.f32.mrb[0].mxu0
        %v2410 = vpop.f32.mrb[0].mxu0
        %v2411 = vpop.f32.mrb[0].mxu0
        %2412 = vdwg.mxu0
        %v2413 = vadd.f32 %v2272, %v2408
        %v2414 = vadd.f32 %v2413, %v1875
        %v2415 = vmax.f32 %v2414, 0.0
        %s2416 = scalar_lea.vmem %s10, 32
        %v2417 = vld [vmem:[%s2416] sm:$0xf]
        %v2418 = vld [vmem:[%s2416 + $0x4] sm:$0xf]
        %v2419 = vld [vmem:[%s2416 + $0x8] sm:$0xf]
        %v2420 = vld [vmem:[%s2416 + $0xc] sm:$0xf]
        %v2421 = vpack.c.bf16 %v2415, %v2415
        %s2422 = scalar_lea.vmem %s11, 2
        %v2423 = vld [vmem:[%s2422] sm:$0x1]
        %v2425 = vlaneseq
        %v2426 = vshrl.u32 %v2425, 7
        %v2427 = vsub.s32 0, %v2426
        %v2428 = vrot.slane %v2423, %v2427
        %v2434 = vunpack.c.l.b16 %v2417
        %v2435 = vunpack.c.l.b16 %v2418
        %v2436 = vunpack.c.l.b16 %v2419
        %v2437 = vunpack.c.l.b16 %v2420
        %v2438 = vpack.c.b16 %v2435, %v2434
        %v2439 = vpack.c.b16 %v2437, %v2436
        %v2443 = vsel %vm1049, %v2421, 0
        %2445 = vmatprep.subr.bf16.mxu0 0
        %2446 = vmatpush1.bf16.msra.mxu0 %v2438
        %2447 = vmatprep.subr.bf16.mxu0 0
        %2448 = vmatpush1.bf16.msra.mxu0 %v2439
        %2449 = vmatprep.subr.bf16.mxu0 0
        %2450 = vmatpush1.bf16.msra.mxu0 0
        %2451 = vmatprep.subr.bf16.mxu0 0
        %2452 = vmatpush1.bf16.msra.mxu0 0
        %2453 = vmatprep.subr.bf16.mxu0 0
        %2454 = vmatpush1.bf16.msra.mxu0 0
        %2455 = vmatprep.subr.bf16.mxu0 0
        %2456 = vmatpush1.bf16.msra.mxu0 0
        %2457 = vmatprep.subr.bf16.mxu0 0
        %2458 = vmatpush1.bf16.msra.mxu0 0
        %2459 = vmatprep.subr.bf16.mxu0 0
        %2460 = vmatpush1.bf16.msra.mxu0 0
        %2461 = vmatprep.subr.bf16.mxu0 0
        %2462 = vmatpush1.bf16.msra.mxu0 0
        %2463 = vmatprep.subr.bf16.mxu0 0
        %2464 = vmatpush1.bf16.msra.mxu0 0
        %2465 = vmatprep.subr.bf16.mxu0 0
        %2466 = vmatpush1.bf16.msra.mxu0 0
        %2467 = vmatprep.subr.bf16.mxu0 0
        %2468 = vmatpush1.bf16.msra.mxu0 0
        %2469 = vmatprep.subr.bf16.mxu0 0
        %2470 = vmatpush1.bf16.msra.mxu0 0
        %2471 = vmatprep.subr.bf16.mxu0 0
        %2472 = vmatpush1.bf16.msra.mxu0 0
        %2473 = vmatprep.subr.bf16.mxu0 0
        %2474 = vmatpush1.bf16.msra.mxu0 0
        %2475 = vmatprep.subr.bf16.mxu0 0
        %2476 = vmatpush1.bf16.msra.mxu0 0
        %2477 = vmatprep.mubr.bf16.mxu0 0
        %2478 = vmatmul.mubr.bf16.gmra.mrb[0].mxu0 %v2443
        %v2479 = vpop.f32.mrb[0].mxu0
        %v2480 = vadd.f32 %v2428, %v2479
        %v2481 = vpop.f32.mrb[0].mxu0
        %v2482 = vpop.f32.mrb[0].mxu0
        %v2483 = vpop.f32.mrb[0].mxu0
        %2484 = vdwg.mxu0
        %v2485 = vmax.f32 %v2480, 0.0
        %s2486 = scalar_lea.vmem %s12, 32
        %v2487 = vld [vmem:[%s2486] sm:$0xf]
        %v2488 = vld [vmem:[%s2486 + $0x4] sm:$0xf]
        %v2489 = vld [vmem:[%s2486 + $0x8] sm:$0xf]
        %v2490 = vld [vmem:[%s2486 + $0xc] sm:$0xf]
        %v2491 = vpack.c.bf16 %v2485, %v2485
        %s2492 = scalar_lea.vmem %s13, 2
        %v2493 = vld [vmem:[%s2492] sm:$0x1]
        %v2495 = vlaneseq
        %v2496 = vshrl.u32 %v2495, 7
        %v2497 = vsub.s32 0, %v2496
        %v2498 = vrot.slane %v2493, %v2497
        %v2504 = vunpack.c.l.b16 %v2487
        %v2505 = vunpack.c.l.b16 %v2488
        %v2506 = vunpack.c.l.b16 %v2489
        %v2507 = vunpack.c.l.b16 %v2490
        %v2508 = vpack.c.b16 %v2505, %v2504
        %v2509 = vpack.c.b16 %v2507, %v2506
        %v2513 = vsel %vm1049, %v2491, 0
        %2515 = vmatprep.subr.bf16.mxu0 0
        %2516 = vmatpush1.bf16.msra.mxu0 %v2508
        %2517 = vmatprep.subr.bf16.mxu0 0
        %2518 = vmatpush1.bf16.msra.mxu0 %v2509
        %2519 = vmatprep.subr.bf16.mxu0 0
        %2520 = vmatpush1.bf16.msra.mxu0 0
        %2521 = vmatprep.subr.bf16.mxu0 0
        %2522 = vmatpush1.bf16.msra.mxu0 0
        %2523 = vmatprep.subr.bf16.mxu0 0
        %2524 = vmatpush1.bf16.msra.mxu0 0
        %2525 = vmatprep.subr.bf16.mxu0 0
        %2526 = vmatpush1.bf16.msra.mxu0 0
        %2527 = vmatprep.subr.bf16.mxu0 0
        %2528 = vmatpush1.bf16.msra.mxu0 0
        %2529 = vmatprep.subr.bf16.mxu0 0
        %2530 = vmatpush1.bf16.msra.mxu0 0
        %2531 = vmatprep.subr.bf16.mxu0 0
        %2532 = vmatpush1.bf16.msra.mxu0 0
        %2533 = vmatprep.subr.bf16.mxu0 0
        %2534 = vmatpush1.bf16.msra.mxu0 0
        %2535 = vmatprep.subr.bf16.mxu0 0
        %2536 = vmatpush1.bf16.msra.mxu0 0
        %2537 = vmatprep.subr.bf16.mxu0 0
        %2538 = vmatpush1.bf16.msra.mxu0 0
        %2539 = vmatprep.subr.bf16.mxu0 0
        %2540 = vmatpush1.bf16.msra.mxu0 0
        %2541 = vmatprep.subr.bf16.mxu0 0
        %2542 = vmatpush1.bf16.msra.mxu0 0
        %2543 = vmatprep.subr.bf16.mxu0 0
        %2544 = vmatpush1.bf16.msra.mxu0 0
        %2545 = vmatprep.subr.bf16.mxu0 0
        %2546 = vmatpush1.bf16.msra.mxu0 0
        %2547 = vmatprep.mubr.bf16.mxu0 0
        %2548 = vmatmul.mubr.bf16.gmra.mrb[0].mxu0 %v2513
        %v2549 = vpop.f32.mrb[0].mxu0
        %v2550 = vadd.f32 %v2498, %v2549
        %v2551 = vpop.f32.mrb[0].mxu0
        %v2552 = vpop.f32.mrb[0].mxu0
        %v2553 = vpop.f32.mrb[0].mxu0
        %2554 = vdwg.mxu0
        %v2555 = vadd.f32 %v2414, %v2550
        %v2556 = vadd.f32 %v2555, %v1875
        %v2557 = vmax.f32 %v2556, 0.0
        %s2558 = scalar_lea.vmem %s10, 48
        %v2559 = vld [vmem:[%s2558] sm:$0xf]
        %v2560 = vld [vmem:[%s2558 + $0x4] sm:$0xf]
        %v2561 = vld [vmem:[%s2558 + $0x8] sm:$0xf]
        %v2562 = vld [vmem:[%s2558 + $0xc] sm:$0xf]
        %v2563 = vpack.c.bf16 %v2557, %v2557
        %s2564 = scalar_lea.vmem %s11, 3
        %v2565 = vld [vmem:[%s2564] sm:$0x1]
        %v2567 = vlaneseq
        %v2568 = vshrl.u32 %v2567, 7
        %v2569 = vsub.s32 0, %v2568
        %v2570 = vrot.slane %v2565, %v2569
        %v2576 = vunpack.c.l.b16 %v2559
        %v2577 = vunpack.c.l.b16 %v2560
        %v2578 = vunpack.c.l.b16 %v2561
        %v2579 = vunpack.c.l.b16 %v2562
        %v2580 = vpack.c.b16 %v2577, %v2576
        %v2581 = vpack.c.b16 %v2579, %v2578
        %v2585 = vsel %vm1049, %v2563, 0
        %2587 = vmatprep.subr.bf16.mxu0 0
        %2588 = vmatpush1.bf16.msra.mxu0 %v2580
        %2589 = vmatprep.subr.bf16.mxu0 0
        %2590 = vmatpush1.bf16.msra.mxu0 %v2581
        %2591 = vmatprep.subr.bf16.mxu0 0
        %2592 = vmatpush1.bf16.msra.mxu0 0
        %2593 = vmatprep.subr.bf16.mxu0 0
        %2594 = vmatpush1.bf16.msra.mxu0 0
        %2595 = vmatprep.subr.bf16.mxu0 0
        %2596 = vmatpush1.bf16.msra.mxu0 0
        %2597 = vmatprep.subr.bf16.mxu0 0
        %2598 = vmatpush1.bf16.msra.mxu0 0
        %2599 = vmatprep.subr.bf16.mxu0 0
        %2600 = vmatpush1.bf16.msra.mxu0 0
        %2601 = vmatprep.subr.bf16.mxu0 0
        %2602 = vmatpush1.bf16.msra.mxu0 0
        %2603 = vmatprep.subr.bf16.mxu0 0
        %2604 = vmatpush1.bf16.msra.mxu0 0
        %2605 = vmatprep.subr.bf16.mxu0 0
        %2606 = vmatpush1.bf16.msra.mxu0 0
        %2607 = vmatprep.subr.bf16.mxu0 0
        %2608 = vmatpush1.bf16.msra.mxu0 0
        %2609 = vmatprep.subr.bf16.mxu0 0
        %2610 = vmatpush1.bf16.msra.mxu0 0
        %2611 = vmatprep.subr.bf16.mxu0 0
        %2612 = vmatpush1.bf16.msra.mxu0 0
        %2613 = vmatprep.subr.bf16.mxu0 0
        %2614 = vmatpush1.bf16.msra.mxu0 0
        %2615 = vmatprep.subr.bf16.mxu0 0
        %2616 = vmatpush1.bf16.msra.mxu0 0
        %2617 = vmatprep.subr.bf16.mxu0 0
        %2618 = vmatpush1.bf16.msra.mxu0 0
        %2619 = vmatprep.mubr.bf16.mxu0 0
        %2620 = vmatmul.mubr.bf16.gmra.mrb[0].mxu0 %v2585
        %v2621 = vpop.f32.mrb[0].mxu0
        %v2622 = vadd.f32 %v2570, %v2621
        %v2623 = vpop.f32.mrb[0].mxu0
        %v2624 = vpop.f32.mrb[0].mxu0
        %v2625 = vpop.f32.mrb[0].mxu0
        %2626 = vdwg.mxu0
        %v2627 = vmax.f32 %v2622, 0.0
        %s2628 = scalar_lea.vmem %s12, 48
        %v2629 = vld [vmem:[%s2628] sm:$0xf]
        %v2630 = vld [vmem:[%s2628 + $0x4] sm:$0xf]
        %v2631 = vld [vmem:[%s2628 + $0x8] sm:$0xf]
        %v2632 = vld [vmem:[%s2628 + $0xc] sm:$0xf]
        %v2633 = vpack.c.bf16 %v2627, %v2627
        %s2634 = scalar_lea.vmem %s13, 3
        %v2635 = vld [vmem:[%s2634] sm:$0x1]
        %v2637 = vlaneseq
        %v2638 = vshrl.u32 %v2637, 7
        %v2639 = vsub.s32 0, %v2638
        %v2640 = vrot.slane %v2635, %v2639
        %v2646 = vunpack.c.l.b16 %v2629
        %v2647 = vunpack.c.l.b16 %v2630
        %v2648 = vunpack.c.l.b16 %v2631
        %v2649 = vunpack.c.l.b16 %v2632
        %v2650 = vpack.c.b16 %v2647, %v2646
        %v2651 = vpack.c.b16 %v2649, %v2648
        %v2655 = vsel %vm1049, %v2633, 0
        %2657 = vmatprep.subr.bf16.mxu0 0
        %2658 = vmatpush1.bf16.msra.mxu0 %v2650
        %2659 = vmatprep.subr.bf16.mxu0 0
        %2660 = vmatpush1.bf16.msra.mxu0 %v2651
        %2661 = vmatprep.subr.bf16.mxu0 0
        %2662 = vmatpush1.bf16.msra.mxu0 0
        %2663 = vmatprep.subr.bf16.mxu0 0
        %2664 = vmatpush1.bf16.msra.mxu0 0
        %2665 = vmatprep.subr.bf16.mxu0 0
        %2666 = vmatpush1.bf16.msra.mxu0 0
        %2667 = vmatprep.subr.bf16.mxu0 0
        %2668 = vmatpush1.bf16.msra.mxu0 0
        %2669 = vmatprep.subr.bf16.mxu0 0
        %2670 = vmatpush1.bf16.msra.mxu0 0
        %2671 = vmatprep.subr.bf16.mxu0 0
        %2672 = vmatpush1.bf16.msra.mxu0 0
        %2673 = vmatprep.subr.bf16.mxu0 0
        %2674 = vmatpush1.bf16.msra.mxu0 0
        %2675 = vmatprep.subr.bf16.mxu0 0
        %2676 = vmatpush1.bf16.msra.mxu0 0
        %2677 = vmatprep.subr.bf16.mxu0 0
        %2678 = vmatpush1.bf16.msra.mxu0 0
        %2679 = vmatprep.subr.bf16.mxu0 0
        %2680 = vmatpush1.bf16.msra.mxu0 0
        %2681 = vmatprep.subr.bf16.mxu0 0
        %2682 = vmatpush1.bf16.msra.mxu0 0
        %2683 = vmatprep.subr.bf16.mxu0 0
        %2684 = vmatpush1.bf16.msra.mxu0 0
        %2685 = vmatprep.subr.bf16.mxu0 0
        %2686 = vmatpush1.bf16.msra.mxu0 0
        %2687 = vmatprep.subr.bf16.mxu0 0
        %2688 = vmatpush1.bf16.msra.mxu0 0
        %2689 = vmatprep.mubr.bf16.mxu0 0
        %2690 = vmatmul.mubr.bf16.gmra.mrb[0].mxu0 %v2655
        %v2691 = vpop.f32.mrb[0].mxu0
        %v2692 = vadd.f32 %v2640, %v2691
        %v2693 = vpop.f32.mrb[0].mxu0
        %v2694 = vpop.f32.mrb[0].mxu0
        %v2695 = vpop.f32.mrb[0].mxu0
        %2696 = vdwg.mxu0
        %v2697 = vadd.f32 %v2556, %v2692
        %v2698 = vadd.f32 %v2697, %v1875
        %v2699 = vmax.f32 %v2698, 0.0
        %v2700 = vld [vmem:[%s14] sm:$0x1]
        %v2701 = vld [vmem:[#allocation2] sm:$0x1]
        %2703 = vset.pattern.permute.xlu0 0
        %2704 = vperm.xlu0 %2703, %v2701
        %v2705 = vpop.permute.xlu0 %2704
        %v2707 = vlaneseq
        %v2708 = vshrl.u32 %v2707, 7
        %v2709 = vsub.s32 0, %v2708
        %v2710 = vrot.slane %v2705, %v2709
        %v2712 = vsel %vm1049, %v2700, 0
        %v2715 = vsel %vm1049, %v2699, 0
        %2717 = vmatprep.subr.mxu0 0.0
        %2718 = vmatpush1.xpose.msra.mxu0 %v2715
        %2719 = vmatprep.subr.mxu0 0.0
        %2720 = vmatpush1.xpose.msra.mxu0 0.0
        %2721 = vmatprep.subr.mxu0 0.0
        %2722 = vmatpush1.xpose.msra.mxu0 0.0
        %2723 = vmatprep.subr.mxu0 0.0
        %2724 = vmatpush1.xpose.msra.mxu0 0.0
        %2725 = vmatprep.subr.mxu0 0.0
        %2726 = vmatpush1.xpose.msra.mxu0 0.0
        %2727 = vmatprep.subr.mxu0 0.0
        %2728 = vmatpush1.xpose.msra.mxu0 0.0
        %2729 = vmatprep.subr.mxu0 0.0
        %2730 = vmatpush1.xpose.msra.mxu0 0.0
        %2731 = vmatprep.subr.mxu0 0.0
        %2732 = vmatpush1.xpose.msra.mxu0 0.0
        %2733 = vmatprep.subr.mxu0 0.0
        %2734 = vmatpush1.xpose.msra.mxu0 0.0
        %2735 = vmatprep.subr.mxu0 0.0
        %2736 = vmatpush1.xpose.msra.mxu0 0.0
        %2737 = vmatprep.subr.mxu0 0.0
        %2738 = vmatpush1.xpose.msra.mxu0 0.0
        %2739 = vmatprep.subr.mxu0 0.0
        %2740 = vmatpush1.xpose.msra.mxu0 0.0
        %2741 = vmatprep.subr.mxu0 0.0
        %2742 = vmatpush1.xpose.msra.mxu0 0.0
        %2743 = vmatprep.subr.mxu0 0.0
        %2744 = vmatpush1.xpose.msra.mxu0 0.0
        %2745 = vmatprep.subr.mxu0 0.0
        %2746 = vmatpush1.xpose.msra.mxu0 0.0
        %2747 = vmatprep.subr.mxu0 0.0
        %2748 = vmatpush1.xpose.msra.mxu0 0.0
        %2749 = vmatprep.subr.mxu0 0.0
        %2750 = vmatpush1.xpose.msra.mxu0 0.0
        %2751 = vmatprep.subr.mxu0 0.0
        %2752 = vmatpush1.xpose.msra.mxu0 0.0
        %2753 = vmatprep.subr.mxu0 0.0
        %2754 = vmatpush1.xpose.msra.mxu0 0.0
        %2755 = vmatprep.subr.mxu0 0.0
        %2756 = vmatpush1.xpose.msra.mxu0 0.0
        %2757 = vmatprep.subr.mxu0 0.0
        %2758 = vmatpush1.xpose.msra.mxu0 0.0
        %2759 = vmatprep.subr.mxu0 0.0
        %2760 = vmatpush1.xpose.msra.mxu0 0.0
        %2761 = vmatprep.subr.mxu0 0.0
        %2762 = vmatpush1.xpose.msra.mxu0 0.0
        %2763 = vmatprep.subr.mxu0 0.0
        %2764 = vmatpush1.xpose.msra.mxu0 0.0
        %2765 = vmatprep.subr.mxu0 0.0
        %2766 = vmatpush1.xpose.msra.mxu0 0.0
        %2767 = vmatprep.subr.mxu0 0.0
        %2768 = vmatpush1.xpose.msra.mxu0 0.0
        %2769 = vmatprep.subr.mxu0 0.0
        %2770 = vmatpush1.xpose.msra.mxu0 0.0
        %2771 = vmatprep.subr.mxu0 0.0
        %2772 = vmatpush1.xpose.msra.mxu0 0.0
        %2773 = vmatprep.subr.mxu0 0.0
        %2774 = vmatpush1.xpose.msra.mxu0 0.0
        %2775 = vmatprep.subr.mxu0 0.0
        %2776 = vmatpush1.xpose.msra.mxu0 0.0
        %2777 = vmatprep.subr.mxu0 0.0
        %2778 = vmatpush1.xpose.msra.mxu0 0.0
        %2779 = vmatprep.subr.mxu0 0.0
        %2780 = vmatpush1.xpose.msra.mxu0 0.0
        %2781 = vmatprep.mubr.f32.mxu0 0.0
        %2782 = vmatmul.mubr.f32.gmra.mrb[0].mxu0 %v2712
        %v2783 = vpop.f32.mrb[0].mxu0
        %v2784 = vadd.f32 %v2710, %v2783
        %v2785 = vpop.f32.mrb[0].mxu0
        %2786 = vdwg.mxu0
        %vm2787 = vcmask 57344
        %2788 = vst.msk [vmem:[%s563] sm:$0x1] %vm2787, %v2784
        %s2789 = sand.u32 %s407, 1
        %s2790 = scalar_lea.sflag [#allocation4], %s2789
        %s2791 = sand.u32 %s407, 1
        %s2792 = scalar_lea.vmem [#allocation3], %s2791
        // Predicated region
        $region85: #{tpu_custom_call.1} parent=83 // pred_check
          %p2793 = pneg %p417
        $region86: #{tpu_custom_call.1} parent=83 // pred_check_branch
          %2795 = sbr.rel (%p2793) target = $region88
        $region87: #{tpu_custom_call.1} parent=83 // pred_region
          %s2797 = ssub.s32 16, 16
          %2798 = vsyncadd %s2790, %s2797
          %s2799 = sadd.s32 %s37, %s36
          %s2800 = smul.addr %s2799, 16
          %s2801 = scalar_lea.hbm %s16, %s2800
          %s2803 = sshll.u32 %s2792, 4
          %s2804 = int_to_ptr.vmem [resolvable:$true] %s2803
          %2806 = dma.vmem_to_hbm [thread:$0]  %s2804, 16, %s2801, %s2790
        $region88: #{tpu_custom_call.1} parent=83 // pred_fallthru
          _
      $region84: #{tpu_custom_call.1} parent=5 // pred_fallthru
        _
      %p2807 = scmp.le.s32.totalorder 2, %s27
      // Predicated region
      $region89: #{tpu_custom_call.1} parent=5 // pred_check
        %p2808 = pneg %p2807
      $region90: #{tpu_custom_call.1} parent=5 // pred_check_branch
        %2810 = sbr.rel (%p2808) target = $region92
      $region91: #{tpu_custom_call.1} parent=5 // pred_region
        %s2811 = ssub.s32 %s27, 2
        // Predicated region
        $region93: #{tpu_custom_call.1} parent=91 // pred_check
          %p2812 = pneg %p423
        $region94: #{tpu_custom_call.1} parent=91 // pred_check_branch
          %2814 = sbr.rel (%p2812) target = $region96
        $region95: #{tpu_custom_call.1} parent=91 // pred_region
          %s2815 = sand.u32 %s408, 1
          %s2816 = scalar_lea.sflag [#allocation4], %s2815
          %s2817 = sand.u32 %s408, 1
          %s2818 = scalar_lea.vmem [#allocation3], %s2817
          %2819 = dma.done %s2816, 16
        $region96: #{tpu_custom_call.1} parent=91 // pred_fallthru
          _
      $region92: #{tpu_custom_call.1} parent=5 // pred_fallthru
        _
    $region6: #{tpu_custom_call.1} parent=1 // loop_footer
      %s31 = sadd.s32 1, %s27
    $region7: #{tpu_custom_call.1} parent=1 // loop_footer_branch
      %26 = sbr.rel target = $region3
    $region8: #{tpu_custom_call.1} parent=1 // loop_exit
      _
    %2820 = vsyncpa [#allocation4], 1
    %s2821 = scalar_lea.sflag [#allocation4], 1
    %2822 = vsyncpa %s2821, 1

</llo_original>
